<compile_context>
chip_gen: v6e
topology: v6e:2x2x1
jax: 0.10.0
libtpu: 0.0.40
codegen_flags: <defaults>
</compile_context>

<pallas_src>
import functools

import jax
import jax.numpy as jnp
from jax.experimental import pallas as pl
from jax.experimental.pallas import tpu as pltpu


def _round_up(n, m):
    return ((n + m - 1) // m) * m


def _value_net_kernel(x_ref, w1_ref, b1_ref, w2_ref, b2_ref, o_ref, *, mxu_dtype):
    # x_ref : (TB, D_in)            f32   streamed batch tile
    # w1_ref: (D_in, H)             mxu_dtype, resident
    # b1_ref: (1, H)                f32   resident
    # w2_ref: (1, H)                f32   resident (second Linear weight as a row)
    # b2_ref: (1,)                  f32   scalar in SMEM
    # o_ref : (1, TB//chunk, chunk) f32   lane-dense output slab
    _, n_chunks, chunk = o_ref.shape

    w1 = w1_ref[...]
    b1 = b1_ref[...]
    w2 = w2_ref[...]
    b2 = b2_ref[0]

    # Fully-unrolled sub-chunk loop with static offsets.  Each chunk's (chunk,H)
    # intermediate dies at its store, keeping the live set well under the
    # 64-vreg file -- this is what makes large TB tiles spill-free.
    for c in range(n_chunks):
        xc = x_ref[pl.ds(c * chunk, chunk), :].astype(mxu_dtype)     # VPU cast
        h = jnp.dot(xc, w1, preferred_element_type=jnp.float32)      # MXU
        h = jnp.maximum(h + b1, 0.0)                                 # VPU, f32
        vals = jnp.sum(h * w2, axis=-1) + b2                         # VPU + XLU
        o_ref[:, pl.ds(c, 1), :] = vals.reshape(1, 1, chunk)


def value_network_forward(x, w1, b1, w2, b2, *, block_b=4096, chunk=256,
                          mxu_dtype=jnp.bfloat16):
    """relu(x @ w1 + b1) @ w2 + b2 -> (B, 1), computed in one Pallas kernel."""
    B, D_in = x.shape
    H = w1.shape[1]
    assert chunk % 128 == 0 and block_b % chunk == 0

    if x.dtype != jnp.float32:
        x = x.astype(jnp.float32)

    if B < chunk:
        # Tiny batch: one tile sized to the batch, single chunk.
        TB = _round_up(B, 8)
        chunk_eff = TB
    else:
        # Batch tile: multiple of `chunk`, capped at block_b, aimed at >= 2
        # grid steps so v7x megacore can split the batch across cores.
        TB = max(chunk, min(block_b, _round_up(pl.cdiv(B, 2), chunk)))
        chunk_eff = chunk
    S = TB // chunk_eff
    G = pl.cdiv(B, TB)   # ragged last tile handled by Pallas (no pad/copy of x)

    w1_c = w1.astype(mxu_dtype)                       # tiny, resident in VMEM
    b1_row = b1.reshape(1, H).astype(jnp.float32)
    w2_row = w2.reshape(1, H).astype(jnp.float32)     # (H, 1) -> (1, H) row
    b2_s = jnp.asarray(b2, jnp.float32).reshape(1)    # scalar, lives in SMEM

    kernel = functools.partial(_value_net_kernel, mxu_dtype=mxu_dtype)

    out = pl.pallas_call(
        kernel,
        out_shape=jax.ShapeDtypeStruct((G, S, chunk_eff), jnp.float32),
        grid_spec=pltpu.PrefetchScalarGridSpec(
            num_scalar_prefetch=0,
            grid=(G,),
            in_specs=[
                pl.BlockSpec((TB, D_in), lambda i: (i, 0)),          # streamed x (f32)
                pl.BlockSpec((D_in, H), lambda i: (0, 0)),           # resident W1
                pl.BlockSpec((1, H), lambda i: (0, 0)),              # resident b1
                pl.BlockSpec((1, H), lambda i: (0, 0)),              # resident w2 row
                pl.BlockSpec(memory_space=pltpu.MemorySpace.SMEM),   # b2 scalar
            ],
            out_specs=pl.BlockSpec((1, S, chunk_eff), lambda i: (i, 0, 0)),
        ),
        compiler_params=pltpu.CompilerParams(
            dimension_semantics=("parallel",),
        ),
    )(x, w1_c, b1_row, w2_row, b2_s)

    # Layout plumbing only: lane-dense (G, S, chunk) slab -> (B, 1) column.
    return out.reshape(G * TB)[:B].reshape(B, 1)


def init_params(key, input_dim, hidden_dim=64):
    # Mimics PyTorch nn.Linear default init (uniform +/- 1/sqrt(fan_in)).
    k1, k2, k3, k4 = jax.random.split(key, 4)
    bound1 = 1.0 / (input_dim ** 0.5)
    bound2 = 1.0 / (hidden_dim ** 0.5)
    w1 = jax.random.uniform(k1, (input_dim, hidden_dim), jnp.float32, -bound1, bound1)
    b1 = jax.random.uniform(k2, (1, hidden_dim), jnp.float32, -bound1, bound1)
    w2 = jax.random.uniform(k3, (hidden_dim, 1), jnp.float32, -bound2, bound2)
    b2 = jax.random.uniform(k4, (1, 1), jnp.float32, -bound2, bound2)
    return w1, b1, w2, b2


if __name__ == "__main__":
    key = jax.random.PRNGKey(0)
    kx1, kx2, kp = jax.random.split(key, 3)

    input_dim, hidden_dim = 32, 64
    w1, b1, w2, b2 = init_params(kp, input_dim, hidden_dim)

    # 1) Perf-shaped batch: multi-tile grid + inner sub-chunk loop
    #    (default bf16 MXU operands, f32 everywhere else).
    B1 = 1024
    x1 = jax.random.normal(kx1, (B1, input_dim), jnp.float32)
    out1 = jax.block_until_ready(value_network_forward(x1, w1, b1, w2, b2))

    h_ref = jnp.maximum(
        jnp.dot(x1.astype(jnp.bfloat16), w1.astype(jnp.bfloat16),
                preferred_element_type=jnp.float32) + b1, 0.0)
    ref1 = jnp.sum(h_ref * w2.reshape(1, -1), axis=-1, keepdims=True) + b2
    assert out1.shape == (B1, 1)
    assert jnp.allclose(out1, ref1, atol=1e-4, rtol=1e-4)

    # 2) Tiny batch on the full-f32 MXU path (fp32 parity with PyTorch).
    B2 = 8
    x2 = jax.random.normal(kx2, (B2, input_dim), jnp.float32)
    out2 = jax.block_until_ready(
        value_network_forward(x2, w1, b1, w2, b2, mxu_dtype=jnp.float32))

    h2 = jnp.maximum(
        jnp.dot(x2, w1, precision=jax.lax.Precision.HIGHEST) + b1, 0.0)
    ref2 = jnp.sum(h2 * w2.reshape(1, -1), axis=-1, keepdims=True) + b2
    assert out2.shape == (B2, 1)
    assert jnp.allclose(out2, ref2, atol=2e-2, rtol=2e-2)

    print("KERNEL_OK")
</pallas_src>

<mosaic_0001>
module attributes {stable_mosaic.version = 11 : i64} {
  func.func @_value_net_kernel(%arg0: i32, %arg1: memref<512x32xf32, #tpu.memory_space<vmem>>, %arg2: memref<32x64xbf16, #tpu.memory_space<vmem>>, %arg3: memref<1x64xf32, #tpu.memory_space<vmem>>, %arg4: memref<1x64xf32, #tpu.memory_space<vmem>>, %arg5: memref<1xf32, #tpu.memory_space<smem>>, %arg6: memref<1x2x256xf32, #tpu.memory_space<vmem>>) attributes {dimension_semantics = [#tpu.dimension_semantics<parallel>], iteration_bounds = array<i64: 2>, scalar_prefetch = 0 : i64, scratch_operands = 0 : i64, tpu.core_type = #tpu.core_type<tc>, window_params = [{transform_indices = @transform_0, window_bounds = array<i64: 512, 32>}, {pipeline_mode = #tpu.pipeline_mode<synchronous>, transform_indices = @transform_1, window_bounds = array<i64: 32, 64>}, {pipeline_mode = #tpu.pipeline_mode<synchronous>, transform_indices = @transform_2, window_bounds = array<i64: 1, 64>}, {pipeline_mode = #tpu.pipeline_mode<synchronous>, transform_indices = @transform_3, window_bounds = array<i64: 1, 64>}, {transform_indices = @transform_4, window_bounds = array<i64: 1>}, {transform_indices = @transform_5, window_bounds = array<i64: 1, 2, 256>}]} {
    %c0 = arith.constant 0 : index
    %c0_0 = arith.constant 0 : index
    %0 = vector.load %arg2[%c0, %c0_0] : memref<32x64xbf16, #tpu.memory_space<vmem>>, vector<32x64xbf16>
    %c0_1 = arith.constant 0 : index
    %c0_2 = arith.constant 0 : index
    %1 = vector.load %arg3[%c0_1, %c0_2] : memref<1x64xf32, #tpu.memory_space<vmem>>, vector<1x64xf32>
    %c0_3 = arith.constant 0 : index
    %c0_4 = arith.constant 0 : index
    %2 = vector.load %arg4[%c0_3, %c0_4] : memref<1x64xf32, #tpu.memory_space<vmem>>, vector<1x64xf32>
    %c0_5 = arith.constant 0 : index
    %3 = memref.load %arg5[%c0_5] : memref<1xf32, #tpu.memory_space<smem>>
    %c0_6 = arith.constant 0 : index
    %c0_7 = arith.constant 0 : index
    %4 = vector.load %arg1[%c0_6, %c0_7] : memref<512x32xf32, #tpu.memory_space<vmem>>, vector<256x32xf32>
    %5 = arith.truncf %4 : vector<256x32xf32> to vector<256x32xbf16>
    %cst = arith.constant dense<0.000000e+00> : vector<256x64xf32>
    %6 = tpu.matmul %5, %0, %cst {dimension_numbers = #tpu.dot_dimension_numbers<[1], [0], [0], [1], [0, 0, 1, 1], [], []>} : vector<256x32xbf16>, vector<32x64xbf16>, vector<256x64xf32> -> vector<256x64xf32>
    %7 = vector.broadcast %1 : vector<1x64xf32> to vector<256x64xf32>
    %8 = arith.addf %6, %7 : vector<256x64xf32>
    %cst_8 = arith.constant 0.000000e+00 : f32
    %9 = vector.broadcast %cst_8 : f32 to vector<256x64xf32>
    %10 = arith.maximumf %8, %9 : vector<256x64xf32>
    %11 = vector.broadcast %2 : vector<1x64xf32> to vector<256x64xf32>
    %12 = arith.mulf %10, %11 : vector<256x64xf32>
    %cst_9 = arith.constant dense<0.000000e+00> : vector<256xf32>
    %13 = vector.multi_reduction <add>, %12, %cst_9 [1] : vector<256x64xf32> to vector<256xf32>
    %14 = vector.broadcast %3 : f32 to vector<256xf32>
    %15 = arith.addf %13, %14 : vector<256xf32>
    %16 = vector.shape_cast %15 : vector<256xf32> to vector<1x1x256xf32>
    %c0_10 = arith.constant 0 : index
    %c0_11 = arith.constant 0 : index
    %c0_12 = arith.constant 0 : index
    %17 = vector.load %arg6[%c0_10, %c0_11, %c0_12] : memref<1x2x256xf32, #tpu.memory_space<vmem>>, vector<1x1x256xf32>
    tpu.vector_store %arg6[%c0_10, %c0_11, %c0_12], %16 {strides = array<i32>} : memref<1x2x256xf32, #tpu.memory_space<vmem>>, vector<1x1x256xf32>,
    %c256 = arith.constant 256 : index
    %c0_13 = arith.constant 0 : index
    %18 = vector.load %arg1[%c256, %c0_13] : memref<512x32xf32, #tpu.memory_space<vmem>>, vector<256x32xf32>
    %19 = arith.truncf %18 : vector<256x32xf32> to vector<256x32xbf16>
    %cst_14 = arith.constant dense<0.000000e+00> : vector<256x64xf32>
    %20 = tpu.matmul %19, %0, %cst_14 {dimension_numbers = #tpu.dot_dimension_numbers<[1], [0], [0], [1], [0, 0, 1, 1], [], []>} : vector<256x32xbf16>, vector<32x64xbf16>, vector<256x64xf32> -> vector<256x64xf32>
    %21 = vector.broadcast %1 : vector<1x64xf32> to vector<256x64xf32>
    %22 = arith.addf %20, %21 : vector<256x64xf32>
    %cst_15 = arith.constant 0.000000e+00 : f32
    %23 = vector.broadcast %cst_15 : f32 to vector<256x64xf32>
    %24 = arith.maximumf %22, %23 : vector<256x64xf32>
    %25 = vector.broadcast %2 : vector<1x64xf32> to vector<256x64xf32>
    %26 = arith.mulf %24, %25 : vector<256x64xf32>
    %cst_16 = arith.constant dense<0.000000e+00> : vector<256xf32>
    %27 = vector.multi_reduction <add>, %26, %cst_16 [1] : vector<256x64xf32> to vector<256xf32>
    %28 = vector.broadcast %3 : f32 to vector<256xf32>
    %29 = arith.addf %27, %28 : vector<256xf32>
    %30 = vector.shape_cast %29 : vector<256xf32> to vector<1x1x256xf32>
    %c0_17 = arith.constant 0 : index
    %c1 = arith.constant 1 : index
    %c0_18 = arith.constant 0 : index
    %31 = vector.load %arg6[%c0_17, %c1, %c0_18] : memref<1x2x256xf32, #tpu.memory_space<vmem>>, vector<1x1x256xf32>
    tpu.vector_store %arg6[%c0_17, %c1, %c0_18], %30 {strides = array<i32>} : memref<1x2x256xf32, #tpu.memory_space<vmem>>, vector<1x1x256xf32>,
    return
  }
  func.func @transform_0(%arg0: i32) -> (i32, i32) {
    %c0_i32 = arith.constant 0 : i32
    %c0_i32_0 = arith.constant 0 : i32
    return %arg0, %c0_i32 : i32, i32
  }
  func.func @transform_1(%arg0: i32) -> (i32, i32) {
    %c0_i32 = arith.constant 0 : i32
    %c0_i32_0 = arith.constant 0 : i32
    %c0_i32_1 = arith.constant 0 : i32
    return %c0_i32, %c0_i32_0 : i32, i32
  }
  func.func @transform_2(%arg0: i32) -> (i32, i32) {
    %c0_i32 = arith.constant 0 : i32
    %c0_i32_0 = arith.constant 0 : i32
    %c0_i32_1 = arith.constant 0 : i32
    return %c0_i32, %c0_i32_0 : i32, i32
  }
  func.func @transform_3(%arg0: i32) -> (i32, i32) {
    %c0_i32 = arith.constant 0 : i32
    %c0_i32_0 = arith.constant 0 : i32
    %c0_i32_1 = arith.constant 0 : i32
    return %c0_i32, %c0_i32_0 : i32, i32
  }
  func.func @transform_4(%arg0: i32) -> i32 {
    %c0_i32 = arith.constant 0 : i32
    %c0_i32_0 = arith.constant 0 : i32
    return %c0_i32 : i32
  }
  func.func @transform_5(%arg0: i32) -> (i32, i32, i32) {
    %c0_i32 = arith.constant 0 : i32
    %c0_i32_0 = arith.constant 0 : i32
    %c0_i32_1 = arith.constant 0 : i32
    return %arg0, %c0_i32, %c0_i32_0 : i32, i32, i32
  }
}

</mosaic_0001>

<llo_original>
// kernel: tpu_custom_call.1
$region0: #{tpu_custom_call.1}
  #allocation0 [shape = 'u32[]', space=smem, size = 0x4, offset = 0x4, fixed_abs, tag = 'smem constant byte address 0x4 - core index']
  #allocation1 [shape = 'u32[144,128]{1,0:T(1,128)}', space=vmem, size = 0x12000, scoped, tag = 'internal scratch']
  #allocation2 [shape = 'f32[1]{0:T(128)S(6)}', space=smem, size = 0x200, scoped, tag = 'scoped memory for tpu_custom_call.1']
  %s0 = inlined_call_operand.vmem [shape: f32[1024,32], index: 0, kind: input, shape index: {}]
  %s1 = inlined_call_operand.vmem [shape: bf16[32,64], index: 1, kind: input, shape index: {}]
  %s2 = inlined_call_operand.vmem [shape: f32[1,64], index: 2, kind: input, shape index: {}]
  %s3 = inlined_call_operand.vmem [shape: f32[1,64], index: 3, kind: input, shape index: {}]
  %s4 = inlined_call_operand.<no memory space> [shape: f32[1], index: 4, kind: input, shape index: {}]
  %s5 = inlined_call_operand.hbm [shape: f32[2,2,256], index: 5, kind: output, shape index: {}]
  %s6 = sld [smem:[#allocation0]]
  $region53: #{tpu_custom_call.1} parent=0
    _
  %s8 = ssub.s32 1, %s6
  %s9 = scalar_select 0, %s8, %s6
  %10 = sst [smem:[#allocation2]] %s4
  $region1: #{tpu_custom_call.1} parent=0
    #allocation3 [shape = 'u8[4096]{0}', space=vmem, size = 0x1000, scoped, tag = 'output window, operand 0']
    #allocation4 [shape = 's32[2]{0}', space=sflag, size = 0x8, scoped, tag = 'scoped memory for tpu_custom_call.1']
    %11 = vsyncpa [#allocation4], 0
    %s12 = scalar_lea.sflag [#allocation4], 1
    %13 = vsyncpa %s12, 0
    loop: start=0, step=1, limit=4
    $region2: #{tpu_custom_call.1} parent=1 // loop_pre_header
      _
    $region3: #{tpu_custom_call.1} parent=1 // loop_header
      %s15 = sphi 0, %s19
      %p16 = scmp.ge.s32.totalorder %s15, 4
      %s25 = sphi 0, %s27
      %s28 = sphi 0, %s25
      %s29 = sphi 0, %s28
      %s45 = sphi 0, %s29
      %s49 = sphi 0, %s49
      %s51 = sphi 0, %s49
      %s52 = sphi 0, %s51
      %s66 = sphi 0, %s52
      %s70 = sphi 0, %s70
      %s72 = sphi 0, %s70
      %s73 = sphi 0, %s72
      %s87 = sphi 0, %s73
      %s91 = sphi 0, %s91
      %s93 = sphi 0, %s91
      %s94 = sphi 0, %s93
      %s108 = sphi 0, %s94
      %s112 = sphi 0, %s112
      %s114 = sphi 0, %s112
      %s115 = sphi 0, %s114
      %s129 = sphi 0, %s115
      %s135 = sphi 0, %s137
      %s138 = sphi 0, %s135
      %s139 = sphi 0, %s138
      %s155 = sphi 0, %s139
    $region4: #{tpu_custom_call.1} parent=1 // loop_header_branch
      %18 = sbr.rel (%p16) target = $region8
    $region5: #{tpu_custom_call.1} parent=1 // loop_body
      %s20 = ssub.s32 %s15, 1
      %s21 = ssub.s32 %s15, 2
      %s22 = sadd.s32 %s15, 1
      %s23 = ssub.s32 %s15, %s22
      %p24 = scmp.eq.s32.totalorder %s23, 0
      %s26 = sadd.s32 %s25, 1
      %s27 = scalar_select %p24, %s25, %s26
      %p30 = pneg %p24
      %p31 = scmp.eq.s32.totalorder %s15, 1
      %p32 = por %p30, %p31
      %p33 = scmp.ne.s32.totalorder %s25, %s28
      %p34 = scmp.eq.s32.totalorder %s15, 0
      %p35 = por %p33, %p34
      %p36 = scmp.ne.s32.totalorder %s25, %s28
      %p37 = scmp.eq.s32.totalorder %s20, 1
      %p38 = por %p36, %p37
      %p39 = scmp.ne.s32.totalorder %s28, %s29
      %p40 = scmp.eq.s32.totalorder %s20, 0
      %p41 = por %p39, %p40
      %p42 = scmp.ne.s32.totalorder %s28, %s29
      %p43 = scmp.eq.s32.totalorder %s21, 1
      %p44 = por %p42, %p43
      %p46 = scmp.ne.s32.totalorder %s29, %s45
      %p47 = scmp.eq.s32.totalorder %s21, 0
      %p48 = por %p46, %p47
      %s50 = sadd.s32 %s49, 1
      %p53 = scmp.eq.s32.totalorder %s15, 1
      %p54 = scmp.ne.s32.totalorder %s49, %s51
      %p55 = scmp.eq.s32.totalorder %s15, 0
      %p56 = por %p54, %p55
      %p57 = scmp.ne.s32.totalorder %s49, %s51
      %p58 = scmp.eq.s32.totalorder %s20, 1
      %p59 = por %p57, %p58
      %p60 = scmp.ne.s32.totalorder %s51, %s52
      %p61 = scmp.eq.s32.totalorder %s20, 0
      %p62 = por %p60, %p61
      %p63 = scmp.ne.s32.totalorder %s51, %s52
      %p64 = scmp.eq.s32.totalorder %s21, 1
      %p65 = por %p63, %p64
      %p67 = scmp.ne.s32.totalorder %s52, %s66
      %p68 = scmp.eq.s32.totalorder %s21, 0
      %p69 = por %p67, %p68
      %s71 = sadd.s32 %s70, 1
      %p74 = scmp.eq.s32.totalorder %s15, 1
      %p75 = scmp.ne.s32.totalorder %s70, %s72
      %p76 = scmp.eq.s32.totalorder %s15, 0
      %p77 = por %p75, %p76
      %p78 = scmp.ne.s32.totalorder %s70, %s72
      %p79 = scmp.eq.s32.totalorder %s20, 1
      %p80 = por %p78, %p79
      %p81 = scmp.ne.s32.totalorder %s72, %s73
      %p82 = scmp.eq.s32.totalorder %s20, 0
      %p83 = por %p81, %p82
      %p84 = scmp.ne.s32.totalorder %s72, %s73
      %p85 = scmp.eq.s32.totalorder %s21, 1
      %p86 = por %p84, %p85
      %p88 = scmp.ne.s32.totalorder %s73, %s87
      %p89 = scmp.eq.s32.totalorder %s21, 0
      %p90 = por %p88, %p89
      %s92 = sadd.s32 %s91, 1
      %p95 = scmp.eq.s32.totalorder %s15, 1
      %p96 = scmp.ne.s32.totalorder %s91, %s93
      %p97 = scmp.eq.s32.totalorder %s15, 0
      %p98 = por %p96, %p97
      %p99 = scmp.ne.s32.totalorder %s91, %s93
      %p100 = scmp.eq.s32.totalorder %s20, 1
      %p101 = por %p99, %p100
      %p102 = scmp.ne.s32.totalorder %s93, %s94
      %p103 = scmp.eq.s32.totalorder %s20, 0
      %p104 = por %p102, %p103
      %p105 = scmp.ne.s32.totalorder %s93, %s94
      %p106 = scmp.eq.s32.totalorder %s21, 1
      %p107 = por %p105, %p106
      %p109 = scmp.ne.s32.totalorder %s94, %s108
      %p110 = scmp.eq.s32.totalorder %s21, 0
      %p111 = por %p109, %p110
      %s113 = sadd.s32 %s112, 1
      %p116 = scmp.eq.s32.totalorder %s15, 1
      %p117 = scmp.ne.s32.totalorder %s112, %s114
      %p118 = scmp.eq.s32.totalorder %s15, 0
      %p119 = por %p117, %p118
      %p120 = scmp.ne.s32.totalorder %s112, %s114
      %p121 = scmp.eq.s32.totalorder %s20, 1
      %p122 = por %p120, %p121
      %p123 = scmp.ne.s32.totalorder %s114, %s115
      %p124 = scmp.eq.s32.totalorder %s20, 0
      %p125 = por %p123, %p124
      %p126 = scmp.ne.s32.totalorder %s114, %s115
      %p127 = scmp.eq.s32.totalorder %s21, 1
      %p128 = por %p126, %p127
      %p130 = scmp.ne.s32.totalorder %s115, %s129
      %p131 = scmp.eq.s32.totalorder %s21, 0
      %p132 = por %p130, %p131
      %s133 = ssub.s32 %s15, %s22
      %p134 = scmp.eq.s32.totalorder %s133, 0
      %s136 = sadd.s32 %s135, 1
      %s137 = scalar_select %p134, %s135, %s136
      %p140 = pneg %p134
      %p141 = scmp.eq.s32.totalorder %s15, 1
      %p142 = por %p140, %p141
      %p143 = scmp.ne.s32.totalorder %s135, %s138
      %p144 = scmp.eq.s32.totalorder %s15, 0
      %p145 = por %p143, %p144
      %p146 = scmp.ne.s32.totalorder %s135, %s138
      %p147 = scmp.eq.s32.totalorder %s20, 1
      %p148 = por %p146, %p147
      %p149 = scmp.ne.s32.totalorder %s138, %s139
      %p150 = scmp.eq.s32.totalorder %s20, 0
      %p151 = por %p149, %p150
      %p152 = scmp.ne.s32.totalorder %s138, %s139
      %p153 = scmp.eq.s32.totalorder %s21, 1
      %p154 = por %p152, %p153
      %p156 = scmp.ne.s32.totalorder %s139, %s155
      %p157 = scmp.eq.s32.totalorder %s21, 0
      %p158 = por %p156, %p157
      %p159 = scmp.le.s32.totalorder 1, %s15
      %p160 = scmp.lt.s32.totalorder %s15, 3
      %p161 = pnand %p159, %p160
      %p162 = pneg %p161
      // Predicated region
      $region9: #{tpu_custom_call.1} parent=5 // pred_check
        _
      $region10: #{tpu_custom_call.1} parent=5 // pred_check_branch
        %164 = sbr.rel (%p161) target = $region12
      $region11: #{tpu_custom_call.1} parent=5 // pred_region
        %s165 = ssub.s32 %s15, 1
        // Predicated region
        $region13: #{tpu_custom_call.1} parent=11 // pred_check
          %p166 = pneg %p62
        $region14: #{tpu_custom_call.1} parent=11 // pred_check_branch
          %168 = sbr.rel (%p166) target = $region16
        $region15: #{tpu_custom_call.1} parent=11 // pred_region
          _
        $region16: #{tpu_custom_call.1} parent=11 // pred_fallthru
          _
        // Predicated region
        $region17: #{tpu_custom_call.1} parent=11 // pred_check
          %p169 = pneg %p83
        $region18: #{tpu_custom_call.1} parent=11 // pred_check_branch
          %171 = sbr.rel (%p169) target = $region20
        $region19: #{tpu_custom_call.1} parent=11 // pred_region
          _
        $region20: #{tpu_custom_call.1} parent=11 // pred_fallthru
          _
        // Predicated region
        $region21: #{tpu_custom_call.1} parent=11 // pred_check
          %p172 = pneg %p104
        $region22: #{tpu_custom_call.1} parent=11 // pred_check_branch
          %174 = sbr.rel (%p172) target = $region24
        $region23: #{tpu_custom_call.1} parent=11 // pred_region
          _
        $region24: #{tpu_custom_call.1} parent=11 // pred_fallthru
          _
        // Predicated region
        $region25: #{tpu_custom_call.1} parent=11 // pred_check
          %p175 = pneg %p125
        $region26: #{tpu_custom_call.1} parent=11 // pred_check_branch
          %177 = sbr.rel (%p175) target = $region28
        $region27: #{tpu_custom_call.1} parent=11 // pred_region
          _
        $region28: #{tpu_custom_call.1} parent=11 // pred_fallthru
          _
      $region12: #{tpu_custom_call.1} parent=5 // pred_fallthru
        _
      %p178 = scmp.lt.s32.totalorder %s15, 2
      // Predicated region
      $region29: #{tpu_custom_call.1} parent=5 // pred_check
        %p179 = pneg %p178
      $region30: #{tpu_custom_call.1} parent=5 // pred_check_branch
        %181 = sbr.rel (%p179) target = $region32
      $region31: #{tpu_custom_call.1} parent=5 // pred_region
        // Predicated region
        $region33: #{tpu_custom_call.1} parent=31 // pred_check
          %p182 = pneg %p35
        $region34: #{tpu_custom_call.1} parent=31 // pred_check_branch
          %184 = sbr.rel (%p182) target = $region36
        $region35: #{tpu_custom_call.1} parent=31 // pred_region
          %s185 = smul.u32 64, %s15
          %p186 = scmp.lt.s32.totalorder %s185, 127
          %s187 = scalar_select %p186, %s185, 127
          %s188 = smul.addr %s187, 8
          %s189 = scalar_lea.vmem %s0, %s188
          %s190 = smul.u32 64, %s15
        $region36: #{tpu_custom_call.1} parent=31 // pred_fallthru
          _
      $region32: #{tpu_custom_call.1} parent=5 // pred_fallthru
        _
      %p191 = scmp.le.s32.totalorder 1, %s15
      %p192 = scmp.lt.s32.totalorder %s15, 3
      %p193 = pnand %p191, %p192
      %p194 = pneg %p193
      // Predicated region
      $region37: #{tpu_custom_call.1} parent=5 // pred_check
        _
      $region38: #{tpu_custom_call.1} parent=5 // pred_check_branch
        %196 = sbr.rel (%p193) target = $region40
      $region39: #{tpu_custom_call.1} parent=5 // pred_region
        %s197 = ssub.s32 %s15, 1
        %s198 = smul.u32 64, %s20
        %p199 = scmp.lt.s32.totalorder %s198, 127
        %s200 = scalar_select %p199, %s198, 127
        %s201 = smul.addr %s200, 8
        %s202 = scalar_lea.vmem %s0, %s201
        %p203 = pneg %p41
        %p204 = pneg %p38
        %p205 = pneg %p62
        %p206 = pneg %p59
        %p207 = pneg %p83
        %p208 = pneg %p80
        %p209 = pneg %p104
        %p210 = pneg %p101
        %p211 = pneg %p125
        %p212 = pneg %p122
        %p213 = pneg %p151
        %p214 = pneg %p148
        %s215 = sand.u32 %s138, 1
        %s216 = scalar_lea.sflag [#allocation4], %s215
        %s217 = sand.u32 %s138, 1
        %s218 = smul.addr %s217, 4
        %s219 = scalar_lea.vmem [#allocation3], %s218
        %s220 = smul.u32 64, %s20
        %p221 = scmp.lt.s32.totalorder %s220, 127
        %s222 = scalar_select %p221, %s220, 127
        %s223 = smul.addr %s222, 8
        %s224 = scalar_lea.vmem %s0, %s223
        %s225 = smul.u32 64, %s20
        %v227 = vld [vmem:[%s1] sm:$0xf]
        %v228 = vld [vmem:[%s1 + $0x4] sm:$0xf]
        %v229 = vld [vmem:[%s1 + $0x8] sm:$0xf]
        %v230 = vld [vmem:[%s1 + $0xc] sm:$0xf]
        %v231 = vld [vmem:[%s2] sm:$0x1]
        %v232 = vld [vmem:[%s3] sm:$0x1]
        %s233 = sld [smem:[#allocation2]]
        %v234 = vld [vmem:[%s224] sm:$0xff]
        %v235 = vld [vmem:[%s224 + $0x8] sm:$0xff]
        %v236 = vld [vmem:[%s224 + $0x10] sm:$0xff]
        %v237 = vld [vmem:[%s224 + $0x18] sm:$0xff]
        %v238 = vld [vmem:[%s224 + $0x20] sm:$0xff]
        %v239 = vld [vmem:[%s224 + $0x28] sm:$0xff]
        %v240 = vld [vmem:[%s224 + $0x30] sm:$0xff]
        %v241 = vld [vmem:[%s224 + $0x38] sm:$0xff]
        %v242 = vld [vmem:[%s224 + $0x40] sm:$0xff]
        %v243 = vld [vmem:[%s224 + $0x48] sm:$0xff]
        %v244 = vld [vmem:[%s224 + $0x50] sm:$0xff]
        %v245 = vld [vmem:[%s224 + $0x58] sm:$0xff]
        %v246 = vld [vmem:[%s224 + $0x60] sm:$0xff]
        %v247 = vld [vmem:[%s224 + $0x68] sm:$0xff]
        %v248 = vld [vmem:[%s224 + $0x70] sm:$0xff]
        %v249 = vld [vmem:[%s224 + $0x78] sm:$0xff]
        %v250 = vld [vmem:[%s224 + $0x80] sm:$0xff]
        %v251 = vld [vmem:[%s224 + $0x88] sm:$0xff]
        %v252 = vld [vmem:[%s224 + $0x90] sm:$0xff]
        %v253 = vld [vmem:[%s224 + $0x98] sm:$0xff]
        %v254 = vld [vmem:[%s224 + $0xa0] sm:$0xff]
        %v255 = vld [vmem:[%s224 + $0xa8] sm:$0xff]
        %v256 = vld [vmem:[%s224 + $0xb0] sm:$0xff]
        %v257 = vld [vmem:[%s224 + $0xb8] sm:$0xff]
        %v258 = vld [vmem:[%s224 + $0xc0] sm:$0xff]
        %v259 = vld [vmem:[%s224 + $0xc8] sm:$0xff]
        %v260 = vld [vmem:[%s224 + $0xd0] sm:$0xff]
        %v261 = vld [vmem:[%s224 + $0xd8] sm:$0xff]
        %v262 = vld [vmem:[%s224 + $0xe0] sm:$0xff]
        %v263 = vld [vmem:[%s224 + $0xe8] sm:$0xff]
        %v264 = vld [vmem:[%s224 + $0xf0] sm:$0xff]
        %v265 = vld [vmem:[%s224 + $0xf8] sm:$0xff]
        %v266 = vpack.c.bf16 %v235, %v234
        %v267 = vpack.c.bf16 %v237, %v236
        %v268 = vpack.c.bf16 %v239, %v238
        %v269 = vpack.c.bf16 %v241, %v240
        %v270 = vpack.c.bf16 %v243, %v242
        %v271 = vpack.c.bf16 %v245, %v244
        %v272 = vpack.c.bf16 %v247, %v246
        %v273 = vpack.c.bf16 %v249, %v248
        %v274 = vpack.c.bf16 %v251, %v250
        %v275 = vpack.c.bf16 %v253, %v252
        %v276 = vpack.c.bf16 %v255, %v254
        %v277 = vpack.c.bf16 %v257, %v256
        %v278 = vpack.c.bf16 %v259, %v258
        %v279 = vpack.c.bf16 %v261, %v260
        %v280 = vpack.c.bf16 %v263, %v262
        %v281 = vpack.c.bf16 %v265, %v264
        %v283 = vlaneseq
        %v284 = vshrl.u32 %v283, 7
        %v285 = vsub.s32 0, %v284
        %v286 = vrot.slane %v231, %v285
        %v292 = vunpack.c.l.b16 %v227
        %v293 = vunpack.c.l.b16 %v228
        %v294 = vunpack.c.l.b16 %v229
        %v295 = vunpack.c.l.b16 %v230
        %v296 = vpack.c.b16 %v293, %v292
        %v297 = vpack.c.b16 %v295, %v294
        %vm300 = vcmask 261120
        %v302 = vsel %vm300, %v266, 0
        %v305 = vsel %vm300, %v267, 0
        %v308 = vsel %vm300, %v268, 0
        %v311 = vsel %vm300, %v269, 0
        %v314 = vsel %vm300, %v270, 0
        %v317 = vsel %vm300, %v271, 0
        %v320 = vsel %vm300, %v272, 0
        %v323 = vsel %vm300, %v273, 0
        %v326 = vsel %vm300, %v274, 0
        %v329 = vsel %vm300, %v275, 0
        %v332 = vsel %vm300, %v276, 0
        %v335 = vsel %vm300, %v277, 0
        %v338 = vsel %vm300, %v278, 0
        %v341 = vsel %vm300, %v279, 0
        %v344 = vsel %vm300, %v280, 0
        %v347 = vsel %vm300, %v281, 0
        %349 = vmatprep.subr.bf16.mxu0 0
        %350 = vmatpush1.bf16.msra.mxu0 0
        %351 = vmatprep.subr.bf16.mxu0 0
        %352 = vmatpush1.bf16.msra.mxu0 0
        %353 = vmatprep.subr.bf16.mxu0 0
        %354 = vmatpush1.bf16.msra.mxu0 0
        %355 = vmatprep.subr.bf16.mxu0 0
        %356 = vmatpush1.bf16.msra.mxu0 0
        %357 = vmatprep.subr.bf16.mxu0 0
        %358 = vmatpush1.bf16.msra.mxu0 0
        %359 = vmatprep.subr.bf16.mxu0 0
        %360 = vmatpush1.bf16.msra.mxu0 0
        %361 = vmatprep.subr.bf16.mxu0 0
        %362 = vmatpush1.bf16.msra.mxu0 %v297
        %363 = vmatprep.subr.bf16.mxu0 0
        %364 = vmatpush1.bf16.msra.mxu0 %v296
        %365 = vmatprep.subr.bf16.mxu0 0
        %366 = vmatpush2.bf16.msra.mxu0 0
        %367 = vmatprep.subr.bf16.mxu0 0
        %368 = vmatpush2.bf16.msra.mxu0 0
        %369 = vmatprep.subr.bf16.mxu0 0
        %370 = vmatpush2.bf16.msra.mxu0 0
        %371 = vmatprep.subr.bf16.mxu0 0
        %372 = vmatpush2.bf16.msra.mxu0 0
        %373 = vmatprep.subr.bf16.mxu0 0
        %374 = vmatpush2.bf16.msra.mxu0 0
        %375 = vmatprep.subr.bf16.mxu0 0
        %376 = vmatpush2.bf16.msra.mxu0 0
        %377 = vmatprep.subr.bf16.mxu0 0
        %378 = vmatpush2.bf16.msra.mxu0 0
        %379 = vmatprep.subr.bf16.mxu0 0
        %380 = vmatpush2.bf16.msra.mxu0 0
        %381 = vmatprep.mubr.bf16.mxu0 0
        %382 = vmatmul.mubr.bf16.gmra.mxu0 %v302
        %v383 = vpop.f32.mrf.mxu0
        %v384 = vadd.f32 %v286, %v383
        %v385 = vpop.f32.mrf.mxu0
        %v386 = vpop.f32.mrf.mxu0
        %v387 = vadd.f32 %v286, %v386
        %v388 = vpop.f32.mrf.mxu0
        %389 = vmatprep.mubr.bf16.mxu0 0
        %390 = vmatmul.mubr.bf16.gmra.mxu0 %v305
        %v391 = vpop.f32.mrf.mxu0
        %v392 = vadd.f32 %v286, %v391
        %v393 = vpop.f32.mrf.mxu0
        %v394 = vpop.f32.mrf.mxu0
        %v395 = vadd.f32 %v286, %v394
        %v396 = vpop.f32.mrf.mxu0
        %397 = vmatprep.mubr.bf16.mxu0 0
        %398 = vmatmul.mubr.bf16.gmra.mxu0 %v308
        %v399 = vpop.f32.mrf.mxu0
        %v400 = vadd.f32 %v286, %v399
        %v401 = vpop.f32.mrf.mxu0
        %v402 = vpop.f32.mrf.mxu0
        %v403 = vadd.f32 %v286, %v402
        %v404 = vpop.f32.mrf.mxu0
        %405 = vmatprep.mubr.bf16.mxu0 0
        %406 = vmatmul.mubr.bf16.gmra.mxu0 %v311
        %v407 = vpop.f32.mrf.mxu0
        %v408 = vadd.f32 %v286, %v407
        %v409 = vpop.f32.mrf.mxu0
        %v410 = vpop.f32.mrf.mxu0
        %v411 = vadd.f32 %v286, %v410
        %v412 = vpop.f32.mrf.mxu0
        %413 = vmatprep.mubr.bf16.mxu0 0
        %414 = vmatmul.mubr.bf16.gmra.mxu0 %v314
        %v415 = vpop.f32.mrf.mxu0
        %v416 = vadd.f32 %v286, %v415
        %v417 = vpop.f32.mrf.mxu0
        %v418 = vpop.f32.mrf.mxu0
        %v419 = vadd.f32 %v286, %v418
        %v420 = vpop.f32.mrf.mxu0
        %421 = vmatprep.mubr.bf16.mxu0 0
        %422 = vmatmul.mubr.bf16.gmra.mxu0 %v317
        %v423 = vpop.f32.mrf.mxu0
        %v424 = vadd.f32 %v286, %v423
        %v425 = vpop.f32.mrf.mxu0
        %v426 = vpop.f32.mrf.mxu0
        %v427 = vadd.f32 %v286, %v426
        %v428 = vpop.f32.mrf.mxu0
        %429 = vmatprep.mubr.bf16.mxu0 0
        %430 = vmatmul.mubr.bf16.gmra.mxu0 %v320
        %v431 = vpop.f32.mrf.mxu0
        %v432 = vadd.f32 %v286, %v431
        %v433 = vpop.f32.mrf.mxu0
        %v434 = vpop.f32.mrf.mxu0
        %v435 = vadd.f32 %v286, %v434
        %v436 = vpop.f32.mrf.mxu0
        %437 = vmatprep.mubr.bf16.mxu0 0
        %438 = vmatmul.mubr.bf16.gmra.mxu0 %v323
        %v439 = vpop.f32.mrf.mxu0
        %v440 = vadd.f32 %v286, %v439
        %v441 = vpop.f32.mrf.mxu0
        %v442 = vpop.f32.mrf.mxu0
        %v443 = vadd.f32 %v286, %v442
        %v444 = vpop.f32.mrf.mxu0
        %445 = vmatprep.mubr.bf16.mxu0 0
        %446 = vmatmul.mubr.bf16.gmra.mxu0 %v326
        %v447 = vpop.f32.mrf.mxu0
        %v448 = vadd.f32 %v286, %v447
        %v449 = vpop.f32.mrf.mxu0
        %v450 = vpop.f32.mrf.mxu0
        %v451 = vadd.f32 %v286, %v450
        %v452 = vpop.f32.mrf.mxu0
        %453 = vmatprep.mubr.bf16.mxu0 0
        %454 = vmatmul.mubr.bf16.gmra.mxu0 %v329
        %v455 = vpop.f32.mrf.mxu0
        %v456 = vadd.f32 %v286, %v455
        %v457 = vpop.f32.mrf.mxu0
        %v458 = vpop.f32.mrf.mxu0
        %v459 = vadd.f32 %v286, %v458
        %v460 = vpop.f32.mrf.mxu0
        %461 = vmatprep.mubr.bf16.mxu0 0
        %462 = vmatmul.mubr.bf16.gmra.mxu0 %v332
        %v463 = vpop.f32.mrf.mxu0
        %v464 = vadd.f32 %v286, %v463
        %v465 = vpop.f32.mrf.mxu0
        %v466 = vpop.f32.mrf.mxu0
        %v467 = vadd.f32 %v286, %v466
        %v468 = vpop.f32.mrf.mxu0
        %469 = vmatprep.mubr.bf16.mxu0 0
        %470 = vmatmul.mubr.bf16.gmra.mxu0 %v335
        %v471 = vpop.f32.mrf.mxu0
        %v472 = vadd.f32 %v286, %v471
        %v473 = vpop.f32.mrf.mxu0
        %v474 = vpop.f32.mrf.mxu0
        %v475 = vadd.f32 %v286, %v474
        %v476 = vpop.f32.mrf.mxu0
        %477 = vmatprep.mubr.bf16.mxu0 0
        %478 = vmatmul.mubr.bf16.gmra.mxu0 %v338
        %v479 = vpop.f32.mrf.mxu0
        %v480 = vadd.f32 %v286, %v479
        %v481 = vpop.f32.mrf.mxu0
        %v482 = vpop.f32.mrf.mxu0
        %v483 = vadd.f32 %v286, %v482
        %v484 = vpop.f32.mrf.mxu0
        %485 = vmatprep.mubr.bf16.mxu0 0
        %486 = vmatmul.mubr.bf16.gmra.mxu0 %v341
        %v487 = vpop.f32.mrf.mxu0
        %v488 = vadd.f32 %v286, %v487
        %v489 = vpop.f32.mrf.mxu0
        %v490 = vpop.f32.mrf.mxu0
        %v491 = vadd.f32 %v286, %v490
        %v492 = vpop.f32.mrf.mxu0
        %493 = vmatprep.mubr.bf16.mxu0 0
        %494 = vmatmul.mubr.bf16.gmra.mxu0 %v344
        %v495 = vpop.f32.mrf.mxu0
        %v496 = vadd.f32 %v286, %v495
        %v497 = vpop.f32.mrf.mxu0
        %v498 = vpop.f32.mrf.mxu0
        %v499 = vadd.f32 %v286, %v498
        %v500 = vpop.f32.mrf.mxu0
        %501 = vmatprep.mubr.bf16.mxu0 0
        %502 = vmatmul.mubr.bf16.gmra.mxu0 %v347
        %v503 = vpop.f32.mrf.mxu0
        %v504 = vadd.f32 %v286, %v503
        %v505 = vpop.f32.mrf.mxu0
        %v506 = vpop.f32.mrf.mxu0
        %v507 = vadd.f32 %v286, %v506
        %v508 = vpop.f32.mrf.mxu0
        %509 = vdwg.mxu0
        %v510 = vmax.f32 %v384, 0.0
        %v511 = vmax.f32 %v387, 0.0
        %v512 = vmax.f32 %v392, 0.0
        %v513 = vmax.f32 %v395, 0.0
        %v514 = vmax.f32 %v400, 0.0
        %v515 = vmax.f32 %v403, 0.0
        %v516 = vmax.f32 %v408, 0.0
        %v517 = vmax.f32 %v411, 0.0
        %v518 = vmax.f32 %v416, 0.0
        %v519 = vmax.f32 %v419, 0.0
        %v520 = vmax.f32 %v424, 0.0
        %v521 = vmax.f32 %v427, 0.0
        %v522 = vmax.f32 %v432, 0.0
        %v523 = vmax.f32 %v435, 0.0
        %v524 = vmax.f32 %v440, 0.0
        %v525 = vmax.f32 %v443, 0.0
        %v526 = vmax.f32 %v448, 0.0
        %v527 = vmax.f32 %v451, 0.0
        %v528 = vmax.f32 %v456, 0.0
        %v529 = vmax.f32 %v459, 0.0
        %v530 = vmax.f32 %v464, 0.0
        %v531 = vmax.f32 %v467, 0.0
        %v532 = vmax.f32 %v472, 0.0
        %v533 = vmax.f32 %v475, 0.0
        %v534 = vmax.f32 %v480, 0.0
        %v535 = vmax.f32 %v483, 0.0
        %v536 = vmax.f32 %v488, 0.0
        %v537 = vmax.f32 %v491, 0.0
        %v538 = vmax.f32 %v496, 0.0
        %v539 = vmax.f32 %v499, 0.0
        %v540 = vmax.f32 %v504, 0.0
        %v541 = vmax.f32 %v507, 0.0
        %v543 = vlaneseq
        %v544 = vshrl.u32 %v543, 7
        %v545 = vsub.s32 0, %v544
        %v546 = vrot.slane %v232, %v545
        %v548 = vmul.f32 %v510, %v546
        %v549 = vmul.f32 %v511, %v546
        %v550 = vmul.f32 %v512, %v546
        %v551 = vmul.f32 %v513, %v546
        %v552 = vmul.f32 %v514, %v546
        %v553 = vmul.f32 %v515, %v546
        %v554 = vmul.f32 %v516, %v546
        %v555 = vmul.f32 %v517, %v546
        %v556 = vmul.f32 %v518, %v546
        %v557 = vmul.f32 %v519, %v546
        %v558 = vmul.f32 %v520, %v546
        %v559 = vmul.f32 %v521, %v546
        %v560 = vmul.f32 %v522, %v546
        %v561 = vmul.f32 %v523, %v546
        %v562 = vmul.f32 %v524, %v546
        %v563 = vmul.f32 %v525, %v546
        %v564 = vmul.f32 %v526, %v546
        %v565 = vmul.f32 %v527, %v546
        %v566 = vmul.f32 %v528, %v546
        %v567 = vmul.f32 %v529, %v546
        %v568 = vmul.f32 %v530, %v546
        %v569 = vmul.f32 %v531, %v546
        %v570 = vmul.f32 %v532, %v546
        %v571 = vmul.f32 %v533, %v546
        %v572 = vmul.f32 %v534, %v546
        %v573 = vmul.f32 %v535, %v546
        %v574 = vmul.f32 %v536, %v546
        %v575 = vmul.f32 %v537, %v546
        %v576 = vmul.f32 %v538, %v546
        %v577 = vmul.f32 %v539, %v546
        %v578 = vmul.f32 %v540, %v546
        %v579 = vmul.f32 %v541, %v546
        %vm580 = vcmask 523264
        %v581 = vsel %vm580, %v548, 0.0
        %582 = vadd.xlane.f32.xlu0 %v581
        %v583 = vpop.xlane.xlu0 %582
        %v584 = vsel %vm580, %v549, 0.0
        %585 = vadd.xlane.f32.xlu0 %v584
        %v586 = vpop.xlane.xlu0 %585
        %v587 = vsel %vm580, %v550, 0.0
        %588 = vadd.xlane.f32.xlu0 %v587
        %v589 = vpop.xlane.xlu0 %588
        %v590 = vsel %vm580, %v551, 0.0
        %591 = vadd.xlane.f32.xlu0 %v590
        %v592 = vpop.xlane.xlu0 %591
        %v593 = vsel %vm580, %v552, 0.0
        %594 = vadd.xlane.f32.xlu0 %v593
        %v595 = vpop.xlane.xlu0 %594
        %v596 = vsel %vm580, %v553, 0.0
        %597 = vadd.xlane.f32.xlu0 %v596
        %v598 = vpop.xlane.xlu0 %597
        %v599 = vsel %vm580, %v554, 0.0
        %600 = vadd.xlane.f32.xlu0 %v599
        %v601 = vpop.xlane.xlu0 %600
        %v602 = vsel %vm580, %v555, 0.0
        %603 = vadd.xlane.f32.xlu0 %v602
        %v604 = vpop.xlane.xlu0 %603
        %v605 = vsel %vm580, %v556, 0.0
        %606 = vadd.xlane.f32.xlu0 %v605
        %v607 = vpop.xlane.xlu0 %606
        %v608 = vsel %vm580, %v557, 0.0
        %609 = vadd.xlane.f32.xlu0 %v608
        %v610 = vpop.xlane.xlu0 %609
        %v611 = vsel %vm580, %v558, 0.0
        %612 = vadd.xlane.f32.xlu0 %v611
        %v613 = vpop.xlane.xlu0 %612
        %v614 = vsel %vm580, %v559, 0.0
        %615 = vadd.xlane.f32.xlu0 %v614
        %v616 = vpop.xlane.xlu0 %615
        %v617 = vsel %vm580, %v560, 0.0
        %618 = vadd.xlane.f32.xlu0 %v617
        %v619 = vpop.xlane.xlu0 %618
        %v620 = vsel %vm580, %v561, 0.0
        %621 = vadd.xlane.f32.xlu0 %v620
        %v622 = vpop.xlane.xlu0 %621
        %v623 = vsel %vm580, %v562, 0.0
        %624 = vadd.xlane.f32.xlu0 %v623
        %v625 = vpop.xlane.xlu0 %624
        %v626 = vsel %vm580, %v563, 0.0
        %627 = vadd.xlane.f32.xlu0 %v626
        %v628 = vpop.xlane.xlu0 %627
        %v629 = vsel %vm580, %v564, 0.0
        %630 = vadd.xlane.f32.xlu0 %v629
        %v631 = vpop.xlane.xlu0 %630
        %v632 = vsel %vm580, %v565, 0.0
        %633 = vadd.xlane.f32.xlu0 %v632
        %v634 = vpop.xlane.xlu0 %633
        %v635 = vsel %vm580, %v566, 0.0
        %636 = vadd.xlane.f32.xlu0 %v635
        %v637 = vpop.xlane.xlu0 %636
        %v638 = vsel %vm580, %v567, 0.0
        %639 = vadd.xlane.f32.xlu0 %v638
        %v640 = vpop.xlane.xlu0 %639
        %v641 = vsel %vm580, %v568, 0.0
        %642 = vadd.xlane.f32.xlu0 %v641
        %v643 = vpop.xlane.xlu0 %642
        %v644 = vsel %vm580, %v569, 0.0
        %645 = vadd.xlane.f32.xlu0 %v644
        %v646 = vpop.xlane.xlu0 %645
        %v647 = vsel %vm580, %v570, 0.0
        %648 = vadd.xlane.f32.xlu0 %v647
        %v649 = vpop.xlane.xlu0 %648
        %v650 = vsel %vm580, %v571, 0.0
        %651 = vadd.xlane.f32.xlu0 %v650
        %v652 = vpop.xlane.xlu0 %651
        %v653 = vsel %vm580, %v572, 0.0
        %654 = vadd.xlane.f32.xlu0 %v653
        %v655 = vpop.xlane.xlu0 %654
        %v656 = vsel %vm580, %v573, 0.0
        %657 = vadd.xlane.f32.xlu0 %v656
        %v658 = vpop.xlane.xlu0 %657
        %v659 = vsel %vm580, %v574, 0.0
        %660 = vadd.xlane.f32.xlu0 %v659
        %v661 = vpop.xlane.xlu0 %660
        %v662 = vsel %vm580, %v575, 0.0
        %663 = vadd.xlane.f32.xlu0 %v662
        %v664 = vpop.xlane.xlu0 %663
        %v665 = vsel %vm580, %v576, 0.0
        %666 = vadd.xlane.f32.xlu0 %v665
        %v667 = vpop.xlane.xlu0 %666
        %v668 = vsel %vm580, %v577, 0.0
        %669 = vadd.xlane.f32.xlu0 %v668
        %v670 = vpop.xlane.xlu0 %669
        %v671 = vsel %vm580, %v578, 0.0
        %672 = vadd.xlane.f32.xlu0 %v671
        %v673 = vpop.xlane.xlu0 %672
        %v674 = vsel %vm580, %v579, 0.0
        %675 = vadd.xlane.f32.xlu0 %v674
        %v676 = vpop.xlane.xlu0 %675
        %v677 = vstv %s233
        %v678 = vadd.f32 %v583, %v677
        %v679 = vadd.f32 %v586, %v677
        %v680 = vadd.f32 %v589, %v677
        %v681 = vadd.f32 %v592, %v677
        %v682 = vadd.f32 %v595, %v677
        %v683 = vadd.f32 %v598, %v677
        %v684 = vadd.f32 %v601, %v677
        %v685 = vadd.f32 %v604, %v677
        %v686 = vadd.f32 %v607, %v677
        %v687 = vadd.f32 %v610, %v677
        %v688 = vadd.f32 %v613, %v677
        %v689 = vadd.f32 %v616, %v677
        %v690 = vadd.f32 %v619, %v677
        %v691 = vadd.f32 %v622, %v677
        %v692 = vadd.f32 %v625, %v677
        %v693 = vadd.f32 %v628, %v677
        %v694 = vadd.f32 %v631, %v677
        %v695 = vadd.f32 %v634, %v677
        %v696 = vadd.f32 %v637, %v677
        %v697 = vadd.f32 %v640, %v677
        %v698 = vadd.f32 %v643, %v677
        %v699 = vadd.f32 %v646, %v677
        %v700 = vadd.f32 %v649, %v677
        %v701 = vadd.f32 %v652, %v677
        %v702 = vadd.f32 %v655, %v677
        %v703 = vadd.f32 %v658, %v677
        %v704 = vadd.f32 %v661, %v677
        %v705 = vadd.f32 %v664, %v677
        %v706 = vadd.f32 %v667, %v677
        %v707 = vadd.f32 %v670, %v677
        %v708 = vadd.f32 %v673, %v677
        %v709 = vadd.f32 %v676, %v677
        %v742 = vlaneseq
        %v743 = vshrl.u32 %v742, 7
        %v744 = vsub.s32 0, %v743
        %v745 = vrot.slane %v678, %v744
        %v746 = vlaneseq
        %v747 = vshrl.u32 %v746, 7
        %v748 = vsub.s32 1, %v747
        %v749 = vrot.slane %v678, %v748
        %v750 = vlaneseq
        %v751 = vshrl.u32 %v750, 7
        %v752 = vsub.s32 2, %v751
        %v753 = vrot.slane %v678, %v752
        %v754 = vlaneseq
        %v755 = vshrl.u32 %v754, 7
        %v756 = vsub.s32 3, %v755
        %v757 = vrot.slane %v678, %v756
        %v758 = vlaneseq
        %v759 = vshrl.u32 %v758, 7
        %v760 = vsub.s32 4, %v759
        %v761 = vrot.slane %v678, %v760
        %v762 = vlaneseq
        %v763 = vshrl.u32 %v762, 7
        %v764 = vsub.s32 5, %v763
        %v765 = vrot.slane %v678, %v764
        %v766 = vlaneseq
        %v767 = vshrl.u32 %v766, 7
        %v768 = vsub.s32 6, %v767
        %v769 = vrot.slane %v678, %v768
        %v770 = vlaneseq
        %v771 = vshrl.u32 %v770, 7
        %v772 = vsub.s32 7, %v771
        %v773 = vrot.slane %v678, %v772
        %v774 = vlaneseq
        %v775 = vshrl.u32 %v774, 7
        %v776 = vsub.s32 0, %v775
        %v777 = vrot.slane %v679, %v776
        %v778 = vlaneseq
        %v779 = vshrl.u32 %v778, 7
        %v780 = vsub.s32 1, %v779
        %v781 = vrot.slane %v679, %v780
        %v782 = vlaneseq
        %v783 = vshrl.u32 %v782, 7
        %v784 = vsub.s32 2, %v783
        %v785 = vrot.slane %v679, %v784
        %v786 = vlaneseq
        %v787 = vshrl.u32 %v786, 7
        %v788 = vsub.s32 3, %v787
        %v789 = vrot.slane %v679, %v788
        %v790 = vlaneseq
        %v791 = vshrl.u32 %v790, 7
        %v792 = vsub.s32 4, %v791
        %v793 = vrot.slane %v679, %v792
        %v794 = vlaneseq
        %v795 = vshrl.u32 %v794, 7
        %v796 = vsub.s32 5, %v795
        %v797 = vrot.slane %v679, %v796
        %v798 = vlaneseq
        %v799 = vshrl.u32 %v798, 7
        %v800 = vsub.s32 6, %v799
        %v801 = vrot.slane %v679, %v800
        %v802 = vlaneseq
        %v803 = vshrl.u32 %v802, 7
        %v804 = vsub.s32 7, %v803
        %v805 = vrot.slane %v679, %v804
        %v806 = vlaneseq
        %v807 = vshrl.u32 %v806, 7
        %v808 = vsub.s32 0, %v807
        %v809 = vrot.slane %v680, %v808
        %v810 = vlaneseq
        %v811 = vshrl.u32 %v810, 7
        %v812 = vsub.s32 1, %v811
        %v813 = vrot.slane %v680, %v812
        %v814 = vlaneseq
        %v815 = vshrl.u32 %v814, 7
        %v816 = vsub.s32 2, %v815
        %v817 = vrot.slane %v680, %v816
        %v818 = vlaneseq
        %v819 = vshrl.u32 %v818, 7
        %v820 = vsub.s32 3, %v819
        %v821 = vrot.slane %v680, %v820
        %v822 = vlaneseq
        %v823 = vshrl.u32 %v822, 7
        %v824 = vsub.s32 4, %v823
        %v825 = vrot.slane %v680, %v824
        %v826 = vlaneseq
        %v827 = vshrl.u32 %v826, 7
        %v828 = vsub.s32 5, %v827
        %v829 = vrot.slane %v680, %v828
        %v830 = vlaneseq
        %v831 = vshrl.u32 %v830, 7
        %v832 = vsub.s32 6, %v831
        %v833 = vrot.slane %v680, %v832
        %v834 = vlaneseq
        %v835 = vshrl.u32 %v834, 7
        %v836 = vsub.s32 7, %v835
        %v837 = vrot.slane %v680, %v836
        %v838 = vlaneseq
        %v839 = vshrl.u32 %v838, 7
        %v840 = vsub.s32 0, %v839
        %v841 = vrot.slane %v681, %v840
        %v842 = vlaneseq
        %v843 = vshrl.u32 %v842, 7
        %v844 = vsub.s32 1, %v843
        %v845 = vrot.slane %v681, %v844
        %v846 = vlaneseq
        %v847 = vshrl.u32 %v846, 7
        %v848 = vsub.s32 2, %v847
        %v849 = vrot.slane %v681, %v848
        %v850 = vlaneseq
        %v851 = vshrl.u32 %v850, 7
        %v852 = vsub.s32 3, %v851
        %v853 = vrot.slane %v681, %v852
        %v854 = vlaneseq
        %v855 = vshrl.u32 %v854, 7
        %v856 = vsub.s32 4, %v855
        %v857 = vrot.slane %v681, %v856
        %v858 = vlaneseq
        %v859 = vshrl.u32 %v858, 7
        %v860 = vsub.s32 5, %v859
        %v861 = vrot.slane %v681, %v860
        %v862 = vlaneseq
        %v863 = vshrl.u32 %v862, 7
        %v864 = vsub.s32 6, %v863
        %v865 = vrot.slane %v681, %v864
        %v866 = vlaneseq
        %v867 = vshrl.u32 %v866, 7
        %v868 = vsub.s32 7, %v867
        %v869 = vrot.slane %v681, %v868
        %v870 = vlaneseq
        %v871 = vshrl.u32 %v870, 7
        %v872 = vsub.s32 0, %v871
        %v873 = vrot.slane %v682, %v872
        %v874 = vlaneseq
        %v875 = vshrl.u32 %v874, 7
        %v876 = vsub.s32 1, %v875
        %v877 = vrot.slane %v682, %v876
        %v878 = vlaneseq
        %v879 = vshrl.u32 %v878, 7
        %v880 = vsub.s32 2, %v879
        %v881 = vrot.slane %v682, %v880
        %v882 = vlaneseq
        %v883 = vshrl.u32 %v882, 7
        %v884 = vsub.s32 3, %v883
        %v885 = vrot.slane %v682, %v884
        %v886 = vlaneseq
        %v887 = vshrl.u32 %v886, 7
        %v888 = vsub.s32 4, %v887
        %v889 = vrot.slane %v682, %v888
        %v890 = vlaneseq
        %v891 = vshrl.u32 %v890, 7
        %v892 = vsub.s32 5, %v891
        %v893 = vrot.slane %v682, %v892
        %v894 = vlaneseq
        %v895 = vshrl.u32 %v894, 7
        %v896 = vsub.s32 6, %v895
        %v897 = vrot.slane %v682, %v896
        %v898 = vlaneseq
        %v899 = vshrl.u32 %v898, 7
        %v900 = vsub.s32 7, %v899
        %v901 = vrot.slane %v682, %v900
        %v902 = vlaneseq
        %v903 = vshrl.u32 %v902, 7
        %v904 = vsub.s32 0, %v903
        %v905 = vrot.slane %v683, %v904
        %v906 = vlaneseq
        %v907 = vshrl.u32 %v906, 7
        %v908 = vsub.s32 1, %v907
        %v909 = vrot.slane %v683, %v908
        %v910 = vlaneseq
        %v911 = vshrl.u32 %v910, 7
        %v912 = vsub.s32 2, %v911
        %v913 = vrot.slane %v683, %v912
        %v914 = vlaneseq
        %v915 = vshrl.u32 %v914, 7
        %v916 = vsub.s32 3, %v915
        %v917 = vrot.slane %v683, %v916
        %v918 = vlaneseq
        %v919 = vshrl.u32 %v918, 7
        %v920 = vsub.s32 4, %v919
        %v921 = vrot.slane %v683, %v920
        %v922 = vlaneseq
        %v923 = vshrl.u32 %v922, 7
        %v924 = vsub.s32 5, %v923
        %v925 = vrot.slane %v683, %v924
        %v926 = vlaneseq
        %v927 = vshrl.u32 %v926, 7
        %v928 = vsub.s32 6, %v927
        %v929 = vrot.slane %v683, %v928
        %v930 = vlaneseq
        %v931 = vshrl.u32 %v930, 7
        %v932 = vsub.s32 7, %v931
        %v933 = vrot.slane %v683, %v932
        %v934 = vlaneseq
        %v935 = vshrl.u32 %v934, 7
        %v936 = vsub.s32 0, %v935
        %v937 = vrot.slane %v684, %v936
        %v938 = vlaneseq
        %v939 = vshrl.u32 %v938, 7
        %v940 = vsub.s32 1, %v939
        %v941 = vrot.slane %v684, %v940
        %v942 = vlaneseq
        %v943 = vshrl.u32 %v942, 7
        %v944 = vsub.s32 2, %v943
        %v945 = vrot.slane %v684, %v944
        %v946 = vlaneseq
        %v947 = vshrl.u32 %v946, 7
        %v948 = vsub.s32 3, %v947
        %v949 = vrot.slane %v684, %v948
        %v950 = vlaneseq
        %v951 = vshrl.u32 %v950, 7
        %v952 = vsub.s32 4, %v951
        %v953 = vrot.slane %v684, %v952
        %v954 = vlaneseq
        %v955 = vshrl.u32 %v954, 7
        %v956 = vsub.s32 5, %v955
        %v957 = vrot.slane %v684, %v956
        %v958 = vlaneseq
        %v959 = vshrl.u32 %v958, 7
        %v960 = vsub.s32 6, %v959
        %v961 = vrot.slane %v684, %v960
        %v962 = vlaneseq
        %v963 = vshrl.u32 %v962, 7
        %v964 = vsub.s32 7, %v963
        %v965 = vrot.slane %v684, %v964
        %v966 = vlaneseq
        %v967 = vshrl.u32 %v966, 7
        %v968 = vsub.s32 0, %v967
        %v969 = vrot.slane %v685, %v968
        %v970 = vlaneseq
        %v971 = vshrl.u32 %v970, 7
        %v972 = vsub.s32 1, %v971
        %v973 = vrot.slane %v685, %v972
        %v974 = vlaneseq
        %v975 = vshrl.u32 %v974, 7
        %v976 = vsub.s32 2, %v975
        %v977 = vrot.slane %v685, %v976
        %v978 = vlaneseq
        %v979 = vshrl.u32 %v978, 7
        %v980 = vsub.s32 3, %v979
        %v981 = vrot.slane %v685, %v980
        %v982 = vlaneseq
        %v983 = vshrl.u32 %v982, 7
        %v984 = vsub.s32 4, %v983
        %v985 = vrot.slane %v685, %v984
        %v986 = vlaneseq
        %v987 = vshrl.u32 %v986, 7
        %v988 = vsub.s32 5, %v987
        %v989 = vrot.slane %v685, %v988
        %v990 = vlaneseq
        %v991 = vshrl.u32 %v990, 7
        %v992 = vsub.s32 6, %v991
        %v993 = vrot.slane %v685, %v992
        %v994 = vlaneseq
        %v995 = vshrl.u32 %v994, 7
        %v996 = vsub.s32 7, %v995
        %v997 = vrot.slane %v685, %v996
        %v998 = vlaneseq
        %v999 = vshrl.u32 %v998, 7
        %v1000 = vsub.s32 0, %v999
        %v1001 = vrot.slane %v686, %v1000
        %v1002 = vlaneseq
        %v1003 = vshrl.u32 %v1002, 7
        %v1004 = vsub.s32 1, %v1003
        %v1005 = vrot.slane %v686, %v1004
        %v1006 = vlaneseq
        %v1007 = vshrl.u32 %v1006, 7
        %v1008 = vsub.s32 2, %v1007
        %v1009 = vrot.slane %v686, %v1008
        %v1010 = vlaneseq
        %v1011 = vshrl.u32 %v1010, 7
        %v1012 = vsub.s32 3, %v1011
        %v1013 = vrot.slane %v686, %v1012
        %v1014 = vlaneseq
        %v1015 = vshrl.u32 %v1014, 7
        %v1016 = vsub.s32 4, %v1015
        %v1017 = vrot.slane %v686, %v1016
        %v1018 = vlaneseq
        %v1019 = vshrl.u32 %v1018, 7
        %v1020 = vsub.s32 5, %v1019
        %v1021 = vrot.slane %v686, %v1020
        %v1022 = vlaneseq
        %v1023 = vshrl.u32 %v1022, 7
        %v1024 = vsub.s32 6, %v1023
        %v1025 = vrot.slane %v686, %v1024
        %v1026 = vlaneseq
        %v1027 = vshrl.u32 %v1026, 7
        %v1028 = vsub.s32 7, %v1027
        %v1029 = vrot.slane %v686, %v1028
        %v1030 = vlaneseq
        %v1031 = vshrl.u32 %v1030, 7
        %v1032 = vsub.s32 0, %v1031
        %v1033 = vrot.slane %v687, %v1032
        %v1034 = vlaneseq
        %v1035 = vshrl.u32 %v1034, 7
        %v1036 = vsub.s32 1, %v1035
        %v1037 = vrot.slane %v687, %v1036
        %v1038 = vlaneseq
        %v1039 = vshrl.u32 %v1038, 7
        %v1040 = vsub.s32 2, %v1039
        %v1041 = vrot.slane %v687, %v1040
        %v1042 = vlaneseq
        %v1043 = vshrl.u32 %v1042, 7
        %v1044 = vsub.s32 3, %v1043
        %v1045 = vrot.slane %v687, %v1044
        %v1046 = vlaneseq
        %v1047 = vshrl.u32 %v1046, 7
        %v1048 = vsub.s32 4, %v1047
        %v1049 = vrot.slane %v687, %v1048
        %v1050 = vlaneseq
        %v1051 = vshrl.u32 %v1050, 7
        %v1052 = vsub.s32 5, %v1051
        %v1053 = vrot.slane %v687, %v1052
        %v1054 = vlaneseq
        %v1055 = vshrl.u32 %v1054, 7
        %v1056 = vsub.s32 6, %v1055
        %v1057 = vrot.slane %v687, %v1056
        %v1058 = vlaneseq
        %v1059 = vshrl.u32 %v1058, 7
        %v1060 = vsub.s32 7, %v1059
        %v1061 = vrot.slane %v687, %v1060
        %v1062 = vlaneseq
        %v1063 = vshrl.u32 %v1062, 7
        %v1064 = vsub.s32 0, %v1063
        %v1065 = vrot.slane %v688, %v1064
        %v1066 = vlaneseq
        %v1067 = vshrl.u32 %v1066, 7
        %v1068 = vsub.s32 1, %v1067
        %v1069 = vrot.slane %v688, %v1068
        %v1070 = vlaneseq
        %v1071 = vshrl.u32 %v1070, 7
        %v1072 = vsub.s32 2, %v1071
        %v1073 = vrot.slane %v688, %v1072
        %v1074 = vlaneseq
        %v1075 = vshrl.u32 %v1074, 7
        %v1076 = vsub.s32 3, %v1075
        %v1077 = vrot.slane %v688, %v1076
        %v1078 = vlaneseq
        %v1079 = vshrl.u32 %v1078, 7
        %v1080 = vsub.s32 4, %v1079
        %v1081 = vrot.slane %v688, %v1080
        %v1082 = vlaneseq
        %v1083 = vshrl.u32 %v1082, 7
        %v1084 = vsub.s32 5, %v1083
        %v1085 = vrot.slane %v688, %v1084
        %v1086 = vlaneseq
        %v1087 = vshrl.u32 %v1086, 7
        %v1088 = vsub.s32 6, %v1087
        %v1089 = vrot.slane %v688, %v1088
        %v1090 = vlaneseq
        %v1091 = vshrl.u32 %v1090, 7
        %v1092 = vsub.s32 7, %v1091
        %v1093 = vrot.slane %v688, %v1092
        %v1094 = vlaneseq
        %v1095 = vshrl.u32 %v1094, 7
        %v1096 = vsub.s32 0, %v1095
        %v1097 = vrot.slane %v689, %v1096
        %v1098 = vlaneseq
        %v1099 = vshrl.u32 %v1098, 7
        %v1100 = vsub.s32 1, %v1099
        %v1101 = vrot.slane %v689, %v1100
        %v1102 = vlaneseq
        %v1103 = vshrl.u32 %v1102, 7
        %v1104 = vsub.s32 2, %v1103
        %v1105 = vrot.slane %v689, %v1104
        %v1106 = vlaneseq
        %v1107 = vshrl.u32 %v1106, 7
        %v1108 = vsub.s32 3, %v1107
        %v1109 = vrot.slane %v689, %v1108
        %v1110 = vlaneseq
        %v1111 = vshrl.u32 %v1110, 7
        %v1112 = vsub.s32 4, %v1111
        %v1113 = vrot.slane %v689, %v1112
        %v1114 = vlaneseq
        %v1115 = vshrl.u32 %v1114, 7
        %v1116 = vsub.s32 5, %v1115
        %v1117 = vrot.slane %v689, %v1116
        %v1118 = vlaneseq
        %v1119 = vshrl.u32 %v1118, 7
        %v1120 = vsub.s32 6, %v1119
        %v1121 = vrot.slane %v689, %v1120
        %v1122 = vlaneseq
        %v1123 = vshrl.u32 %v1122, 7
        %v1124 = vsub.s32 7, %v1123
        %v1125 = vrot.slane %v689, %v1124
        %v1126 = vlaneseq
        %v1127 = vshrl.u32 %v1126, 7
        %v1128 = vsub.s32 0, %v1127
        %v1129 = vrot.slane %v690, %v1128
        %v1130 = vlaneseq
        %v1131 = vshrl.u32 %v1130, 7
        %v1132 = vsub.s32 1, %v1131
        %v1133 = vrot.slane %v690, %v1132
        %v1134 = vlaneseq
        %v1135 = vshrl.u32 %v1134, 7
        %v1136 = vsub.s32 2, %v1135
        %v1137 = vrot.slane %v690, %v1136
        %v1138 = vlaneseq
        %v1139 = vshrl.u32 %v1138, 7
        %v1140 = vsub.s32 3, %v1139
        %v1141 = vrot.slane %v690, %v1140
        %v1142 = vlaneseq
        %v1143 = vshrl.u32 %v1142, 7
        %v1144 = vsub.s32 4, %v1143
        %v1145 = vrot.slane %v690, %v1144
        %v1146 = vlaneseq
        %v1147 = vshrl.u32 %v1146, 7
        %v1148 = vsub.s32 5, %v1147
        %v1149 = vrot.slane %v690, %v1148
        %v1150 = vlaneseq
        %v1151 = vshrl.u32 %v1150, 7
        %v1152 = vsub.s32 6, %v1151
        %v1153 = vrot.slane %v690, %v1152
        %v1154 = vlaneseq
        %v1155 = vshrl.u32 %v1154, 7
        %v1156 = vsub.s32 7, %v1155
        %v1157 = vrot.slane %v690, %v1156
        %v1158 = vlaneseq
        %v1159 = vshrl.u32 %v1158, 7
        %v1160 = vsub.s32 0, %v1159
        %v1161 = vrot.slane %v691, %v1160
        %v1162 = vlaneseq
        %v1163 = vshrl.u32 %v1162, 7
        %v1164 = vsub.s32 1, %v1163
        %v1165 = vrot.slane %v691, %v1164
        %v1166 = vlaneseq
        %v1167 = vshrl.u32 %v1166, 7
        %v1168 = vsub.s32 2, %v1167
        %v1169 = vrot.slane %v691, %v1168
        %v1170 = vlaneseq
        %v1171 = vshrl.u32 %v1170, 7
        %v1172 = vsub.s32 3, %v1171
        %v1173 = vrot.slane %v691, %v1172
        %v1174 = vlaneseq
        %v1175 = vshrl.u32 %v1174, 7
        %v1176 = vsub.s32 4, %v1175
        %v1177 = vrot.slane %v691, %v1176
        %v1178 = vlaneseq
        %v1179 = vshrl.u32 %v1178, 7
        %v1180 = vsub.s32 5, %v1179
        %v1181 = vrot.slane %v691, %v1180
        %v1182 = vlaneseq
        %v1183 = vshrl.u32 %v1182, 7
        %v1184 = vsub.s32 6, %v1183
        %v1185 = vrot.slane %v691, %v1184
        %v1186 = vlaneseq
        %v1187 = vshrl.u32 %v1186, 7
        %v1188 = vsub.s32 7, %v1187
        %v1189 = vrot.slane %v691, %v1188
        %v1190 = vlaneseq
        %v1191 = vshrl.u32 %v1190, 7
        %v1192 = vsub.s32 0, %v1191
        %v1193 = vrot.slane %v692, %v1192
        %v1194 = vlaneseq
        %v1195 = vshrl.u32 %v1194, 7
        %v1196 = vsub.s32 1, %v1195
        %v1197 = vrot.slane %v692, %v1196
        %v1198 = vlaneseq
        %v1199 = vshrl.u32 %v1198, 7
        %v1200 = vsub.s32 2, %v1199
        %v1201 = vrot.slane %v692, %v1200
        %v1202 = vlaneseq
        %v1203 = vshrl.u32 %v1202, 7
        %v1204 = vsub.s32 3, %v1203
        %v1205 = vrot.slane %v692, %v1204
        %v1206 = vlaneseq
        %v1207 = vshrl.u32 %v1206, 7
        %v1208 = vsub.s32 4, %v1207
        %v1209 = vrot.slane %v692, %v1208
        %v1210 = vlaneseq
        %v1211 = vshrl.u32 %v1210, 7
        %v1212 = vsub.s32 5, %v1211
        %v1213 = vrot.slane %v692, %v1212
        %v1214 = vlaneseq
        %v1215 = vshrl.u32 %v1214, 7
        %v1216 = vsub.s32 6, %v1215
        %v1217 = vrot.slane %v692, %v1216
        %v1218 = vlaneseq
        %v1219 = vshrl.u32 %v1218, 7
        %v1220 = vsub.s32 7, %v1219
        %v1221 = vrot.slane %v692, %v1220
        %v1222 = vlaneseq
        %v1223 = vshrl.u32 %v1222, 7
        %v1224 = vsub.s32 0, %v1223
        %v1225 = vrot.slane %v693, %v1224
        %v1226 = vlaneseq
        %v1227 = vshrl.u32 %v1226, 7
        %v1228 = vsub.s32 1, %v1227
        %v1229 = vrot.slane %v693, %v1228
        %v1230 = vlaneseq
        %v1231 = vshrl.u32 %v1230, 7
        %v1232 = vsub.s32 2, %v1231
        %v1233 = vrot.slane %v693, %v1232
        %v1234 = vlaneseq
        %v1235 = vshrl.u32 %v1234, 7
        %v1236 = vsub.s32 3, %v1235
        %v1237 = vrot.slane %v693, %v1236
        %v1238 = vlaneseq
        %v1239 = vshrl.u32 %v1238, 7
        %v1240 = vsub.s32 4, %v1239
        %v1241 = vrot.slane %v693, %v1240
        %v1242 = vlaneseq
        %v1243 = vshrl.u32 %v1242, 7
        %v1244 = vsub.s32 5, %v1243
        %v1245 = vrot.slane %v693, %v1244
        %v1246 = vlaneseq
        %v1247 = vshrl.u32 %v1246, 7
        %v1248 = vsub.s32 6, %v1247
        %v1249 = vrot.slane %v693, %v1248
        %v1250 = vlaneseq
        %v1251 = vshrl.u32 %v1250, 7
        %v1252 = vsub.s32 7, %v1251
        %v1253 = vrot.slane %v693, %v1252
        %v1254 = vlaneseq
        %v1255 = vshrl.u32 %v1254, 7
        %v1256 = vsub.s32 0, %v1255
        %v1257 = vrot.slane %v694, %v1256
        %v1258 = vlaneseq
        %v1259 = vshrl.u32 %v1258, 7
        %v1260 = vsub.s32 1, %v1259
        %v1261 = vrot.slane %v694, %v1260
        %v1262 = vlaneseq
        %v1263 = vshrl.u32 %v1262, 7
        %v1264 = vsub.s32 2, %v1263
        %v1265 = vrot.slane %v694, %v1264
        %v1266 = vlaneseq
        %v1267 = vshrl.u32 %v1266, 7
        %v1268 = vsub.s32 3, %v1267
        %v1269 = vrot.slane %v694, %v1268
        %v1270 = vlaneseq
        %v1271 = vshrl.u32 %v1270, 7
        %v1272 = vsub.s32 4, %v1271
        %v1273 = vrot.slane %v694, %v1272
        %v1274 = vlaneseq
        %v1275 = vshrl.u32 %v1274, 7
        %v1276 = vsub.s32 5, %v1275
        %v1277 = vrot.slane %v694, %v1276
        %v1278 = vlaneseq
        %v1279 = vshrl.u32 %v1278, 7
        %v1280 = vsub.s32 6, %v1279
        %v1281 = vrot.slane %v694, %v1280
        %v1282 = vlaneseq
        %v1283 = vshrl.u32 %v1282, 7
        %v1284 = vsub.s32 7, %v1283
        %v1285 = vrot.slane %v694, %v1284
        %v1286 = vlaneseq
        %v1287 = vshrl.u32 %v1286, 7
        %v1288 = vsub.s32 0, %v1287
        %v1289 = vrot.slane %v695, %v1288
        %v1290 = vlaneseq
        %v1291 = vshrl.u32 %v1290, 7
        %v1292 = vsub.s32 1, %v1291
        %v1293 = vrot.slane %v695, %v1292
        %v1294 = vlaneseq
        %v1295 = vshrl.u32 %v1294, 7
        %v1296 = vsub.s32 2, %v1295
        %v1297 = vrot.slane %v695, %v1296
        %v1298 = vlaneseq
        %v1299 = vshrl.u32 %v1298, 7
        %v1300 = vsub.s32 3, %v1299
        %v1301 = vrot.slane %v695, %v1300
        %v1302 = vlaneseq
        %v1303 = vshrl.u32 %v1302, 7
        %v1304 = vsub.s32 4, %v1303
        %v1305 = vrot.slane %v695, %v1304
        %v1306 = vlaneseq
        %v1307 = vshrl.u32 %v1306, 7
        %v1308 = vsub.s32 5, %v1307
        %v1309 = vrot.slane %v695, %v1308
        %v1310 = vlaneseq
        %v1311 = vshrl.u32 %v1310, 7
        %v1312 = vsub.s32 6, %v1311
        %v1313 = vrot.slane %v695, %v1312
        %v1314 = vlaneseq
        %v1315 = vshrl.u32 %v1314, 7
        %v1316 = vsub.s32 7, %v1315
        %v1317 = vrot.slane %v695, %v1316
        %v1318 = vlaneseq
        %v1319 = vshrl.u32 %v1318, 7
        %v1320 = vsub.s32 0, %v1319
        %v1321 = vrot.slane %v696, %v1320
        %v1322 = vlaneseq
        %v1323 = vshrl.u32 %v1322, 7
        %v1324 = vsub.s32 1, %v1323
        %v1325 = vrot.slane %v696, %v1324
        %v1326 = vlaneseq
        %v1327 = vshrl.u32 %v1326, 7
        %v1328 = vsub.s32 2, %v1327
        %v1329 = vrot.slane %v696, %v1328
        %v1330 = vlaneseq
        %v1331 = vshrl.u32 %v1330, 7
        %v1332 = vsub.s32 3, %v1331
        %v1333 = vrot.slane %v696, %v1332
        %v1334 = vlaneseq
        %v1335 = vshrl.u32 %v1334, 7
        %v1336 = vsub.s32 4, %v1335
        %v1337 = vrot.slane %v696, %v1336
        %v1338 = vlaneseq
        %v1339 = vshrl.u32 %v1338, 7
        %v1340 = vsub.s32 5, %v1339
        %v1341 = vrot.slane %v696, %v1340
        %v1342 = vlaneseq
        %v1343 = vshrl.u32 %v1342, 7
        %v1344 = vsub.s32 6, %v1343
        %v1345 = vrot.slane %v696, %v1344
        %v1346 = vlaneseq
        %v1347 = vshrl.u32 %v1346, 7
        %v1348 = vsub.s32 7, %v1347
        %v1349 = vrot.slane %v696, %v1348
        %v1350 = vlaneseq
        %v1351 = vshrl.u32 %v1350, 7
        %v1352 = vsub.s32 0, %v1351
        %v1353 = vrot.slane %v697, %v1352
        %v1354 = vlaneseq
        %v1355 = vshrl.u32 %v1354, 7
        %v1356 = vsub.s32 1, %v1355
        %v1357 = vrot.slane %v697, %v1356
        %v1358 = vlaneseq
        %v1359 = vshrl.u32 %v1358, 7
        %v1360 = vsub.s32 2, %v1359
        %v1361 = vrot.slane %v697, %v1360
        %v1362 = vlaneseq
        %v1363 = vshrl.u32 %v1362, 7
        %v1364 = vsub.s32 3, %v1363
        %v1365 = vrot.slane %v697, %v1364
        %v1366 = vlaneseq
        %v1367 = vshrl.u32 %v1366, 7
        %v1368 = vsub.s32 4, %v1367
        %v1369 = vrot.slane %v697, %v1368
        %v1370 = vlaneseq
        %v1371 = vshrl.u32 %v1370, 7
        %v1372 = vsub.s32 5, %v1371
        %v1373 = vrot.slane %v697, %v1372
        %v1374 = vlaneseq
        %v1375 = vshrl.u32 %v1374, 7
        %v1376 = vsub.s32 6, %v1375
        %v1377 = vrot.slane %v697, %v1376
        %v1378 = vlaneseq
        %v1379 = vshrl.u32 %v1378, 7
        %v1380 = vsub.s32 7, %v1379
        %v1381 = vrot.slane %v697, %v1380
        %v1382 = vlaneseq
        %v1383 = vshrl.u32 %v1382, 7
        %v1384 = vsub.s32 0, %v1383
        %v1385 = vrot.slane %v698, %v1384
        %v1386 = vlaneseq
        %v1387 = vshrl.u32 %v1386, 7
        %v1388 = vsub.s32 1, %v1387
        %v1389 = vrot.slane %v698, %v1388
        %v1390 = vlaneseq
        %v1391 = vshrl.u32 %v1390, 7
        %v1392 = vsub.s32 2, %v1391
        %v1393 = vrot.slane %v698, %v1392
        %v1394 = vlaneseq
        %v1395 = vshrl.u32 %v1394, 7
        %v1396 = vsub.s32 3, %v1395
        %v1397 = vrot.slane %v698, %v1396
        %v1398 = vlaneseq
        %v1399 = vshrl.u32 %v1398, 7
        %v1400 = vsub.s32 4, %v1399
        %v1401 = vrot.slane %v698, %v1400
        %v1402 = vlaneseq
        %v1403 = vshrl.u32 %v1402, 7
        %v1404 = vsub.s32 5, %v1403
        %v1405 = vrot.slane %v698, %v1404
        %v1406 = vlaneseq
        %v1407 = vshrl.u32 %v1406, 7
        %v1408 = vsub.s32 6, %v1407
        %v1409 = vrot.slane %v698, %v1408
        %v1410 = vlaneseq
        %v1411 = vshrl.u32 %v1410, 7
        %v1412 = vsub.s32 7, %v1411
        %v1413 = vrot.slane %v698, %v1412
        %v1414 = vlaneseq
        %v1415 = vshrl.u32 %v1414, 7
        %v1416 = vsub.s32 0, %v1415
        %v1417 = vrot.slane %v699, %v1416
        %v1418 = vlaneseq
        %v1419 = vshrl.u32 %v1418, 7
        %v1420 = vsub.s32 1, %v1419
        %v1421 = vrot.slane %v699, %v1420
        %v1422 = vlaneseq
        %v1423 = vshrl.u32 %v1422, 7
        %v1424 = vsub.s32 2, %v1423
        %v1425 = vrot.slane %v699, %v1424
        %v1426 = vlaneseq
        %v1427 = vshrl.u32 %v1426, 7
        %v1428 = vsub.s32 3, %v1427
        %v1429 = vrot.slane %v699, %v1428
        %v1430 = vlaneseq
        %v1431 = vshrl.u32 %v1430, 7
        %v1432 = vsub.s32 4, %v1431
        %v1433 = vrot.slane %v699, %v1432
        %v1434 = vlaneseq
        %v1435 = vshrl.u32 %v1434, 7
        %v1436 = vsub.s32 5, %v1435
        %v1437 = vrot.slane %v699, %v1436
        %v1438 = vlaneseq
        %v1439 = vshrl.u32 %v1438, 7
        %v1440 = vsub.s32 6, %v1439
        %v1441 = vrot.slane %v699, %v1440
        %v1442 = vlaneseq
        %v1443 = vshrl.u32 %v1442, 7
        %v1444 = vsub.s32 7, %v1443
        %v1445 = vrot.slane %v699, %v1444
        %v1446 = vlaneseq
        %v1447 = vshrl.u32 %v1446, 7
        %v1448 = vsub.s32 0, %v1447
        %v1449 = vrot.slane %v700, %v1448
        %v1450 = vlaneseq
        %v1451 = vshrl.u32 %v1450, 7
        %v1452 = vsub.s32 1, %v1451
        %v1453 = vrot.slane %v700, %v1452
        %v1454 = vlaneseq
        %v1455 = vshrl.u32 %v1454, 7
        %v1456 = vsub.s32 2, %v1455
        %v1457 = vrot.slane %v700, %v1456
        %v1458 = vlaneseq
        %v1459 = vshrl.u32 %v1458, 7
        %v1460 = vsub.s32 3, %v1459
        %v1461 = vrot.slane %v700, %v1460
        %v1462 = vlaneseq
        %v1463 = vshrl.u32 %v1462, 7
        %v1464 = vsub.s32 4, %v1463
        %v1465 = vrot.slane %v700, %v1464
        %v1466 = vlaneseq
        %v1467 = vshrl.u32 %v1466, 7
        %v1468 = vsub.s32 5, %v1467
        %v1469 = vrot.slane %v700, %v1468
        %v1470 = vlaneseq
        %v1471 = vshrl.u32 %v1470, 7
        %v1472 = vsub.s32 6, %v1471
        %v1473 = vrot.slane %v700, %v1472
        %v1474 = vlaneseq
        %v1475 = vshrl.u32 %v1474, 7
        %v1476 = vsub.s32 7, %v1475
        %v1477 = vrot.slane %v700, %v1476
        %v1478 = vlaneseq
        %v1479 = vshrl.u32 %v1478, 7
        %v1480 = vsub.s32 0, %v1479
        %v1481 = vrot.slane %v701, %v1480
        %v1482 = vlaneseq
        %v1483 = vshrl.u32 %v1482, 7
        %v1484 = vsub.s32 1, %v1483
        %v1485 = vrot.slane %v701, %v1484
        %v1486 = vlaneseq
        %v1487 = vshrl.u32 %v1486, 7
        %v1488 = vsub.s32 2, %v1487
        %v1489 = vrot.slane %v701, %v1488
        %v1490 = vlaneseq
        %v1491 = vshrl.u32 %v1490, 7
        %v1492 = vsub.s32 3, %v1491
        %v1493 = vrot.slane %v701, %v1492
        %v1494 = vlaneseq
        %v1495 = vshrl.u32 %v1494, 7
        %v1496 = vsub.s32 4, %v1495
        %v1497 = vrot.slane %v701, %v1496
        %v1498 = vlaneseq
        %v1499 = vshrl.u32 %v1498, 7
        %v1500 = vsub.s32 5, %v1499
        %v1501 = vrot.slane %v701, %v1500
        %v1502 = vlaneseq
        %v1503 = vshrl.u32 %v1502, 7
        %v1504 = vsub.s32 6, %v1503
        %v1505 = vrot.slane %v701, %v1504
        %v1506 = vlaneseq
        %v1507 = vshrl.u32 %v1506, 7
        %v1508 = vsub.s32 7, %v1507
        %v1509 = vrot.slane %v701, %v1508
        %v1510 = vlaneseq
        %v1511 = vshrl.u32 %v1510, 7
        %v1512 = vsub.s32 0, %v1511
        %v1513 = vrot.slane %v702, %v1512
        %v1514 = vlaneseq
        %v1515 = vshrl.u32 %v1514, 7
        %v1516 = vsub.s32 1, %v1515
        %v1517 = vrot.slane %v702, %v1516
        %v1518 = vlaneseq
        %v1519 = vshrl.u32 %v1518, 7
        %v1520 = vsub.s32 2, %v1519
        %v1521 = vrot.slane %v702, %v1520
        %v1522 = vlaneseq
        %v1523 = vshrl.u32 %v1522, 7
        %v1524 = vsub.s32 3, %v1523
        %v1525 = vrot.slane %v702, %v1524
        %v1526 = vlaneseq
        %v1527 = vshrl.u32 %v1526, 7
        %v1528 = vsub.s32 4, %v1527
        %v1529 = vrot.slane %v702, %v1528
        %v1530 = vlaneseq
        %v1531 = vshrl.u32 %v1530, 7
        %v1532 = vsub.s32 5, %v1531
        %v1533 = vrot.slane %v702, %v1532
        %v1534 = vlaneseq
        %v1535 = vshrl.u32 %v1534, 7
        %v1536 = vsub.s32 6, %v1535
        %v1537 = vrot.slane %v702, %v1536
        %v1538 = vlaneseq
        %v1539 = vshrl.u32 %v1538, 7
        %v1540 = vsub.s32 7, %v1539
        %v1541 = vrot.slane %v702, %v1540
        %v1542 = vlaneseq
        %v1543 = vshrl.u32 %v1542, 7
        %v1544 = vsub.s32 0, %v1543
        %v1545 = vrot.slane %v703, %v1544
        %v1546 = vlaneseq
        %v1547 = vshrl.u32 %v1546, 7
        %v1548 = vsub.s32 1, %v1547
        %v1549 = vrot.slane %v703, %v1548
        %v1550 = vlaneseq
        %v1551 = vshrl.u32 %v1550, 7
        %v1552 = vsub.s32 2, %v1551
        %v1553 = vrot.slane %v703, %v1552
        %v1554 = vlaneseq
        %v1555 = vshrl.u32 %v1554, 7
        %v1556 = vsub.s32 3, %v1555
        %v1557 = vrot.slane %v703, %v1556
        %v1558 = vlaneseq
        %v1559 = vshrl.u32 %v1558, 7
        %v1560 = vsub.s32 4, %v1559
        %v1561 = vrot.slane %v703, %v1560
        %v1562 = vlaneseq
        %v1563 = vshrl.u32 %v1562, 7
        %v1564 = vsub.s32 5, %v1563
        %v1565 = vrot.slane %v703, %v1564
        %v1566 = vlaneseq
        %v1567 = vshrl.u32 %v1566, 7
        %v1568 = vsub.s32 6, %v1567
        %v1569 = vrot.slane %v703, %v1568
        %v1570 = vlaneseq
        %v1571 = vshrl.u32 %v1570, 7
        %v1572 = vsub.s32 7, %v1571
        %v1573 = vrot.slane %v703, %v1572
        %v1574 = vlaneseq
        %v1575 = vshrl.u32 %v1574, 7
        %v1576 = vsub.s32 0, %v1575
        %v1577 = vrot.slane %v704, %v1576
        %v1578 = vlaneseq
        %v1579 = vshrl.u32 %v1578, 7
        %v1580 = vsub.s32 1, %v1579
        %v1581 = vrot.slane %v704, %v1580
        %v1582 = vlaneseq
        %v1583 = vshrl.u32 %v1582, 7
        %v1584 = vsub.s32 2, %v1583
        %v1585 = vrot.slane %v704, %v1584
        %v1586 = vlaneseq
        %v1587 = vshrl.u32 %v1586, 7
        %v1588 = vsub.s32 3, %v1587
        %v1589 = vrot.slane %v704, %v1588
        %v1590 = vlaneseq
        %v1591 = vshrl.u32 %v1590, 7
        %v1592 = vsub.s32 4, %v1591
        %v1593 = vrot.slane %v704, %v1592
        %v1594 = vlaneseq
        %v1595 = vshrl.u32 %v1594, 7
        %v1596 = vsub.s32 5, %v1595
        %v1597 = vrot.slane %v704, %v1596
        %v1598 = vlaneseq
        %v1599 = vshrl.u32 %v1598, 7
        %v1600 = vsub.s32 6, %v1599
        %v1601 = vrot.slane %v704, %v1600
        %v1602 = vlaneseq
        %v1603 = vshrl.u32 %v1602, 7
        %v1604 = vsub.s32 7, %v1603
        %v1605 = vrot.slane %v704, %v1604
        %v1606 = vlaneseq
        %v1607 = vshrl.u32 %v1606, 7
        %v1608 = vsub.s32 0, %v1607
        %v1609 = vrot.slane %v705, %v1608
        %v1610 = vlaneseq
        %v1611 = vshrl.u32 %v1610, 7
        %v1612 = vsub.s32 1, %v1611
        %v1613 = vrot.slane %v705, %v1612
        %v1614 = vlaneseq
        %v1615 = vshrl.u32 %v1614, 7
        %v1616 = vsub.s32 2, %v1615
        %v1617 = vrot.slane %v705, %v1616
        %v1618 = vlaneseq
        %v1619 = vshrl.u32 %v1618, 7
        %v1620 = vsub.s32 3, %v1619
        %v1621 = vrot.slane %v705, %v1620
        %v1622 = vlaneseq
        %v1623 = vshrl.u32 %v1622, 7
        %v1624 = vsub.s32 4, %v1623
        %v1625 = vrot.slane %v705, %v1624
        %v1626 = vlaneseq
        %v1627 = vshrl.u32 %v1626, 7
        %v1628 = vsub.s32 5, %v1627
        %v1629 = vrot.slane %v705, %v1628
        %v1630 = vlaneseq
        %v1631 = vshrl.u32 %v1630, 7
        %v1632 = vsub.s32 6, %v1631
        %v1633 = vrot.slane %v705, %v1632
        %v1634 = vlaneseq
        %v1635 = vshrl.u32 %v1634, 7
        %v1636 = vsub.s32 7, %v1635
        %v1637 = vrot.slane %v705, %v1636
        %v1638 = vlaneseq
        %v1639 = vshrl.u32 %v1638, 7
        %v1640 = vsub.s32 0, %v1639
        %v1641 = vrot.slane %v706, %v1640
        %v1642 = vlaneseq
        %v1643 = vshrl.u32 %v1642, 7
        %v1644 = vsub.s32 1, %v1643
        %v1645 = vrot.slane %v706, %v1644
        %v1646 = vlaneseq
        %v1647 = vshrl.u32 %v1646, 7
        %v1648 = vsub.s32 2, %v1647
        %v1649 = vrot.slane %v706, %v1648
        %v1650 = vlaneseq
        %v1651 = vshrl.u32 %v1650, 7
        %v1652 = vsub.s32 3, %v1651
        %v1653 = vrot.slane %v706, %v1652
        %v1654 = vlaneseq
        %v1655 = vshrl.u32 %v1654, 7
        %v1656 = vsub.s32 4, %v1655
        %v1657 = vrot.slane %v706, %v1656
        %v1658 = vlaneseq
        %v1659 = vshrl.u32 %v1658, 7
        %v1660 = vsub.s32 5, %v1659
        %v1661 = vrot.slane %v706, %v1660
        %v1662 = vlaneseq
        %v1663 = vshrl.u32 %v1662, 7
        %v1664 = vsub.s32 6, %v1663
        %v1665 = vrot.slane %v706, %v1664
        %v1666 = vlaneseq
        %v1667 = vshrl.u32 %v1666, 7
        %v1668 = vsub.s32 7, %v1667
        %v1669 = vrot.slane %v706, %v1668
        %v1670 = vlaneseq
        %v1671 = vshrl.u32 %v1670, 7
        %v1672 = vsub.s32 0, %v1671
        %v1673 = vrot.slane %v707, %v1672
        %v1674 = vlaneseq
        %v1675 = vshrl.u32 %v1674, 7
        %v1676 = vsub.s32 1, %v1675
        %v1677 = vrot.slane %v707, %v1676
        %v1678 = vlaneseq
        %v1679 = vshrl.u32 %v1678, 7
        %v1680 = vsub.s32 2, %v1679
        %v1681 = vrot.slane %v707, %v1680
        %v1682 = vlaneseq
        %v1683 = vshrl.u32 %v1682, 7
        %v1684 = vsub.s32 3, %v1683
        %v1685 = vrot.slane %v707, %v1684
        %v1686 = vlaneseq
        %v1687 = vshrl.u32 %v1686, 7
        %v1688 = vsub.s32 4, %v1687
        %v1689 = vrot.slane %v707, %v1688
        %v1690 = vlaneseq
        %v1691 = vshrl.u32 %v1690, 7
        %v1692 = vsub.s32 5, %v1691
        %v1693 = vrot.slane %v707, %v1692
        %v1694 = vlaneseq
        %v1695 = vshrl.u32 %v1694, 7
        %v1696 = vsub.s32 6, %v1695
        %v1697 = vrot.slane %v707, %v1696
        %v1698 = vlaneseq
        %v1699 = vshrl.u32 %v1698, 7
        %v1700 = vsub.s32 7, %v1699
        %v1701 = vrot.slane %v707, %v1700
        %v1702 = vlaneseq
        %v1703 = vshrl.u32 %v1702, 7
        %v1704 = vsub.s32 0, %v1703
        %v1705 = vrot.slane %v708, %v1704
        %v1706 = vlaneseq
        %v1707 = vshrl.u32 %v1706, 7
        %v1708 = vsub.s32 1, %v1707
        %v1709 = vrot.slane %v708, %v1708
        %v1710 = vlaneseq
        %v1711 = vshrl.u32 %v1710, 7
        %v1712 = vsub.s32 2, %v1711
        %v1713 = vrot.slane %v708, %v1712
        %v1714 = vlaneseq
        %v1715 = vshrl.u32 %v1714, 7
        %v1716 = vsub.s32 3, %v1715
        %v1717 = vrot.slane %v708, %v1716
        %v1718 = vlaneseq
        %v1719 = vshrl.u32 %v1718, 7
        %v1720 = vsub.s32 4, %v1719
        %v1721 = vrot.slane %v708, %v1720
        %v1722 = vlaneseq
        %v1723 = vshrl.u32 %v1722, 7
        %v1724 = vsub.s32 5, %v1723
        %v1725 = vrot.slane %v708, %v1724
        %v1726 = vlaneseq
        %v1727 = vshrl.u32 %v1726, 7
        %v1728 = vsub.s32 6, %v1727
        %v1729 = vrot.slane %v708, %v1728
        %v1730 = vlaneseq
        %v1731 = vshrl.u32 %v1730, 7
        %v1732 = vsub.s32 7, %v1731
        %v1733 = vrot.slane %v708, %v1732
        %v1734 = vlaneseq
        %v1735 = vshrl.u32 %v1734, 7
        %v1736 = vsub.s32 0, %v1735
        %v1737 = vrot.slane %v709, %v1736
        %v1738 = vlaneseq
        %v1739 = vshrl.u32 %v1738, 7
        %v1740 = vsub.s32 1, %v1739
        %v1741 = vrot.slane %v709, %v1740
        %v1742 = vlaneseq
        %v1743 = vshrl.u32 %v1742, 7
        %v1744 = vsub.s32 2, %v1743
        %v1745 = vrot.slane %v709, %v1744
        %v1746 = vlaneseq
        %v1747 = vshrl.u32 %v1746, 7
        %v1748 = vsub.s32 3, %v1747
        %v1749 = vrot.slane %v709, %v1748
        %v1750 = vlaneseq
        %v1751 = vshrl.u32 %v1750, 7
        %v1752 = vsub.s32 4, %v1751
        %v1753 = vrot.slane %v709, %v1752
        %v1754 = vlaneseq
        %v1755 = vshrl.u32 %v1754, 7
        %v1756 = vsub.s32 5, %v1755
        %v1757 = vrot.slane %v709, %v1756
        %v1758 = vlaneseq
        %v1759 = vshrl.u32 %v1758, 7
        %v1760 = vsub.s32 6, %v1759
        %v1761 = vrot.slane %v709, %v1760
        %v1762 = vlaneseq
        %v1763 = vshrl.u32 %v1762, 7
        %v1764 = vsub.s32 7, %v1763
        %v1765 = vrot.slane %v709, %v1764
        %v1766 = vcombine.low %v745, %v749
        %v1767 = vcombine.low %v753, %v757
        %v1768 = vcombine.low %v761, %v765
        %v1769 = vcombine.low %v769, %v773
        %v1771 = vunpack.c.l.s4 1966171168
        %v1772 = vunpack.c.0.s8 %v1771
        %v1773 = vlaneseq
        %v1774 = vshrl.u32 %v1773, 7
        %v1775 = vsub.s32 %v1772, %v1774
        %v1776 = vrot.slane %v1766, %v1775
        %v1778 = vunpack.c.l.s4 1966171168
        %v1779 = vunpack.c.0.s8 %v1778
        %v1780 = vlaneseq
        %v1781 = vshrl.u32 %v1780, 7
        %v1782 = vsub.s32 %v1779, %v1781
        %v1783 = vrot.slane %v1767, %v1782
        %v1785 = vunpack.c.l.s4 1966171168
        %v1786 = vunpack.c.0.s8 %v1785
        %v1787 = vlaneseq
        %v1788 = vshrl.u32 %v1787, 7
        %v1789 = vsub.s32 %v1786, %v1788
        %v1790 = vrot.slane %v1768, %v1789
        %v1792 = vunpack.c.l.s4 1966171168
        %v1793 = vunpack.c.0.s8 %v1792
        %v1794 = vlaneseq
        %v1795 = vshrl.u32 %v1794, 7
        %v1796 = vsub.s32 %v1793, %v1795
        %v1797 = vrot.slane %v1769, %v1796
        %v1798 = vcombine.low %v1776, %v1783
        %v1799 = vcombine.low %v1790, %v1797
        %v1801 = vunpack.c.l.s4 1966171168
        %v1802 = vunpack.c.0.s8 %v1801
        %v1803 = vlaneseq
        %v1804 = vshrl.u32 %v1803, 7
        %v1805 = vsub.s32 %v1802, %v1804
        %v1806 = vrot.slane %v1798, %v1805
        %v1808 = vunpack.c.l.s4 1966171168
        %v1809 = vunpack.c.0.s8 %v1808
        %v1810 = vlaneseq
        %v1811 = vshrl.u32 %v1810, 7
        %v1812 = vsub.s32 %v1809, %v1811
        %v1813 = vrot.slane %v1799, %v1812
        %v1814 = vcombine.low %v1806, %v1813
        %v1815 = vcombine.low %v777, %v781
        %v1816 = vcombine.low %v785, %v789
        %v1817 = vcombine.low %v793, %v797
        %v1818 = vcombine.low %v801, %v805
        %v1820 = vunpack.c.l.s4 1966171168
        %v1821 = vunpack.c.0.s8 %v1820
        %v1822 = vlaneseq
        %v1823 = vshrl.u32 %v1822, 7
        %v1824 = vsub.s32 %v1821, %v1823
        %v1825 = vrot.slane %v1815, %v1824
        %v1827 = vunpack.c.l.s4 1966171168
        %v1828 = vunpack.c.0.s8 %v1827
        %v1829 = vlaneseq
        %v1830 = vshrl.u32 %v1829, 7
        %v1831 = vsub.s32 %v1828, %v1830
        %v1832 = vrot.slane %v1816, %v1831
        %v1834 = vunpack.c.l.s4 1966171168
        %v1835 = vunpack.c.0.s8 %v1834
        %v1836 = vlaneseq
        %v1837 = vshrl.u32 %v1836, 7
        %v1838 = vsub.s32 %v1835, %v1837
        %v1839 = vrot.slane %v1817, %v1838
        %v1841 = vunpack.c.l.s4 1966171168
        %v1842 = vunpack.c.0.s8 %v1841
        %v1843 = vlaneseq
        %v1844 = vshrl.u32 %v1843, 7
        %v1845 = vsub.s32 %v1842, %v1844
        %v1846 = vrot.slane %v1818, %v1845
        %v1847 = vcombine.low %v1825, %v1832
        %v1848 = vcombine.low %v1839, %v1846
        %v1850 = vunpack.c.l.s4 1966171168
        %v1851 = vunpack.c.0.s8 %v1850
        %v1852 = vlaneseq
        %v1853 = vshrl.u32 %v1852, 7
        %v1854 = vsub.s32 %v1851, %v1853
        %v1855 = vrot.slane %v1847, %v1854
        %v1857 = vunpack.c.l.s4 1966171168
        %v1858 = vunpack.c.0.s8 %v1857
        %v1859 = vlaneseq
        %v1860 = vshrl.u32 %v1859, 7
        %v1861 = vsub.s32 %v1858, %v1860
        %v1862 = vrot.slane %v1848, %v1861
        %v1863 = vcombine.low %v1855, %v1862
        %v1864 = vcombine.low %v809, %v813
        %v1865 = vcombine.low %v817, %v821
        %v1866 = vcombine.low %v825, %v829
        %v1867 = vcombine.low %v833, %v837
        %v1869 = vunpack.c.l.s4 1966171168
        %v1870 = vunpack.c.0.s8 %v1869
        %v1871 = vlaneseq
        %v1872 = vshrl.u32 %v1871, 7
        %v1873 = vsub.s32 %v1870, %v1872
        %v1874 = vrot.slane %v1864, %v1873
        %v1876 = vunpack.c.l.s4 1966171168
        %v1877 = vunpack.c.0.s8 %v1876
        %v1878 = vlaneseq
        %v1879 = vshrl.u32 %v1878, 7
        %v1880 = vsub.s32 %v1877, %v1879
        %v1881 = vrot.slane %v1865, %v1880
        %v1883 = vunpack.c.l.s4 1966171168
        %v1884 = vunpack.c.0.s8 %v1883
        %v1885 = vlaneseq
        %v1886 = vshrl.u32 %v1885, 7
        %v1887 = vsub.s32 %v1884, %v1886
        %v1888 = vrot.slane %v1866, %v1887
        %v1890 = vunpack.c.l.s4 1966171168
        %v1891 = vunpack.c.0.s8 %v1890
        %v1892 = vlaneseq
        %v1893 = vshrl.u32 %v1892, 7
        %v1894 = vsub.s32 %v1891, %v1893
        %v1895 = vrot.slane %v1867, %v1894
        %v1896 = vcombine.low %v1874, %v1881
        %v1897 = vcombine.low %v1888, %v1895
        %v1899 = vunpack.c.l.s4 1966171168
        %v1900 = vunpack.c.0.s8 %v1899
        %v1901 = vlaneseq
        %v1902 = vshrl.u32 %v1901, 7
        %v1903 = vsub.s32 %v1900, %v1902
        %v1904 = vrot.slane %v1896, %v1903
        %v1906 = vunpack.c.l.s4 1966171168
        %v1907 = vunpack.c.0.s8 %v1906
        %v1908 = vlaneseq
        %v1909 = vshrl.u32 %v1908, 7
        %v1910 = vsub.s32 %v1907, %v1909
        %v1911 = vrot.slane %v1897, %v1910
        %v1912 = vcombine.low %v1904, %v1911
        %v1913 = vcombine.low %v841, %v845
        %v1914 = vcombine.low %v849, %v853
        %v1915 = vcombine.low %v857, %v861
        %v1916 = vcombine.low %v865, %v869
        %v1918 = vunpack.c.l.s4 1966171168
        %v1919 = vunpack.c.0.s8 %v1918
        %v1920 = vlaneseq
        %v1921 = vshrl.u32 %v1920, 7
        %v1922 = vsub.s32 %v1919, %v1921
        %v1923 = vrot.slane %v1913, %v1922
        %v1925 = vunpack.c.l.s4 1966171168
        %v1926 = vunpack.c.0.s8 %v1925
        %v1927 = vlaneseq
        %v1928 = vshrl.u32 %v1927, 7
        %v1929 = vsub.s32 %v1926, %v1928
        %v1930 = vrot.slane %v1914, %v1929
        %v1932 = vunpack.c.l.s4 1966171168
        %v1933 = vunpack.c.0.s8 %v1932
        %v1934 = vlaneseq
        %v1935 = vshrl.u32 %v1934, 7
        %v1936 = vsub.s32 %v1933, %v1935
        %v1937 = vrot.slane %v1915, %v1936
        %v1939 = vunpack.c.l.s4 1966171168
        %v1940 = vunpack.c.0.s8 %v1939
        %v1941 = vlaneseq
        %v1942 = vshrl.u32 %v1941, 7
        %v1943 = vsub.s32 %v1940, %v1942
        %v1944 = vrot.slane %v1916, %v1943
        %v1945 = vcombine.low %v1923, %v1930
        %v1946 = vcombine.low %v1937, %v1944
        %v1948 = vunpack.c.l.s4 1966171168
        %v1949 = vunpack.c.0.s8 %v1948
        %v1950 = vlaneseq
        %v1951 = vshrl.u32 %v1950, 7
        %v1952 = vsub.s32 %v1949, %v1951
        %v1953 = vrot.slane %v1945, %v1952
        %v1955 = vunpack.c.l.s4 1966171168
        %v1956 = vunpack.c.0.s8 %v1955
        %v1957 = vlaneseq
        %v1958 = vshrl.u32 %v1957, 7
        %v1959 = vsub.s32 %v1956, %v1958
        %v1960 = vrot.slane %v1946, %v1959
        %v1961 = vcombine.low %v1953, %v1960
        %v1962 = vcombine.low %v873, %v877
        %v1963 = vcombine.low %v881, %v885
        %v1964 = vcombine.low %v889, %v893
        %v1965 = vcombine.low %v897, %v901
        %v1967 = vunpack.c.l.s4 1966171168
        %v1968 = vunpack.c.0.s8 %v1967
        %v1969 = vlaneseq
        %v1970 = vshrl.u32 %v1969, 7
        %v1971 = vsub.s32 %v1968, %v1970
        %v1972 = vrot.slane %v1962, %v1971
        %v1974 = vunpack.c.l.s4 1966171168
        %v1975 = vunpack.c.0.s8 %v1974
        %v1976 = vlaneseq
        %v1977 = vshrl.u32 %v1976, 7
        %v1978 = vsub.s32 %v1975, %v1977
        %v1979 = vrot.slane %v1963, %v1978
        %v1981 = vunpack.c.l.s4 1966171168
        %v1982 = vunpack.c.0.s8 %v1981
        %v1983 = vlaneseq
        %v1984 = vshrl.u32 %v1983, 7
        %v1985 = vsub.s32 %v1982, %v1984
        %v1986 = vrot.slane %v1964, %v1985
        %v1988 = vunpack.c.l.s4 1966171168
        %v1989 = vunpack.c.0.s8 %v1988
        %v1990 = vlaneseq
        %v1991 = vshrl.u32 %v1990, 7
        %v1992 = vsub.s32 %v1989, %v1991
        %v1993 = vrot.slane %v1965, %v1992
        %v1994 = vcombine.low %v1972, %v1979
        %v1995 = vcombine.low %v1986, %v1993
        %v1997 = vunpack.c.l.s4 1966171168
        %v1998 = vunpack.c.0.s8 %v1997
        %v1999 = vlaneseq
        %v2000 = vshrl.u32 %v1999, 7
        %v2001 = vsub.s32 %v1998, %v2000
        %v2002 = vrot.slane %v1994, %v2001
        %v2004 = vunpack.c.l.s4 1966171168
        %v2005 = vunpack.c.0.s8 %v2004
        %v2006 = vlaneseq
        %v2007 = vshrl.u32 %v2006, 7
        %v2008 = vsub.s32 %v2005, %v2007
        %v2009 = vrot.slane %v1995, %v2008
        %v2010 = vcombine.low %v2002, %v2009
        %v2011 = vcombine.low %v905, %v909
        %v2012 = vcombine.low %v913, %v917
        %v2013 = vcombine.low %v921, %v925
        %v2014 = vcombine.low %v929, %v933
        %v2016 = vunpack.c.l.s4 1966171168
        %v2017 = vunpack.c.0.s8 %v2016
        %v2018 = vlaneseq
        %v2019 = vshrl.u32 %v2018, 7
        %v2020 = vsub.s32 %v2017, %v2019
        %v2021 = vrot.slane %v2011, %v2020
        %v2023 = vunpack.c.l.s4 1966171168
        %v2024 = vunpack.c.0.s8 %v2023
        %v2025 = vlaneseq
        %v2026 = vshrl.u32 %v2025, 7
        %v2027 = vsub.s32 %v2024, %v2026
        %v2028 = vrot.slane %v2012, %v2027
        %v2030 = vunpack.c.l.s4 1966171168
        %v2031 = vunpack.c.0.s8 %v2030
        %v2032 = vlaneseq
        %v2033 = vshrl.u32 %v2032, 7
        %v2034 = vsub.s32 %v2031, %v2033
        %v2035 = vrot.slane %v2013, %v2034
        %v2037 = vunpack.c.l.s4 1966171168
        %v2038 = vunpack.c.0.s8 %v2037
        %v2039 = vlaneseq
        %v2040 = vshrl.u32 %v2039, 7
        %v2041 = vsub.s32 %v2038, %v2040
        %v2042 = vrot.slane %v2014, %v2041
        %v2043 = vcombine.low %v2021, %v2028
        %v2044 = vcombine.low %v2035, %v2042
        %v2046 = vunpack.c.l.s4 1966171168
        %v2047 = vunpack.c.0.s8 %v2046
        %v2048 = vlaneseq
        %v2049 = vshrl.u32 %v2048, 7
        %v2050 = vsub.s32 %v2047, %v2049
        %v2051 = vrot.slane %v2043, %v2050
        %v2053 = vunpack.c.l.s4 1966171168
        %v2054 = vunpack.c.0.s8 %v2053
        %v2055 = vlaneseq
        %v2056 = vshrl.u32 %v2055, 7
        %v2057 = vsub.s32 %v2054, %v2056
        %v2058 = vrot.slane %v2044, %v2057
        %v2059 = vcombine.low %v2051, %v2058
        %v2060 = vcombine.low %v937, %v941
        %v2061 = vcombine.low %v945, %v949
        %v2062 = vcombine.low %v953, %v957
        %v2063 = vcombine.low %v961, %v965
        %v2065 = vunpack.c.l.s4 1966171168
        %v2066 = vunpack.c.0.s8 %v2065
        %v2067 = vlaneseq
        %v2068 = vshrl.u32 %v2067, 7
        %v2069 = vsub.s32 %v2066, %v2068
        %v2070 = vrot.slane %v2060, %v2069
        %v2072 = vunpack.c.l.s4 1966171168
        %v2073 = vunpack.c.0.s8 %v2072
        %v2074 = vlaneseq
        %v2075 = vshrl.u32 %v2074, 7
        %v2076 = vsub.s32 %v2073, %v2075
        %v2077 = vrot.slane %v2061, %v2076
        %v2079 = vunpack.c.l.s4 1966171168
        %v2080 = vunpack.c.0.s8 %v2079
        %v2081 = vlaneseq
        %v2082 = vshrl.u32 %v2081, 7
        %v2083 = vsub.s32 %v2080, %v2082
        %v2084 = vrot.slane %v2062, %v2083
        %v2086 = vunpack.c.l.s4 1966171168
        %v2087 = vunpack.c.0.s8 %v2086
        %v2088 = vlaneseq
        %v2089 = vshrl.u32 %v2088, 7
        %v2090 = vsub.s32 %v2087, %v2089
        %v2091 = vrot.slane %v2063, %v2090
        %v2092 = vcombine.low %v2070, %v2077
        %v2093 = vcombine.low %v2084, %v2091
        %v2095 = vunpack.c.l.s4 1966171168
        %v2096 = vunpack.c.0.s8 %v2095
        %v2097 = vlaneseq
        %v2098 = vshrl.u32 %v2097, 7
        %v2099 = vsub.s32 %v2096, %v2098
        %v2100 = vrot.slane %v2092, %v2099
        %v2102 = vunpack.c.l.s4 1966171168
        %v2103 = vunpack.c.0.s8 %v2102
        %v2104 = vlaneseq
        %v2105 = vshrl.u32 %v2104, 7
        %v2106 = vsub.s32 %v2103, %v2105
        %v2107 = vrot.slane %v2093, %v2106
        %v2108 = vcombine.low %v2100, %v2107
        %v2109 = vcombine.low %v969, %v973
        %v2110 = vcombine.low %v977, %v981
        %v2111 = vcombine.low %v985, %v989
        %v2112 = vcombine.low %v993, %v997
        %v2114 = vunpack.c.l.s4 1966171168
        %v2115 = vunpack.c.0.s8 %v2114
        %v2116 = vlaneseq
        %v2117 = vshrl.u32 %v2116, 7
        %v2118 = vsub.s32 %v2115, %v2117
        %v2119 = vrot.slane %v2109, %v2118
        %v2121 = vunpack.c.l.s4 1966171168
        %v2122 = vunpack.c.0.s8 %v2121
        %v2123 = vlaneseq
        %v2124 = vshrl.u32 %v2123, 7
        %v2125 = vsub.s32 %v2122, %v2124
        %v2126 = vrot.slane %v2110, %v2125
        %v2128 = vunpack.c.l.s4 1966171168
        %v2129 = vunpack.c.0.s8 %v2128
        %v2130 = vlaneseq
        %v2131 = vshrl.u32 %v2130, 7
        %v2132 = vsub.s32 %v2129, %v2131
        %v2133 = vrot.slane %v2111, %v2132
        %v2135 = vunpack.c.l.s4 1966171168
        %v2136 = vunpack.c.0.s8 %v2135
        %v2137 = vlaneseq
        %v2138 = vshrl.u32 %v2137, 7
        %v2139 = vsub.s32 %v2136, %v2138
        %v2140 = vrot.slane %v2112, %v2139
        %v2141 = vcombine.low %v2119, %v2126
        %v2142 = vcombine.low %v2133, %v2140
        %v2144 = vunpack.c.l.s4 1966171168
        %v2145 = vunpack.c.0.s8 %v2144
        %v2146 = vlaneseq
        %v2147 = vshrl.u32 %v2146, 7
        %v2148 = vsub.s32 %v2145, %v2147
        %v2149 = vrot.slane %v2141, %v2148
        %v2151 = vunpack.c.l.s4 1966171168
        %v2152 = vunpack.c.0.s8 %v2151
        %v2153 = vlaneseq
        %v2154 = vshrl.u32 %v2153, 7
        %v2155 = vsub.s32 %v2152, %v2154
        %v2156 = vrot.slane %v2142, %v2155
        %v2157 = vcombine.low %v2149, %v2156
        %v2158 = vcombine.low %v1001, %v1005
        %v2159 = vcombine.low %v1009, %v1013
        %v2160 = vcombine.low %v1017, %v1021
        %v2161 = vcombine.low %v1025, %v1029
        %v2163 = vunpack.c.l.s4 1966171168
        %v2164 = vunpack.c.0.s8 %v2163
        %v2165 = vlaneseq
        %v2166 = vshrl.u32 %v2165, 7
        %v2167 = vsub.s32 %v2164, %v2166
        %v2168 = vrot.slane %v2158, %v2167
        %v2170 = vunpack.c.l.s4 1966171168
        %v2171 = vunpack.c.0.s8 %v2170
        %v2172 = vlaneseq
        %v2173 = vshrl.u32 %v2172, 7
        %v2174 = vsub.s32 %v2171, %v2173
        %v2175 = vrot.slane %v2159, %v2174
        %v2177 = vunpack.c.l.s4 1966171168
        %v2178 = vunpack.c.0.s8 %v2177
        %v2179 = vlaneseq
        %v2180 = vshrl.u32 %v2179, 7
        %v2181 = vsub.s32 %v2178, %v2180
        %v2182 = vrot.slane %v2160, %v2181
        %v2184 = vunpack.c.l.s4 1966171168
        %v2185 = vunpack.c.0.s8 %v2184
        %v2186 = vlaneseq
        %v2187 = vshrl.u32 %v2186, 7
        %v2188 = vsub.s32 %v2185, %v2187
        %v2189 = vrot.slane %v2161, %v2188
        %v2190 = vcombine.low %v2168, %v2175
        %v2191 = vcombine.low %v2182, %v2189
        %v2193 = vunpack.c.l.s4 1966171168
        %v2194 = vunpack.c.0.s8 %v2193
        %v2195 = vlaneseq
        %v2196 = vshrl.u32 %v2195, 7
        %v2197 = vsub.s32 %v2194, %v2196
        %v2198 = vrot.slane %v2190, %v2197
        %v2200 = vunpack.c.l.s4 1966171168
        %v2201 = vunpack.c.0.s8 %v2200
        %v2202 = vlaneseq
        %v2203 = vshrl.u32 %v2202, 7
        %v2204 = vsub.s32 %v2201, %v2203
        %v2205 = vrot.slane %v2191, %v2204
        %v2206 = vcombine.low %v2198, %v2205
        %v2207 = vcombine.low %v1033, %v1037
        %v2208 = vcombine.low %v1041, %v1045
        %v2209 = vcombine.low %v1049, %v1053
        %v2210 = vcombine.low %v1057, %v1061
        %v2212 = vunpack.c.l.s4 1966171168
        %v2213 = vunpack.c.0.s8 %v2212
        %v2214 = vlaneseq
        %v2215 = vshrl.u32 %v2214, 7
        %v2216 = vsub.s32 %v2213, %v2215
        %v2217 = vrot.slane %v2207, %v2216
        %v2219 = vunpack.c.l.s4 1966171168
        %v2220 = vunpack.c.0.s8 %v2219
        %v2221 = vlaneseq
        %v2222 = vshrl.u32 %v2221, 7
        %v2223 = vsub.s32 %v2220, %v2222
        %v2224 = vrot.slane %v2208, %v2223
        %v2226 = vunpack.c.l.s4 1966171168
        %v2227 = vunpack.c.0.s8 %v2226
        %v2228 = vlaneseq
        %v2229 = vshrl.u32 %v2228, 7
        %v2230 = vsub.s32 %v2227, %v2229
        %v2231 = vrot.slane %v2209, %v2230
        %v2233 = vunpack.c.l.s4 1966171168
        %v2234 = vunpack.c.0.s8 %v2233
        %v2235 = vlaneseq
        %v2236 = vshrl.u32 %v2235, 7
        %v2237 = vsub.s32 %v2234, %v2236
        %v2238 = vrot.slane %v2210, %v2237
        %v2239 = vcombine.low %v2217, %v2224
        %v2240 = vcombine.low %v2231, %v2238
        %v2242 = vunpack.c.l.s4 1966171168
        %v2243 = vunpack.c.0.s8 %v2242
        %v2244 = vlaneseq
        %v2245 = vshrl.u32 %v2244, 7
        %v2246 = vsub.s32 %v2243, %v2245
        %v2247 = vrot.slane %v2239, %v2246
        %v2249 = vunpack.c.l.s4 1966171168
        %v2250 = vunpack.c.0.s8 %v2249
        %v2251 = vlaneseq
        %v2252 = vshrl.u32 %v2251, 7
        %v2253 = vsub.s32 %v2250, %v2252
        %v2254 = vrot.slane %v2240, %v2253
        %v2255 = vcombine.low %v2247, %v2254
        %v2256 = vcombine.low %v1065, %v1069
        %v2257 = vcombine.low %v1073, %v1077
        %v2258 = vcombine.low %v1081, %v1085
        %v2259 = vcombine.low %v1089, %v1093
        %v2261 = vunpack.c.l.s4 1966171168
        %v2262 = vunpack.c.0.s8 %v2261
        %v2263 = vlaneseq
        %v2264 = vshrl.u32 %v2263, 7
        %v2265 = vsub.s32 %v2262, %v2264
        %v2266 = vrot.slane %v2256, %v2265
        %v2268 = vunpack.c.l.s4 1966171168
        %v2269 = vunpack.c.0.s8 %v2268
        %v2270 = vlaneseq
        %v2271 = vshrl.u32 %v2270, 7
        %v2272 = vsub.s32 %v2269, %v2271
        %v2273 = vrot.slane %v2257, %v2272
        %v2275 = vunpack.c.l.s4 1966171168
        %v2276 = vunpack.c.0.s8 %v2275
        %v2277 = vlaneseq
        %v2278 = vshrl.u32 %v2277, 7
        %v2279 = vsub.s32 %v2276, %v2278
        %v2280 = vrot.slane %v2258, %v2279
        %v2282 = vunpack.c.l.s4 1966171168
        %v2283 = vunpack.c.0.s8 %v2282
        %v2284 = vlaneseq
        %v2285 = vshrl.u32 %v2284, 7
        %v2286 = vsub.s32 %v2283, %v2285
        %v2287 = vrot.slane %v2259, %v2286
        %v2288 = vcombine.low %v2266, %v2273
        %v2289 = vcombine.low %v2280, %v2287
        %v2291 = vunpack.c.l.s4 1966171168
        %v2292 = vunpack.c.0.s8 %v2291
        %v2293 = vlaneseq
        %v2294 = vshrl.u32 %v2293, 7
        %v2295 = vsub.s32 %v2292, %v2294
        %v2296 = vrot.slane %v2288, %v2295
        %v2298 = vunpack.c.l.s4 1966171168
        %v2299 = vunpack.c.0.s8 %v2298
        %v2300 = vlaneseq
        %v2301 = vshrl.u32 %v2300, 7
        %v2302 = vsub.s32 %v2299, %v2301
        %v2303 = vrot.slane %v2289, %v2302
        %v2304 = vcombine.low %v2296, %v2303
        %v2305 = vcombine.low %v1097, %v1101
        %v2306 = vcombine.low %v1105, %v1109
        %v2307 = vcombine.low %v1113, %v1117
        %v2308 = vcombine.low %v1121, %v1125
        %v2310 = vunpack.c.l.s4 1966171168
        %v2311 = vunpack.c.0.s8 %v2310
        %v2312 = vlaneseq
        %v2313 = vshrl.u32 %v2312, 7
        %v2314 = vsub.s32 %v2311, %v2313
        %v2315 = vrot.slane %v2305, %v2314
        %v2317 = vunpack.c.l.s4 1966171168
        %v2318 = vunpack.c.0.s8 %v2317
        %v2319 = vlaneseq
        %v2320 = vshrl.u32 %v2319, 7
        %v2321 = vsub.s32 %v2318, %v2320
        %v2322 = vrot.slane %v2306, %v2321
        %v2324 = vunpack.c.l.s4 1966171168
        %v2325 = vunpack.c.0.s8 %v2324
        %v2326 = vlaneseq
        %v2327 = vshrl.u32 %v2326, 7
        %v2328 = vsub.s32 %v2325, %v2327
        %v2329 = vrot.slane %v2307, %v2328
        %v2331 = vunpack.c.l.s4 1966171168
        %v2332 = vunpack.c.0.s8 %v2331
        %v2333 = vlaneseq
        %v2334 = vshrl.u32 %v2333, 7
        %v2335 = vsub.s32 %v2332, %v2334
        %v2336 = vrot.slane %v2308, %v2335
        %v2337 = vcombine.low %v2315, %v2322
        %v2338 = vcombine.low %v2329, %v2336
        %v2340 = vunpack.c.l.s4 1966171168
        %v2341 = vunpack.c.0.s8 %v2340
        %v2342 = vlaneseq
        %v2343 = vshrl.u32 %v2342, 7
        %v2344 = vsub.s32 %v2341, %v2343
        %v2345 = vrot.slane %v2337, %v2344
        %v2347 = vunpack.c.l.s4 1966171168
        %v2348 = vunpack.c.0.s8 %v2347
        %v2349 = vlaneseq
        %v2350 = vshrl.u32 %v2349, 7
        %v2351 = vsub.s32 %v2348, %v2350
        %v2352 = vrot.slane %v2338, %v2351
        %v2353 = vcombine.low %v2345, %v2352
        %v2354 = vcombine.low %v1129, %v1133
        %v2355 = vcombine.low %v1137, %v1141
        %v2356 = vcombine.low %v1145, %v1149
        %v2357 = vcombine.low %v1153, %v1157
        %v2359 = vunpack.c.l.s4 1966171168
        %v2360 = vunpack.c.0.s8 %v2359
        %v2361 = vlaneseq
        %v2362 = vshrl.u32 %v2361, 7
        %v2363 = vsub.s32 %v2360, %v2362
        %v2364 = vrot.slane %v2354, %v2363
        %v2366 = vunpack.c.l.s4 1966171168
        %v2367 = vunpack.c.0.s8 %v2366
        %v2368 = vlaneseq
        %v2369 = vshrl.u32 %v2368, 7
        %v2370 = vsub.s32 %v2367, %v2369
        %v2371 = vrot.slane %v2355, %v2370
        %v2373 = vunpack.c.l.s4 1966171168
        %v2374 = vunpack.c.0.s8 %v2373
        %v2375 = vlaneseq
        %v2376 = vshrl.u32 %v2375, 7
        %v2377 = vsub.s32 %v2374, %v2376
        %v2378 = vrot.slane %v2356, %v2377
        %v2380 = vunpack.c.l.s4 1966171168
        %v2381 = vunpack.c.0.s8 %v2380
        %v2382 = vlaneseq
        %v2383 = vshrl.u32 %v2382, 7
        %v2384 = vsub.s32 %v2381, %v2383
        %v2385 = vrot.slane %v2357, %v2384
        %v2386 = vcombine.low %v2364, %v2371
        %v2387 = vcombine.low %v2378, %v2385
        %v2389 = vunpack.c.l.s4 1966171168
        %v2390 = vunpack.c.0.s8 %v2389
        %v2391 = vlaneseq
        %v2392 = vshrl.u32 %v2391, 7
        %v2393 = vsub.s32 %v2390, %v2392
        %v2394 = vrot.slane %v2386, %v2393
        %v2396 = vunpack.c.l.s4 1966171168
        %v2397 = vunpack.c.0.s8 %v2396
        %v2398 = vlaneseq
        %v2399 = vshrl.u32 %v2398, 7
        %v2400 = vsub.s32 %v2397, %v2399
        %v2401 = vrot.slane %v2387, %v2400
        %v2402 = vcombine.low %v2394, %v2401
        %v2403 = vcombine.low %v1161, %v1165
        %v2404 = vcombine.low %v1169, %v1173
        %v2405 = vcombine.low %v1177, %v1181
        %v2406 = vcombine.low %v1185, %v1189
        %v2408 = vunpack.c.l.s4 1966171168
        %v2409 = vunpack.c.0.s8 %v2408
        %v2410 = vlaneseq
        %v2411 = vshrl.u32 %v2410, 7
        %v2412 = vsub.s32 %v2409, %v2411
        %v2413 = vrot.slane %v2403, %v2412
        %v2415 = vunpack.c.l.s4 1966171168
        %v2416 = vunpack.c.0.s8 %v2415
        %v2417 = vlaneseq
        %v2418 = vshrl.u32 %v2417, 7
        %v2419 = vsub.s32 %v2416, %v2418
        %v2420 = vrot.slane %v2404, %v2419
        %v2422 = vunpack.c.l.s4 1966171168
        %v2423 = vunpack.c.0.s8 %v2422
        %v2424 = vlaneseq
        %v2425 = vshrl.u32 %v2424, 7
        %v2426 = vsub.s32 %v2423, %v2425
        %v2427 = vrot.slane %v2405, %v2426
        %v2429 = vunpack.c.l.s4 1966171168
        %v2430 = vunpack.c.0.s8 %v2429
        %v2431 = vlaneseq
        %v2432 = vshrl.u32 %v2431, 7
        %v2433 = vsub.s32 %v2430, %v2432
        %v2434 = vrot.slane %v2406, %v2433
        %v2435 = vcombine.low %v2413, %v2420
        %v2436 = vcombine.low %v2427, %v2434
        %v2438 = vunpack.c.l.s4 1966171168
        %v2439 = vunpack.c.0.s8 %v2438
        %v2440 = vlaneseq
        %v2441 = vshrl.u32 %v2440, 7
        %v2442 = vsub.s32 %v2439, %v2441
        %v2443 = vrot.slane %v2435, %v2442
        %v2445 = vunpack.c.l.s4 1966171168
        %v2446 = vunpack.c.0.s8 %v2445
        %v2447 = vlaneseq
        %v2448 = vshrl.u32 %v2447, 7
        %v2449 = vsub.s32 %v2446, %v2448
        %v2450 = vrot.slane %v2436, %v2449
        %v2451 = vcombine.low %v2443, %v2450
        %v2452 = vcombine.low %v1193, %v1197
        %v2453 = vcombine.low %v1201, %v1205
        %v2454 = vcombine.low %v1209, %v1213
        %v2455 = vcombine.low %v1217, %v1221
        %v2457 = vunpack.c.l.s4 1966171168
        %v2458 = vunpack.c.0.s8 %v2457
        %v2459 = vlaneseq
        %v2460 = vshrl.u32 %v2459, 7
        %v2461 = vsub.s32 %v2458, %v2460
        %v2462 = vrot.slane %v2452, %v2461
        %v2464 = vunpack.c.l.s4 1966171168
        %v2465 = vunpack.c.0.s8 %v2464
        %v2466 = vlaneseq
        %v2467 = vshrl.u32 %v2466, 7
        %v2468 = vsub.s32 %v2465, %v2467
        %v2469 = vrot.slane %v2453, %v2468
        %v2471 = vunpack.c.l.s4 1966171168
        %v2472 = vunpack.c.0.s8 %v2471
        %v2473 = vlaneseq
        %v2474 = vshrl.u32 %v2473, 7
        %v2475 = vsub.s32 %v2472, %v2474
        %v2476 = vrot.slane %v2454, %v2475
        %v2478 = vunpack.c.l.s4 1966171168
        %v2479 = vunpack.c.0.s8 %v2478
        %v2480 = vlaneseq
        %v2481 = vshrl.u32 %v2480, 7
        %v2482 = vsub.s32 %v2479, %v2481
        %v2483 = vrot.slane %v2455, %v2482
        %v2484 = vcombine.low %v2462, %v2469
        %v2485 = vcombine.low %v2476, %v2483
        %v2487 = vunpack.c.l.s4 1966171168
        %v2488 = vunpack.c.0.s8 %v2487
        %v2489 = vlaneseq
        %v2490 = vshrl.u32 %v2489, 7
        %v2491 = vsub.s32 %v2488, %v2490
        %v2492 = vrot.slane %v2484, %v2491
        %v2494 = vunpack.c.l.s4 1966171168
        %v2495 = vunpack.c.0.s8 %v2494
        %v2496 = vlaneseq
        %v2497 = vshrl.u32 %v2496, 7
        %v2498 = vsub.s32 %v2495, %v2497
        %v2499 = vrot.slane %v2485, %v2498
        %v2500 = vcombine.low %v2492, %v2499
        %v2501 = vcombine.low %v1225, %v1229
        %v2502 = vcombine.low %v1233, %v1237
        %v2503 = vcombine.low %v1241, %v1245
        %v2504 = vcombine.low %v1249, %v1253
        %v2506 = vunpack.c.l.s4 1966171168
        %v2507 = vunpack.c.0.s8 %v2506
        %v2508 = vlaneseq
        %v2509 = vshrl.u32 %v2508, 7
        %v2510 = vsub.s32 %v2507, %v2509
        %v2511 = vrot.slane %v2501, %v2510
        %v2513 = vunpack.c.l.s4 1966171168
        %v2514 = vunpack.c.0.s8 %v2513
        %v2515 = vlaneseq
        %v2516 = vshrl.u32 %v2515, 7
        %v2517 = vsub.s32 %v2514, %v2516
        %v2518 = vrot.slane %v2502, %v2517
        %v2520 = vunpack.c.l.s4 1966171168
        %v2521 = vunpack.c.0.s8 %v2520
        %v2522 = vlaneseq
        %v2523 = vshrl.u32 %v2522, 7
        %v2524 = vsub.s32 %v2521, %v2523
        %v2525 = vrot.slane %v2503, %v2524
        %v2527 = vunpack.c.l.s4 1966171168
        %v2528 = vunpack.c.0.s8 %v2527
        %v2529 = vlaneseq
        %v2530 = vshrl.u32 %v2529, 7
        %v2531 = vsub.s32 %v2528, %v2530
        %v2532 = vrot.slane %v2504, %v2531
        %v2533 = vcombine.low %v2511, %v2518
        %v2534 = vcombine.low %v2525, %v2532
        %v2536 = vunpack.c.l.s4 1966171168
        %v2537 = vunpack.c.0.s8 %v2536
        %v2538 = vlaneseq
        %v2539 = vshrl.u32 %v2538, 7
        %v2540 = vsub.s32 %v2537, %v2539
        %v2541 = vrot.slane %v2533, %v2540
        %v2543 = vunpack.c.l.s4 1966171168
        %v2544 = vunpack.c.0.s8 %v2543
        %v2545 = vlaneseq
        %v2546 = vshrl.u32 %v2545, 7
        %v2547 = vsub.s32 %v2544, %v2546
        %v2548 = vrot.slane %v2534, %v2547
        %v2549 = vcombine.low %v2541, %v2548
        %v2550 = vcombine.low %v1257, %v1261
        %v2551 = vcombine.low %v1265, %v1269
        %v2552 = vcombine.low %v1273, %v1277
        %v2553 = vcombine.low %v1281, %v1285
        %v2555 = vunpack.c.l.s4 1966171168
        %v2556 = vunpack.c.0.s8 %v2555
        %v2557 = vlaneseq
        %v2558 = vshrl.u32 %v2557, 7
        %v2559 = vsub.s32 %v2556, %v2558
        %v2560 = vrot.slane %v2550, %v2559
        %v2562 = vunpack.c.l.s4 1966171168
        %v2563 = vunpack.c.0.s8 %v2562
        %v2564 = vlaneseq
        %v2565 = vshrl.u32 %v2564, 7
        %v2566 = vsub.s32 %v2563, %v2565
        %v2567 = vrot.slane %v2551, %v2566
        %v2569 = vunpack.c.l.s4 1966171168
        %v2570 = vunpack.c.0.s8 %v2569
        %v2571 = vlaneseq
        %v2572 = vshrl.u32 %v2571, 7
        %v2573 = vsub.s32 %v2570, %v2572
        %v2574 = vrot.slane %v2552, %v2573
        %v2576 = vunpack.c.l.s4 1966171168
        %v2577 = vunpack.c.0.s8 %v2576
        %v2578 = vlaneseq
        %v2579 = vshrl.u32 %v2578, 7
        %v2580 = vsub.s32 %v2577, %v2579
        %v2581 = vrot.slane %v2553, %v2580
        %v2582 = vcombine.low %v2560, %v2567
        %v2583 = vcombine.low %v2574, %v2581
        %v2585 = vunpack.c.l.s4 1966171168
        %v2586 = vunpack.c.0.s8 %v2585
        %v2587 = vlaneseq
        %v2588 = vshrl.u32 %v2587, 7
        %v2589 = vsub.s32 %v2586, %v2588
        %v2590 = vrot.slane %v2582, %v2589
        %v2592 = vunpack.c.l.s4 1966171168
        %v2593 = vunpack.c.0.s8 %v2592
        %v2594 = vlaneseq
        %v2595 = vshrl.u32 %v2594, 7
        %v2596 = vsub.s32 %v2593, %v2595
        %v2597 = vrot.slane %v2583, %v2596
        %v2598 = vcombine.low %v2590, %v2597
        %v2599 = vcombine.low %v1289, %v1293
        %v2600 = vcombine.low %v1297, %v1301
        %v2601 = vcombine.low %v1305, %v1309
        %v2602 = vcombine.low %v1313, %v1317
        %v2604 = vunpack.c.l.s4 1966171168
        %v2605 = vunpack.c.0.s8 %v2604
        %v2606 = vlaneseq
        %v2607 = vshrl.u32 %v2606, 7
        %v2608 = vsub.s32 %v2605, %v2607
        %v2609 = vrot.slane %v2599, %v2608
        %v2611 = vunpack.c.l.s4 1966171168
        %v2612 = vunpack.c.0.s8 %v2611
        %v2613 = vlaneseq
        %v2614 = vshrl.u32 %v2613, 7
        %v2615 = vsub.s32 %v2612, %v2614
        %v2616 = vrot.slane %v2600, %v2615
        %v2618 = vunpack.c.l.s4 1966171168
        %v2619 = vunpack.c.0.s8 %v2618
        %v2620 = vlaneseq
        %v2621 = vshrl.u32 %v2620, 7
        %v2622 = vsub.s32 %v2619, %v2621
        %v2623 = vrot.slane %v2601, %v2622
        %v2625 = vunpack.c.l.s4 1966171168
        %v2626 = vunpack.c.0.s8 %v2625
        %v2627 = vlaneseq
        %v2628 = vshrl.u32 %v2627, 7
        %v2629 = vsub.s32 %v2626, %v2628
        %v2630 = vrot.slane %v2602, %v2629
        %v2631 = vcombine.low %v2609, %v2616
        %v2632 = vcombine.low %v2623, %v2630
        %v2634 = vunpack.c.l.s4 1966171168
        %v2635 = vunpack.c.0.s8 %v2634
        %v2636 = vlaneseq
        %v2637 = vshrl.u32 %v2636, 7
        %v2638 = vsub.s32 %v2635, %v2637
        %v2639 = vrot.slane %v2631, %v2638
        %v2641 = vunpack.c.l.s4 1966171168
        %v2642 = vunpack.c.0.s8 %v2641
        %v2643 = vlaneseq
        %v2644 = vshrl.u32 %v2643, 7
        %v2645 = vsub.s32 %v2642, %v2644
        %v2646 = vrot.slane %v2632, %v2645
        %v2647 = vcombine.low %v2639, %v2646
        %v2648 = vcombine.low %v1321, %v1325
        %v2649 = vcombine.low %v1329, %v1333
        %v2650 = vcombine.low %v1337, %v1341
        %v2651 = vcombine.low %v1345, %v1349
        %v2653 = vunpack.c.l.s4 1966171168
        %v2654 = vunpack.c.0.s8 %v2653
        %v2655 = vlaneseq
        %v2656 = vshrl.u32 %v2655, 7
        %v2657 = vsub.s32 %v2654, %v2656
        %v2658 = vrot.slane %v2648, %v2657
        %v2660 = vunpack.c.l.s4 1966171168
        %v2661 = vunpack.c.0.s8 %v2660
        %v2662 = vlaneseq
        %v2663 = vshrl.u32 %v2662, 7
        %v2664 = vsub.s32 %v2661, %v2663
        %v2665 = vrot.slane %v2649, %v2664
        %v2667 = vunpack.c.l.s4 1966171168
        %v2668 = vunpack.c.0.s8 %v2667
        %v2669 = vlaneseq
        %v2670 = vshrl.u32 %v2669, 7
        %v2671 = vsub.s32 %v2668, %v2670
        %v2672 = vrot.slane %v2650, %v2671
        %v2674 = vunpack.c.l.s4 1966171168
        %v2675 = vunpack.c.0.s8 %v2674
        %v2676 = vlaneseq
        %v2677 = vshrl.u32 %v2676, 7
        %v2678 = vsub.s32 %v2675, %v2677
        %v2679 = vrot.slane %v2651, %v2678
        %v2680 = vcombine.low %v2658, %v2665
        %v2681 = vcombine.low %v2672, %v2679
        %v2683 = vunpack.c.l.s4 1966171168
        %v2684 = vunpack.c.0.s8 %v2683
        %v2685 = vlaneseq
        %v2686 = vshrl.u32 %v2685, 7
        %v2687 = vsub.s32 %v2684, %v2686
        %v2688 = vrot.slane %v2680, %v2687
        %v2690 = vunpack.c.l.s4 1966171168
        %v2691 = vunpack.c.0.s8 %v2690
        %v2692 = vlaneseq
        %v2693 = vshrl.u32 %v2692, 7
        %v2694 = vsub.s32 %v2691, %v2693
        %v2695 = vrot.slane %v2681, %v2694
        %v2696 = vcombine.low %v2688, %v2695
        %v2697 = vcombine.low %v1353, %v1357
        %v2698 = vcombine.low %v1361, %v1365
        %v2699 = vcombine.low %v1369, %v1373
        %v2700 = vcombine.low %v1377, %v1381
        %v2702 = vunpack.c.l.s4 1966171168
        %v2703 = vunpack.c.0.s8 %v2702
        %v2704 = vlaneseq
        %v2705 = vshrl.u32 %v2704, 7
        %v2706 = vsub.s32 %v2703, %v2705
        %v2707 = vrot.slane %v2697, %v2706
        %v2709 = vunpack.c.l.s4 1966171168
        %v2710 = vunpack.c.0.s8 %v2709
        %v2711 = vlaneseq
        %v2712 = vshrl.u32 %v2711, 7
        %v2713 = vsub.s32 %v2710, %v2712
        %v2714 = vrot.slane %v2698, %v2713
        %v2716 = vunpack.c.l.s4 1966171168
        %v2717 = vunpack.c.0.s8 %v2716
        %v2718 = vlaneseq
        %v2719 = vshrl.u32 %v2718, 7
        %v2720 = vsub.s32 %v2717, %v2719
        %v2721 = vrot.slane %v2699, %v2720
        %v2723 = vunpack.c.l.s4 1966171168
        %v2724 = vunpack.c.0.s8 %v2723
        %v2725 = vlaneseq
        %v2726 = vshrl.u32 %v2725, 7
        %v2727 = vsub.s32 %v2724, %v2726
        %v2728 = vrot.slane %v2700, %v2727
        %v2729 = vcombine.low %v2707, %v2714
        %v2730 = vcombine.low %v2721, %v2728
        %v2732 = vunpack.c.l.s4 1966171168
        %v2733 = vunpack.c.0.s8 %v2732
        %v2734 = vlaneseq
        %v2735 = vshrl.u32 %v2734, 7
        %v2736 = vsub.s32 %v2733, %v2735
        %v2737 = vrot.slane %v2729, %v2736
        %v2739 = vunpack.c.l.s4 1966171168
        %v2740 = vunpack.c.0.s8 %v2739
        %v2741 = vlaneseq
        %v2742 = vshrl.u32 %v2741, 7
        %v2743 = vsub.s32 %v2740, %v2742
        %v2744 = vrot.slane %v2730, %v2743
        %v2745 = vcombine.low %v2737, %v2744
        %v2746 = vcombine.low %v1385, %v1389
        %v2747 = vcombine.low %v1393, %v1397
        %v2748 = vcombine.low %v1401, %v1405
        %v2749 = vcombine.low %v1409, %v1413
        %v2751 = vunpack.c.l.s4 1966171168
        %v2752 = vunpack.c.0.s8 %v2751
        %v2753 = vlaneseq
        %v2754 = vshrl.u32 %v2753, 7
        %v2755 = vsub.s32 %v2752, %v2754
        %v2756 = vrot.slane %v2746, %v2755
        %v2758 = vunpack.c.l.s4 1966171168
        %v2759 = vunpack.c.0.s8 %v2758
        %v2760 = vlaneseq
        %v2761 = vshrl.u32 %v2760, 7
        %v2762 = vsub.s32 %v2759, %v2761
        %v2763 = vrot.slane %v2747, %v2762
        %v2765 = vunpack.c.l.s4 1966171168
        %v2766 = vunpack.c.0.s8 %v2765
        %v2767 = vlaneseq
        %v2768 = vshrl.u32 %v2767, 7
        %v2769 = vsub.s32 %v2766, %v2768
        %v2770 = vrot.slane %v2748, %v2769
        %v2772 = vunpack.c.l.s4 1966171168
        %v2773 = vunpack.c.0.s8 %v2772
        %v2774 = vlaneseq
        %v2775 = vshrl.u32 %v2774, 7
        %v2776 = vsub.s32 %v2773, %v2775
        %v2777 = vrot.slane %v2749, %v2776
        %v2778 = vcombine.low %v2756, %v2763
        %v2779 = vcombine.low %v2770, %v2777
        %v2781 = vunpack.c.l.s4 1966171168
        %v2782 = vunpack.c.0.s8 %v2781
        %v2783 = vlaneseq
        %v2784 = vshrl.u32 %v2783, 7
        %v2785 = vsub.s32 %v2782, %v2784
        %v2786 = vrot.slane %v2778, %v2785
        %v2788 = vunpack.c.l.s4 1966171168
        %v2789 = vunpack.c.0.s8 %v2788
        %v2790 = vlaneseq
        %v2791 = vshrl.u32 %v2790, 7
        %v2792 = vsub.s32 %v2789, %v2791
        %v2793 = vrot.slane %v2779, %v2792
        %v2794 = vcombine.low %v2786, %v2793
        %v2795 = vcombine.low %v1417, %v1421
        %v2796 = vcombine.low %v1425, %v1429
        %v2797 = vcombine.low %v1433, %v1437
        %v2798 = vcombine.low %v1441, %v1445
        %v2800 = vunpack.c.l.s4 1966171168
        %v2801 = vunpack.c.0.s8 %v2800
        %v2802 = vlaneseq
        %v2803 = vshrl.u32 %v2802, 7
        %v2804 = vsub.s32 %v2801, %v2803
        %v2805 = vrot.slane %v2795, %v2804
        %v2807 = vunpack.c.l.s4 1966171168
        %v2808 = vunpack.c.0.s8 %v2807
        %v2809 = vlaneseq
        %v2810 = vshrl.u32 %v2809, 7
        %v2811 = vsub.s32 %v2808, %v2810
        %v2812 = vrot.slane %v2796, %v2811
        %v2814 = vunpack.c.l.s4 1966171168
        %v2815 = vunpack.c.0.s8 %v2814
        %v2816 = vlaneseq
        %v2817 = vshrl.u32 %v2816, 7
        %v2818 = vsub.s32 %v2815, %v2817
        %v2819 = vrot.slane %v2797, %v2818
        %v2821 = vunpack.c.l.s4 1966171168
        %v2822 = vunpack.c.0.s8 %v2821
        %v2823 = vlaneseq
        %v2824 = vshrl.u32 %v2823, 7
        %v2825 = vsub.s32 %v2822, %v2824
        %v2826 = vrot.slane %v2798, %v2825
        %v2827 = vcombine.low %v2805, %v2812
        %v2828 = vcombine.low %v2819, %v2826
        %v2830 = vunpack.c.l.s4 1966171168
        %v2831 = vunpack.c.0.s8 %v2830
        %v2832 = vlaneseq
        %v2833 = vshrl.u32 %v2832, 7
        %v2834 = vsub.s32 %v2831, %v2833
        %v2835 = vrot.slane %v2827, %v2834
        %v2837 = vunpack.c.l.s4 1966171168
        %v2838 = vunpack.c.0.s8 %v2837
        %v2839 = vlaneseq
        %v2840 = vshrl.u32 %v2839, 7
        %v2841 = vsub.s32 %v2838, %v2840
        %v2842 = vrot.slane %v2828, %v2841
        %v2843 = vcombine.low %v2835, %v2842
        %v2844 = vcombine.low %v1449, %v1453
        %v2845 = vcombine.low %v1457, %v1461
        %v2846 = vcombine.low %v1465, %v1469
        %v2847 = vcombine.low %v1473, %v1477
        %v2849 = vunpack.c.l.s4 1966171168
        %v2850 = vunpack.c.0.s8 %v2849
        %v2851 = vlaneseq
        %v2852 = vshrl.u32 %v2851, 7
        %v2853 = vsub.s32 %v2850, %v2852
        %v2854 = vrot.slane %v2844, %v2853
        %v2856 = vunpack.c.l.s4 1966171168
        %v2857 = vunpack.c.0.s8 %v2856
        %v2858 = vlaneseq
        %v2859 = vshrl.u32 %v2858, 7
        %v2860 = vsub.s32 %v2857, %v2859
        %v2861 = vrot.slane %v2845, %v2860
        %v2863 = vunpack.c.l.s4 1966171168
        %v2864 = vunpack.c.0.s8 %v2863
        %v2865 = vlaneseq
        %v2866 = vshrl.u32 %v2865, 7
        %v2867 = vsub.s32 %v2864, %v2866
        %v2868 = vrot.slane %v2846, %v2867
        %v2870 = vunpack.c.l.s4 1966171168
        %v2871 = vunpack.c.0.s8 %v2870
        %v2872 = vlaneseq
        %v2873 = vshrl.u32 %v2872, 7
        %v2874 = vsub.s32 %v2871, %v2873
        %v2875 = vrot.slane %v2847, %v2874
        %v2876 = vcombine.low %v2854, %v2861
        %v2877 = vcombine.low %v2868, %v2875
        %v2879 = vunpack.c.l.s4 1966171168
        %v2880 = vunpack.c.0.s8 %v2879
        %v2881 = vlaneseq
        %v2882 = vshrl.u32 %v2881, 7
        %v2883 = vsub.s32 %v2880, %v2882
        %v2884 = vrot.slane %v2876, %v2883
        %v2886 = vunpack.c.l.s4 1966171168
        %v2887 = vunpack.c.0.s8 %v2886
        %v2888 = vlaneseq
        %v2889 = vshrl.u32 %v2888, 7
        %v2890 = vsub.s32 %v2887, %v2889
        %v2891 = vrot.slane %v2877, %v2890
        %v2892 = vcombine.low %v2884, %v2891
        %v2893 = vcombine.low %v1481, %v1485
        %v2894 = vcombine.low %v1489, %v1493
        %v2895 = vcombine.low %v1497, %v1501
        %v2896 = vcombine.low %v1505, %v1509
        %v2898 = vunpack.c.l.s4 1966171168
        %v2899 = vunpack.c.0.s8 %v2898
        %v2900 = vlaneseq
        %v2901 = vshrl.u32 %v2900, 7
        %v2902 = vsub.s32 %v2899, %v2901
        %v2903 = vrot.slane %v2893, %v2902
        %v2905 = vunpack.c.l.s4 1966171168
        %v2906 = vunpack.c.0.s8 %v2905
        %v2907 = vlaneseq
        %v2908 = vshrl.u32 %v2907, 7
        %v2909 = vsub.s32 %v2906, %v2908
        %v2910 = vrot.slane %v2894, %v2909
        %v2912 = vunpack.c.l.s4 1966171168
        %v2913 = vunpack.c.0.s8 %v2912
        %v2914 = vlaneseq
        %v2915 = vshrl.u32 %v2914, 7
        %v2916 = vsub.s32 %v2913, %v2915
        %v2917 = vrot.slane %v2895, %v2916
        %v2919 = vunpack.c.l.s4 1966171168
        %v2920 = vunpack.c.0.s8 %v2919
        %v2921 = vlaneseq
        %v2922 = vshrl.u32 %v2921, 7
        %v2923 = vsub.s32 %v2920, %v2922
        %v2924 = vrot.slane %v2896, %v2923
        %v2925 = vcombine.low %v2903, %v2910
        %v2926 = vcombine.low %v2917, %v2924
        %v2928 = vunpack.c.l.s4 1966171168
        %v2929 = vunpack.c.0.s8 %v2928
        %v2930 = vlaneseq
        %v2931 = vshrl.u32 %v2930, 7
        %v2932 = vsub.s32 %v2929, %v2931
        %v2933 = vrot.slane %v2925, %v2932
        %v2935 = vunpack.c.l.s4 1966171168
        %v2936 = vunpack.c.0.s8 %v2935
        %v2937 = vlaneseq
        %v2938 = vshrl.u32 %v2937, 7
        %v2939 = vsub.s32 %v2936, %v2938
        %v2940 = vrot.slane %v2926, %v2939
        %v2941 = vcombine.low %v2933, %v2940
        %v2942 = vcombine.low %v1513, %v1517
        %v2943 = vcombine.low %v1521, %v1525
        %v2944 = vcombine.low %v1529, %v1533
        %v2945 = vcombine.low %v1537, %v1541
        %v2947 = vunpack.c.l.s4 1966171168
        %v2948 = vunpack.c.0.s8 %v2947
        %v2949 = vlaneseq
        %v2950 = vshrl.u32 %v2949, 7
        %v2951 = vsub.s32 %v2948, %v2950
        %v2952 = vrot.slane %v2942, %v2951
        %v2954 = vunpack.c.l.s4 1966171168
        %v2955 = vunpack.c.0.s8 %v2954
        %v2956 = vlaneseq
        %v2957 = vshrl.u32 %v2956, 7
        %v2958 = vsub.s32 %v2955, %v2957
        %v2959 = vrot.slane %v2943, %v2958
        %v2961 = vunpack.c.l.s4 1966171168
        %v2962 = vunpack.c.0.s8 %v2961
        %v2963 = vlaneseq
        %v2964 = vshrl.u32 %v2963, 7
        %v2965 = vsub.s32 %v2962, %v2964
        %v2966 = vrot.slane %v2944, %v2965
        %v2968 = vunpack.c.l.s4 1966171168
        %v2969 = vunpack.c.0.s8 %v2968
        %v2970 = vlaneseq
        %v2971 = vshrl.u32 %v2970, 7
        %v2972 = vsub.s32 %v2969, %v2971
        %v2973 = vrot.slane %v2945, %v2972
        %v2974 = vcombine.low %v2952, %v2959
        %v2975 = vcombine.low %v2966, %v2973
        %v2977 = vunpack.c.l.s4 1966171168
        %v2978 = vunpack.c.0.s8 %v2977
        %v2979 = vlaneseq
        %v2980 = vshrl.u32 %v2979, 7
        %v2981 = vsub.s32 %v2978, %v2980
        %v2982 = vrot.slane %v2974, %v2981
        %v2984 = vunpack.c.l.s4 1966171168
        %v2985 = vunpack.c.0.s8 %v2984
        %v2986 = vlaneseq
        %v2987 = vshrl.u32 %v2986, 7
        %v2988 = vsub.s32 %v2985, %v2987
        %v2989 = vrot.slane %v2975, %v2988
        %v2990 = vcombine.low %v2982, %v2989
        %v2991 = vcombine.low %v1545, %v1549
        %v2992 = vcombine.low %v1553, %v1557
        %v2993 = vcombine.low %v1561, %v1565
        %v2994 = vcombine.low %v1569, %v1573
        %v2996 = vunpack.c.l.s4 1966171168
        %v2997 = vunpack.c.0.s8 %v2996
        %v2998 = vlaneseq
        %v2999 = vshrl.u32 %v2998, 7
        %v3000 = vsub.s32 %v2997, %v2999
        %v3001 = vrot.slane %v2991, %v3000
        %v3003 = vunpack.c.l.s4 1966171168
        %v3004 = vunpack.c.0.s8 %v3003
        %v3005 = vlaneseq
        %v3006 = vshrl.u32 %v3005, 7
        %v3007 = vsub.s32 %v3004, %v3006
        %v3008 = vrot.slane %v2992, %v3007
        %v3010 = vunpack.c.l.s4 1966171168
        %v3011 = vunpack.c.0.s8 %v3010
        %v3012 = vlaneseq
        %v3013 = vshrl.u32 %v3012, 7
        %v3014 = vsub.s32 %v3011, %v3013
        %v3015 = vrot.slane %v2993, %v3014
        %v3017 = vunpack.c.l.s4 1966171168
        %v3018 = vunpack.c.0.s8 %v3017
        %v3019 = vlaneseq
        %v3020 = vshrl.u32 %v3019, 7
        %v3021 = vsub.s32 %v3018, %v3020
        %v3022 = vrot.slane %v2994, %v3021
        %v3023 = vcombine.low %v3001, %v3008
        %v3024 = vcombine.low %v3015, %v3022
        %v3026 = vunpack.c.l.s4 1966171168
        %v3027 = vunpack.c.0.s8 %v3026
        %v3028 = vlaneseq
        %v3029 = vshrl.u32 %v3028, 7
        %v3030 = vsub.s32 %v3027, %v3029
        %v3031 = vrot.slane %v3023, %v3030
        %v3033 = vunpack.c.l.s4 1966171168
        %v3034 = vunpack.c.0.s8 %v3033
        %v3035 = vlaneseq
        %v3036 = vshrl.u32 %v3035, 7
        %v3037 = vsub.s32 %v3034, %v3036
        %v3038 = vrot.slane %v3024, %v3037
        %v3039 = vcombine.low %v3031, %v3038
        %v3040 = vcombine.low %v1577, %v1581
        %v3041 = vcombine.low %v1585, %v1589
        %v3042 = vcombine.low %v1593, %v1597
        %v3043 = vcombine.low %v1601, %v1605
        %v3045 = vunpack.c.l.s4 1966171168
        %v3046 = vunpack.c.0.s8 %v3045
        %v3047 = vlaneseq
        %v3048 = vshrl.u32 %v3047, 7
        %v3049 = vsub.s32 %v3046, %v3048
        %v3050 = vrot.slane %v3040, %v3049
        %v3052 = vunpack.c.l.s4 1966171168
        %v3053 = vunpack.c.0.s8 %v3052
        %v3054 = vlaneseq
        %v3055 = vshrl.u32 %v3054, 7
        %v3056 = vsub.s32 %v3053, %v3055
        %v3057 = vrot.slane %v3041, %v3056
        %v3059 = vunpack.c.l.s4 1966171168
        %v3060 = vunpack.c.0.s8 %v3059
        %v3061 = vlaneseq
        %v3062 = vshrl.u32 %v3061, 7
        %v3063 = vsub.s32 %v3060, %v3062
        %v3064 = vrot.slane %v3042, %v3063
        %v3066 = vunpack.c.l.s4 1966171168
        %v3067 = vunpack.c.0.s8 %v3066
        %v3068 = vlaneseq
        %v3069 = vshrl.u32 %v3068, 7
        %v3070 = vsub.s32 %v3067, %v3069
        %v3071 = vrot.slane %v3043, %v3070
        %v3072 = vcombine.low %v3050, %v3057
        %v3073 = vcombine.low %v3064, %v3071
        %v3075 = vunpack.c.l.s4 1966171168
        %v3076 = vunpack.c.0.s8 %v3075
        %v3077 = vlaneseq
        %v3078 = vshrl.u32 %v3077, 7
        %v3079 = vsub.s32 %v3076, %v3078
        %v3080 = vrot.slane %v3072, %v3079
        %v3082 = vunpack.c.l.s4 1966171168
        %v3083 = vunpack.c.0.s8 %v3082
        %v3084 = vlaneseq
        %v3085 = vshrl.u32 %v3084, 7
        %v3086 = vsub.s32 %v3083, %v3085
        %v3087 = vrot.slane %v3073, %v3086
        %v3088 = vcombine.low %v3080, %v3087
        %v3089 = vcombine.low %v1609, %v1613
        %v3090 = vcombine.low %v1617, %v1621
        %v3091 = vcombine.low %v1625, %v1629
        %v3092 = vcombine.low %v1633, %v1637
        %v3094 = vunpack.c.l.s4 1966171168
        %v3095 = vunpack.c.0.s8 %v3094
        %v3096 = vlaneseq
        %v3097 = vshrl.u32 %v3096, 7
        %v3098 = vsub.s32 %v3095, %v3097
        %v3099 = vrot.slane %v3089, %v3098
        %v3101 = vunpack.c.l.s4 1966171168
        %v3102 = vunpack.c.0.s8 %v3101
        %v3103 = vlaneseq
        %v3104 = vshrl.u32 %v3103, 7
        %v3105 = vsub.s32 %v3102, %v3104
        %v3106 = vrot.slane %v3090, %v3105
        %v3108 = vunpack.c.l.s4 1966171168
        %v3109 = vunpack.c.0.s8 %v3108
        %v3110 = vlaneseq
        %v3111 = vshrl.u32 %v3110, 7
        %v3112 = vsub.s32 %v3109, %v3111
        %v3113 = vrot.slane %v3091, %v3112
        %v3115 = vunpack.c.l.s4 1966171168
        %v3116 = vunpack.c.0.s8 %v3115
        %v3117 = vlaneseq
        %v3118 = vshrl.u32 %v3117, 7
        %v3119 = vsub.s32 %v3116, %v3118
        %v3120 = vrot.slane %v3092, %v3119
        %v3121 = vcombine.low %v3099, %v3106
        %v3122 = vcombine.low %v3113, %v3120
        %v3124 = vunpack.c.l.s4 1966171168
        %v3125 = vunpack.c.0.s8 %v3124
        %v3126 = vlaneseq
        %v3127 = vshrl.u32 %v3126, 7
        %v3128 = vsub.s32 %v3125, %v3127
        %v3129 = vrot.slane %v3121, %v3128
        %v3131 = vunpack.c.l.s4 1966171168
        %v3132 = vunpack.c.0.s8 %v3131
        %v3133 = vlaneseq
        %v3134 = vshrl.u32 %v3133, 7
        %v3135 = vsub.s32 %v3132, %v3134
        %v3136 = vrot.slane %v3122, %v3135
        %v3137 = vcombine.low %v3129, %v3136
        %v3138 = vcombine.low %v1641, %v1645
        %v3139 = vcombine.low %v1649, %v1653
        %v3140 = vcombine.low %v1657, %v1661
        %v3141 = vcombine.low %v1665, %v1669
        %v3143 = vunpack.c.l.s4 1966171168
        %v3144 = vunpack.c.0.s8 %v3143
        %v3145 = vlaneseq
        %v3146 = vshrl.u32 %v3145, 7
        %v3147 = vsub.s32 %v3144, %v3146
        %v3148 = vrot.slane %v3138, %v3147
        %v3150 = vunpack.c.l.s4 1966171168
        %v3151 = vunpack.c.0.s8 %v3150
        %v3152 = vlaneseq
        %v3153 = vshrl.u32 %v3152, 7
        %v3154 = vsub.s32 %v3151, %v3153
        %v3155 = vrot.slane %v3139, %v3154
        %v3157 = vunpack.c.l.s4 1966171168
        %v3158 = vunpack.c.0.s8 %v3157
        %v3159 = vlaneseq
        %v3160 = vshrl.u32 %v3159, 7
        %v3161 = vsub.s32 %v3158, %v3160
        %v3162 = vrot.slane %v3140, %v3161
        %v3164 = vunpack.c.l.s4 1966171168
        %v3165 = vunpack.c.0.s8 %v3164
        %v3166 = vlaneseq
        %v3167 = vshrl.u32 %v3166, 7
        %v3168 = vsub.s32 %v3165, %v3167
        %v3169 = vrot.slane %v3141, %v3168
        %v3170 = vcombine.low %v3148, %v3155
        %v3171 = vcombine.low %v3162, %v3169
        %v3173 = vunpack.c.l.s4 1966171168
        %v3174 = vunpack.c.0.s8 %v3173
        %v3175 = vlaneseq
        %v3176 = vshrl.u32 %v3175, 7
        %v3177 = vsub.s32 %v3174, %v3176
        %v3178 = vrot.slane %v3170, %v3177
        %v3180 = vunpack.c.l.s4 1966171168
        %v3181 = vunpack.c.0.s8 %v3180
        %v3182 = vlaneseq
        %v3183 = vshrl.u32 %v3182, 7
        %v3184 = vsub.s32 %v3181, %v3183
        %v3185 = vrot.slane %v3171, %v3184
        %v3186 = vcombine.low %v3178, %v3185
        %v3187 = vcombine.low %v1673, %v1677
        %v3188 = vcombine.low %v1681, %v1685
        %v3189 = vcombine.low %v1689, %v1693
        %v3190 = vcombine.low %v1697, %v1701
        %v3192 = vunpack.c.l.s4 1966171168
        %v3193 = vunpack.c.0.s8 %v3192
        %v3194 = vlaneseq
        %v3195 = vshrl.u32 %v3194, 7
        %v3196 = vsub.s32 %v3193, %v3195
        %v3197 = vrot.slane %v3187, %v3196
        %v3199 = vunpack.c.l.s4 1966171168
        %v3200 = vunpack.c.0.s8 %v3199
        %v3201 = vlaneseq
        %v3202 = vshrl.u32 %v3201, 7
        %v3203 = vsub.s32 %v3200, %v3202
        %v3204 = vrot.slane %v3188, %v3203
        %v3206 = vunpack.c.l.s4 1966171168
        %v3207 = vunpack.c.0.s8 %v3206
        %v3208 = vlaneseq
        %v3209 = vshrl.u32 %v3208, 7
        %v3210 = vsub.s32 %v3207, %v3209
        %v3211 = vrot.slane %v3189, %v3210
        %v3213 = vunpack.c.l.s4 1966171168
        %v3214 = vunpack.c.0.s8 %v3213
        %v3215 = vlaneseq
        %v3216 = vshrl.u32 %v3215, 7
        %v3217 = vsub.s32 %v3214, %v3216
        %v3218 = vrot.slane %v3190, %v3217
        %v3219 = vcombine.low %v3197, %v3204
        %v3220 = vcombine.low %v3211, %v3218
        %v3222 = vunpack.c.l.s4 1966171168
        %v3223 = vunpack.c.0.s8 %v3222
        %v3224 = vlaneseq
        %v3225 = vshrl.u32 %v3224, 7
        %v3226 = vsub.s32 %v3223, %v3225
        %v3227 = vrot.slane %v3219, %v3226
        %v3229 = vunpack.c.l.s4 1966171168
        %v3230 = vunpack.c.0.s8 %v3229
        %v3231 = vlaneseq
        %v3232 = vshrl.u32 %v3231, 7
        %v3233 = vsub.s32 %v3230, %v3232
        %v3234 = vrot.slane %v3220, %v3233
        %v3235 = vcombine.low %v3227, %v3234
        %v3236 = vcombine.low %v1705, %v1709
        %v3237 = vcombine.low %v1713, %v1717
        %v3238 = vcombine.low %v1721, %v1725
        %v3239 = vcombine.low %v1729, %v1733
        %v3241 = vunpack.c.l.s4 1966171168
        %v3242 = vunpack.c.0.s8 %v3241
        %v3243 = vlaneseq
        %v3244 = vshrl.u32 %v3243, 7
        %v3245 = vsub.s32 %v3242, %v3244
        %v3246 = vrot.slane %v3236, %v3245
        %v3248 = vunpack.c.l.s4 1966171168
        %v3249 = vunpack.c.0.s8 %v3248
        %v3250 = vlaneseq
        %v3251 = vshrl.u32 %v3250, 7
        %v3252 = vsub.s32 %v3249, %v3251
        %v3253 = vrot.slane %v3237, %v3252
        %v3255 = vunpack.c.l.s4 1966171168
        %v3256 = vunpack.c.0.s8 %v3255
        %v3257 = vlaneseq
        %v3258 = vshrl.u32 %v3257, 7
        %v3259 = vsub.s32 %v3256, %v3258
        %v3260 = vrot.slane %v3238, %v3259
        %v3262 = vunpack.c.l.s4 1966171168
        %v3263 = vunpack.c.0.s8 %v3262
        %v3264 = vlaneseq
        %v3265 = vshrl.u32 %v3264, 7
        %v3266 = vsub.s32 %v3263, %v3265
        %v3267 = vrot.slane %v3239, %v3266
        %v3268 = vcombine.low %v3246, %v3253
        %v3269 = vcombine.low %v3260, %v3267
        %v3271 = vunpack.c.l.s4 1966171168
        %v3272 = vunpack.c.0.s8 %v3271
        %v3273 = vlaneseq
        %v3274 = vshrl.u32 %v3273, 7
        %v3275 = vsub.s32 %v3272, %v3274
        %v3276 = vrot.slane %v3268, %v3275
        %v3278 = vunpack.c.l.s4 1966171168
        %v3279 = vunpack.c.0.s8 %v3278
        %v3280 = vlaneseq
        %v3281 = vshrl.u32 %v3280, 7
        %v3282 = vsub.s32 %v3279, %v3281
        %v3283 = vrot.slane %v3269, %v3282
        %v3284 = vcombine.low %v3276, %v3283
        %v3285 = vcombine.low %v1737, %v1741
        %v3286 = vcombine.low %v1745, %v1749
        %v3287 = vcombine.low %v1753, %v1757
        %v3288 = vcombine.low %v1761, %v1765
        %v3290 = vunpack.c.l.s4 1966171168
        %v3291 = vunpack.c.0.s8 %v3290
        %v3292 = vlaneseq
        %v3293 = vshrl.u32 %v3292, 7
        %v3294 = vsub.s32 %v3291, %v3293
        %v3295 = vrot.slane %v3285, %v3294
        %v3297 = vunpack.c.l.s4 1966171168
        %v3298 = vunpack.c.0.s8 %v3297
        %v3299 = vlaneseq
        %v3300 = vshrl.u32 %v3299, 7
        %v3301 = vsub.s32 %v3298, %v3300
        %v3302 = vrot.slane %v3286, %v3301
        %v3304 = vunpack.c.l.s4 1966171168
        %v3305 = vunpack.c.0.s8 %v3304
        %v3306 = vlaneseq
        %v3307 = vshrl.u32 %v3306, 7
        %v3308 = vsub.s32 %v3305, %v3307
        %v3309 = vrot.slane %v3287, %v3308
        %v3311 = vunpack.c.l.s4 1966171168
        %v3312 = vunpack.c.0.s8 %v3311
        %v3313 = vlaneseq
        %v3314 = vshrl.u32 %v3313, 7
        %v3315 = vsub.s32 %v3312, %v3314
        %v3316 = vrot.slane %v3288, %v3315
        %v3317 = vcombine.low %v3295, %v3302
        %v3318 = vcombine.low %v3309, %v3316
        %v3320 = vunpack.c.l.s4 1966171168
        %v3321 = vunpack.c.0.s8 %v3320
        %v3322 = vlaneseq
        %v3323 = vshrl.u32 %v3322, 7
        %v3324 = vsub.s32 %v3321, %v3323
        %v3325 = vrot.slane %v3317, %v3324
        %v3327 = vunpack.c.l.s4 1966171168
        %v3328 = vunpack.c.0.s8 %v3327
        %v3329 = vlaneseq
        %v3330 = vshrl.u32 %v3329, 7
        %v3331 = vsub.s32 %v3328, %v3330
        %v3332 = vrot.slane %v3318, %v3331
        %v3333 = vcombine.low %v3325, %v3332
        %3334 = vset.pattern.permute.xlu0 0
        %3335 = vperm.xlu0 %3334, %v1814
        %v3336 = vpop.permute.xlu0 %3335
        %3337 = vset.pattern.permute.xlu0 0
        %3338 = vperm.xlu0 %3337, %v1863
        %v3339 = vpop.permute.xlu0 %3338
        %3340 = vset.pattern.permute.xlu0 0
        %3341 = vperm.xlu0 %3340, %v1912
        %v3342 = vpop.permute.xlu0 %3341
        %3343 = vset.pattern.permute.xlu0 0
        %3344 = vperm.xlu0 %3343, %v1961
        %v3345 = vpop.permute.xlu0 %3344
        %3346 = vset.pattern.permute.xlu0 0
        %3347 = vperm.xlu0 %3346, %v2010
        %v3348 = vpop.permute.xlu0 %3347
        %3349 = vset.pattern.permute.xlu0 0
        %3350 = vperm.xlu0 %3349, %v2059
        %v3351 = vpop.permute.xlu0 %3350
        %3352 = vset.pattern.permute.xlu0 0
        %3353 = vperm.xlu0 %3352, %v2108
        %v3354 = vpop.permute.xlu0 %3353
        %3355 = vset.pattern.permute.xlu0 0
        %3356 = vperm.xlu0 %3355, %v2157
        %v3357 = vpop.permute.xlu0 %3356
        %3358 = vset.pattern.permute.xlu0 0
        %3359 = vperm.xlu0 %3358, %v2206
        %v3360 = vpop.permute.xlu0 %3359
        %3361 = vset.pattern.permute.xlu0 0
        %3362 = vperm.xlu0 %3361, %v2255
        %v3363 = vpop.permute.xlu0 %3362
        %3364 = vset.pattern.permute.xlu0 0
        %3365 = vperm.xlu0 %3364, %v2304
        %v3366 = vpop.permute.xlu0 %3365
        %3367 = vset.pattern.permute.xlu0 0
        %3368 = vperm.xlu0 %3367, %v2353
        %v3369 = vpop.permute.xlu0 %3368
        %3370 = vset.pattern.permute.xlu0 0
        %3371 = vperm.xlu0 %3370, %v2402
        %v3372 = vpop.permute.xlu0 %3371
        %3373 = vset.pattern.permute.xlu0 0
        %3374 = vperm.xlu0 %3373, %v2451
        %v3375 = vpop.permute.xlu0 %3374
        %3376 = vset.pattern.permute.xlu0 0
        %3377 = vperm.xlu0 %3376, %v2500
        %v3378 = vpop.permute.xlu0 %3377
        %3379 = vset.pattern.permute.xlu0 0
        %3380 = vperm.xlu0 %3379, %v2549
        %v3381 = vpop.permute.xlu0 %3380
        %3382 = vset.pattern.permute.xlu0 0
        %3383 = vperm.xlu0 %3382, %v2598
        %v3384 = vpop.permute.xlu0 %3383
        %3385 = vset.pattern.permute.xlu0 0
        %3386 = vperm.xlu0 %3385, %v2647
        %v3387 = vpop.permute.xlu0 %3386
        %3388 = vset.pattern.permute.xlu0 0
        %3389 = vperm.xlu0 %3388, %v2696
        %v3390 = vpop.permute.xlu0 %3389
        %3391 = vset.pattern.permute.xlu0 0
        %3392 = vperm.xlu0 %3391, %v2745
        %v3393 = vpop.permute.xlu0 %3392
        %3394 = vset.pattern.permute.xlu0 0
        %3395 = vperm.xlu0 %3394, %v2794
        %v3396 = vpop.permute.xlu0 %3395
        %3397 = vset.pattern.permute.xlu0 0
        %3398 = vperm.xlu0 %3397, %v2843
        %v3399 = vpop.permute.xlu0 %3398
        %3400 = vset.pattern.permute.xlu0 0
        %3401 = vperm.xlu0 %3400, %v2892
        %v3402 = vpop.permute.xlu0 %3401
        %3403 = vset.pattern.permute.xlu0 0
        %3404 = vperm.xlu0 %3403, %v2941
        %v3405 = vpop.permute.xlu0 %3404
        %3406 = vset.pattern.permute.xlu0 0
        %3407 = vperm.xlu0 %3406, %v2990
        %v3408 = vpop.permute.xlu0 %3407
        %3409 = vset.pattern.permute.xlu0 0
        %3410 = vperm.xlu0 %3409, %v3039
        %v3411 = vpop.permute.xlu0 %3410
        %3412 = vset.pattern.permute.xlu0 0
        %3413 = vperm.xlu0 %3412, %v3088
        %v3414 = vpop.permute.xlu0 %3413
        %3415 = vset.pattern.permute.xlu0 0
        %3416 = vperm.xlu0 %3415, %v3137
        %v3417 = vpop.permute.xlu0 %3416
        %3418 = vset.pattern.permute.xlu0 0
        %3419 = vperm.xlu0 %3418, %v3186
        %v3420 = vpop.permute.xlu0 %3419
        %3421 = vset.pattern.permute.xlu0 0
        %3422 = vperm.xlu0 %3421, %v3235
        %v3423 = vpop.permute.xlu0 %3422
        %3424 = vset.pattern.permute.xlu0 0
        %3425 = vperm.xlu0 %3424, %v3284
        %v3426 = vpop.permute.xlu0 %3425
        %3427 = vset.pattern.permute.xlu0 0
        %3428 = vperm.xlu0 %3427, %v3333
        %v3429 = vpop.permute.xlu0 %3428
        %v3430 = vlaneseq
        %v3431 = vand.u32 %v3430, 127
        %v3432 = vlaneseq
        %v3433 = vshrl.u32 %v3432, 7
        %v3434 = vsub.s32 %v3431, %v3433
        %v3435 = vrot.slane %v3336, %v3434
        %v3436 = vadd.s32 %v3431, 4294967288
        %v3437 = vlaneseq
        %v3438 = vshrl.u32 %v3437, 7
        %v3439 = vsub.s32 %v3436, %v3438
        %v3440 = vrot.slane %v3339, %v3439
        %vm3441 = vcmask 130112
        %v3442 = vsel %vm3441, %v3440, %v3435
        %v3443 = vadd.s32 %v3431, 4294967280
        %v3444 = vlaneseq
        %v3445 = vshrl.u32 %v3444, 7
        %v3446 = vsub.s32 %v3443, %v3445
        %v3447 = vrot.slane %v3342, %v3446
        %vm3448 = vcmask 195712
        %v3449 = vsel %vm3448, %v3447, %v3442
        %v3450 = vadd.s32 %v3431, 4294967272
        %v3451 = vlaneseq
        %v3452 = vshrl.u32 %v3451, 7
        %v3453 = vsub.s32 %v3450, %v3452
        %v3454 = vrot.slane %v3345, %v3453
        %vm3455 = vcmask 261312
        %v3456 = vsel %vm3455, %v3454, %v3449
        %v3457 = vadd.s32 %v3431, 4294967264
        %v3458 = vlaneseq
        %v3459 = vshrl.u32 %v3458, 7
        %v3460 = vsub.s32 %v3457, %v3459
        %v3461 = vrot.slane %v3348, %v3460
        %vm3462 = vcmask 326912
        %v3463 = vsel %vm3462, %v3461, %v3456
        %v3464 = vadd.s32 %v3431, 4294967256
        %v3465 = vlaneseq
        %v3466 = vshrl.u32 %v3465, 7
        %v3467 = vsub.s32 %v3464, %v3466
        %v3468 = vrot.slane %v3351, %v3467
        %vm3469 = vcmask 392512
        %v3470 = vsel %vm3469, %v3468, %v3463
        %v3471 = vadd.s32 %v3431, 4294967248
        %v3472 = vlaneseq
        %v3473 = vshrl.u32 %v3472, 7
        %v3474 = vsub.s32 %v3471, %v3473
        %v3475 = vrot.slane %v3354, %v3474
        %vm3476 = vcmask 458112
        %v3477 = vsel %vm3476, %v3475, %v3470
        %v3478 = vadd.s32 %v3431, 4294967240
        %v3479 = vlaneseq
        %v3480 = vshrl.u32 %v3479, 7
        %v3481 = vsub.s32 %v3478, %v3480
        %v3482 = vrot.slane %v3357, %v3481
        %vm3483 = vcmask 523712
        %v3484 = vsel %vm3483, %v3482, %v3477
        %v3485 = vadd.s32 %v3431, 4294967232
        %v3486 = vlaneseq
        %v3487 = vshrl.u32 %v3486, 7
        %v3488 = vsub.s32 %v3485, %v3487
        %v3489 = vrot.slane %v3360, %v3488
        %vm3490 = vcmask 589312
        %v3491 = vsel %vm3490, %v3489, %v3484
        %v3492 = vadd.s32 %v3431, 4294967224
        %v3493 = vlaneseq
        %v3494 = vshrl.u32 %v3493, 7
        %v3495 = vsub.s32 %v3492, %v3494
        %v3496 = vrot.slane %v3363, %v3495
        %vm3497 = vcmask 654912
        %v3498 = vsel %vm3497, %v3496, %v3491
        %v3499 = vadd.s32 %v3431, 4294967216
        %v3500 = vlaneseq
        %v3501 = vshrl.u32 %v3500, 7
        %v3502 = vsub.s32 %v3499, %v3501
        %v3503 = vrot.slane %v3366, %v3502
        %vm3504 = vcmask 720512
        %v3505 = vsel %vm3504, %v3503, %v3498
        %v3506 = vadd.s32 %v3431, 4294967208
        %v3507 = vlaneseq
        %v3508 = vshrl.u32 %v3507, 7
        %v3509 = vsub.s32 %v3506, %v3508
        %v3510 = vrot.slane %v3369, %v3509
        %vm3511 = vcmask 786112
        %v3512 = vsel %vm3511, %v3510, %v3505
        %v3513 = vadd.s32 %v3431, 4294967200
        %v3514 = vlaneseq
        %v3515 = vshrl.u32 %v3514, 7
        %v3516 = vsub.s32 %v3513, %v3515
        %v3517 = vrot.slane %v3372, %v3516
        %vm3518 = vcmask 851712
        %v3519 = vsel %vm3518, %v3517, %v3512
        %v3520 = vadd.s32 %v3431, 4294967192
        %v3521 = vlaneseq
        %v3522 = vshrl.u32 %v3521, 7
        %v3523 = vsub.s32 %v3520, %v3522
        %v3524 = vrot.slane %v3375, %v3523
        %vm3525 = vcmask 917312
        %v3526 = vsel %vm3525, %v3524, %v3519
        %v3527 = vadd.s32 %v3431, 4294967184
        %v3528 = vlaneseq
        %v3529 = vshrl.u32 %v3528, 7
        %v3530 = vsub.s32 %v3527, %v3529
        %v3531 = vrot.slane %v3378, %v3530
        %vm3532 = vcmask 982912
        %v3533 = vsel %vm3532, %v3531, %v3526
        %v3534 = vadd.s32 %v3431, 4294967176
        %v3535 = vlaneseq
        %v3536 = vshrl.u32 %v3535, 7
        %v3537 = vsub.s32 %v3534, %v3536
        %v3538 = vrot.slane %v3381, %v3537
        %vm3539 = vcmask 1048512
        %v3540 = vsel %vm3539, %v3538, %v3533
        %v3541 = vlaneseq
        %v3542 = vshrl.u32 %v3541, 7
        %v3543 = vsub.s32 %v3431, %v3542
        %v3544 = vrot.slane %v3384, %v3543
        %v3545 = vlaneseq
        %v3546 = vshrl.u32 %v3545, 7
        %v3547 = vsub.s32 %v3436, %v3546
        %v3548 = vrot.slane %v3387, %v3547
        %v3549 = vsel %vm3441, %v3548, %v3544
        %v3550 = vlaneseq
        %v3551 = vshrl.u32 %v3550, 7
        %v3552 = vsub.s32 %v3443, %v3551
        %v3553 = vrot.slane %v3390, %v3552
        %v3554 = vsel %vm3448, %v3553, %v3549
        %v3555 = vlaneseq
        %v3556 = vshrl.u32 %v3555, 7
        %v3557 = vsub.s32 %v3450, %v3556
        %v3558 = vrot.slane %v3393, %v3557
        %v3559 = vsel %vm3455, %v3558, %v3554
        %v3560 = vlaneseq
        %v3561 = vshrl.u32 %v3560, 7
        %v3562 = vsub.s32 %v3457, %v3561
        %v3563 = vrot.slane %v3396, %v3562
        %v3564 = vsel %vm3462, %v3563, %v3559
        %v3565 = vlaneseq
        %v3566 = vshrl.u32 %v3565, 7
        %v3567 = vsub.s32 %v3464, %v3566
        %v3568 = vrot.slane %v3399, %v3567
        %v3569 = vsel %vm3469, %v3568, %v3564
        %v3570 = vlaneseq
        %v3571 = vshrl.u32 %v3570, 7
        %v3572 = vsub.s32 %v3471, %v3571
        %v3573 = vrot.slane %v3402, %v3572
        %v3574 = vsel %vm3476, %v3573, %v3569
        %v3575 = vlaneseq
        %v3576 = vshrl.u32 %v3575, 7
        %v3577 = vsub.s32 %v3478, %v3576
        %v3578 = vrot.slane %v3405, %v3577
        %v3579 = vsel %vm3483, %v3578, %v3574
        %v3580 = vlaneseq
        %v3581 = vshrl.u32 %v3580, 7
        %v3582 = vsub.s32 %v3485, %v3581
        %v3583 = vrot.slane %v3408, %v3582
        %v3584 = vsel %vm3490, %v3583, %v3579
        %v3585 = vlaneseq
        %v3586 = vshrl.u32 %v3585, 7
        %v3587 = vsub.s32 %v3492, %v3586
        %v3588 = vrot.slane %v3411, %v3587
        %v3589 = vsel %vm3497, %v3588, %v3584
        %v3590 = vlaneseq
        %v3591 = vshrl.u32 %v3590, 7
        %v3592 = vsub.s32 %v3499, %v3591
        %v3593 = vrot.slane %v3414, %v3592
        %v3594 = vsel %vm3504, %v3593, %v3589
        %v3595 = vlaneseq
        %v3596 = vshrl.u32 %v3595, 7
        %v3597 = vsub.s32 %v3506, %v3596
        %v3598 = vrot.slane %v3417, %v3597
        %v3599 = vsel %vm3511, %v3598, %v3594
        %v3600 = vlaneseq
        %v3601 = vshrl.u32 %v3600, 7
        %v3602 = vsub.s32 %v3513, %v3601
        %v3603 = vrot.slane %v3420, %v3602
        %v3604 = vsel %vm3518, %v3603, %v3599
        %v3605 = vlaneseq
        %v3606 = vshrl.u32 %v3605, 7
        %v3607 = vsub.s32 %v3520, %v3606
        %v3608 = vrot.slane %v3423, %v3607
        %v3609 = vsel %vm3525, %v3608, %v3604
        %v3610 = vlaneseq
        %v3611 = vshrl.u32 %v3610, 7
        %v3612 = vsub.s32 %v3527, %v3611
        %v3613 = vrot.slane %v3426, %v3612
        %v3614 = vsel %vm3532, %v3613, %v3609
        %v3615 = vlaneseq
        %v3616 = vshrl.u32 %v3615, 7
        %v3617 = vsub.s32 %v3534, %v3616
        %v3618 = vrot.slane %v3429, %v3617
        %v3619 = vsel %vm3539, %v3618, %v3614
        %v3620 = vcombine.low %v3540, %v3619
        %v3622 = vunpack.c.l.s4 1966171168
        %v3623 = vunpack.c.0.s8 %v3622
        %v3624 = vlaneseq
        %v3625 = vshrl.u32 %v3624, 7
        %v3626 = vsub.s32 %v3623, %v3625
        %v3627 = vrot.slane %v3620, %v3626
        %v3629 = vunpack.c.l.s4 1966171168
        %v3630 = vunpack.c.0.s8 %v3629
        %v3631 = vlaneseq
        %v3632 = vshrl.u32 %v3631, 7
        %v3633 = vsub.s32 %v3630, %v3632
        %v3634 = vrot.slane %v3627, %v3633
        %v3636 = vlaneseq
        %vm3637 = vcmp.ge.s32.totalorder %v3636, 0
        %vm3638 = vcmp.lt.s32.totalorder %v3636, 256
        %vm3639 = vmand %vm3637, %vm3638
        %3640 = vst.msk [vmem:[%s219] ss:$2 sm:$0x3] %vm3639, %v3634
        %v3641 = vld [vmem:[%s224 + $0x100] sm:$0xff]
        %v3642 = vld [vmem:[%s224 + $0x108] sm:$0xff]
        %v3643 = vld [vmem:[%s224 + $0x110] sm:$0xff]
        %v3644 = vld [vmem:[%s224 + $0x118] sm:$0xff]
        %v3645 = vld [vmem:[%s224 + $0x120] sm:$0xff]
        %v3646 = vld [vmem:[%s224 + $0x128] sm:$0xff]
        %v3647 = vld [vmem:[%s224 + $0x130] sm:$0xff]
        %v3648 = vld [vmem:[%s224 + $0x138] sm:$0xff]
        %v3649 = vld [vmem:[%s224 + $0x140] sm:$0xff]
        %v3650 = vld [vmem:[%s224 + $0x148] sm:$0xff]
        %v3651 = vld [vmem:[%s224 + $0x150] sm:$0xff]
        %v3652 = vld [vmem:[%s224 + $0x158] sm:$0xff]
        %v3653 = vld [vmem:[%s224 + $0x160] sm:$0xff]
        %v3654 = vld [vmem:[%s224 + $0x168] sm:$0xff]
        %v3655 = vld [vmem:[%s224 + $0x170] sm:$0xff]
        %v3656 = vld [vmem:[%s224 + $0x178] sm:$0xff]
        %v3657 = vld [vmem:[%s224 + $0x180] sm:$0xff]
        %v3658 = vld [vmem:[%s224 + $0x188] sm:$0xff]
        %v3659 = vld [vmem:[%s224 + $0x190] sm:$0xff]
        %v3660 = vld [vmem:[%s224 + $0x198] sm:$0xff]
        %v3661 = vld [vmem:[%s224 + $0x1a0] sm:$0xff]
        %v3662 = vld [vmem:[%s224 + $0x1a8] sm:$0xff]
        %v3663 = vld [vmem:[%s224 + $0x1b0] sm:$0xff]
        %v3664 = vld [vmem:[%s224 + $0x1b8] sm:$0xff]
        %v3665 = vld [vmem:[%s224 + $0x1c0] sm:$0xff]
        %v3666 = vld [vmem:[%s224 + $0x1c8] sm:$0xff]
        %v3667 = vld [vmem:[%s224 + $0x1d0] sm:$0xff]
        %v3668 = vld [vmem:[%s224 + $0x1d8] sm:$0xff]
        %v3669 = vld [vmem:[%s224 + $0x1e0] sm:$0xff]
        %v3670 = vld [vmem:[%s224 + $0x1e8] sm:$0xff]
        %v3671 = vld [vmem:[%s224 + $0x1f0] sm:$0xff]
        %v3672 = vld [vmem:[%s224 + $0x1f8] sm:$0xff]
        %v3673 = vpack.c.bf16 %v3642, %v3641
        %v3674 = vpack.c.bf16 %v3644, %v3643
        %v3675 = vpack.c.bf16 %v3646, %v3645
        %v3676 = vpack.c.bf16 %v3648, %v3647
        %v3677 = vpack.c.bf16 %v3650, %v3649
        %v3678 = vpack.c.bf16 %v3652, %v3651
        %v3679 = vpack.c.bf16 %v3654, %v3653
        %v3680 = vpack.c.bf16 %v3656, %v3655
        %v3681 = vpack.c.bf16 %v3658, %v3657
        %v3682 = vpack.c.bf16 %v3660, %v3659
        %v3683 = vpack.c.bf16 %v3662, %v3661
        %v3684 = vpack.c.bf16 %v3664, %v3663
        %v3685 = vpack.c.bf16 %v3666, %v3665
        %v3686 = vpack.c.bf16 %v3668, %v3667
        %v3687 = vpack.c.bf16 %v3670, %v3669
        %v3688 = vpack.c.bf16 %v3672, %v3671
        %v3690 = vsel %vm300, %v3673, 0
        %v3693 = vsel %vm300, %v3674, 0
        %v3696 = vsel %vm300, %v3675, 0
        %v3699 = vsel %vm300, %v3676, 0
        %v3702 = vsel %vm300, %v3677, 0
        %v3705 = vsel %vm300, %v3678, 0
        %v3708 = vsel %vm300, %v3679, 0
        %v3711 = vsel %vm300, %v3680, 0
        %v3714 = vsel %vm300, %v3681, 0
        %v3717 = vsel %vm300, %v3682, 0
        %v3720 = vsel %vm300, %v3683, 0
        %v3723 = vsel %vm300, %v3684, 0
        %v3726 = vsel %vm300, %v3685, 0
        %v3729 = vsel %vm300, %v3686, 0
        %v3732 = vsel %vm300, %v3687, 0
        %v3735 = vsel %vm300, %v3688, 0
        %3737 = vmatprep.subr.bf16.mxu0 0
        %3738 = vmatpush1.bf16.msra.mxu0 0
        %3739 = vmatprep.subr.bf16.mxu0 0
        %3740 = vmatpush1.bf16.msra.mxu0 0
        %3741 = vmatprep.subr.bf16.mxu0 0
        %3742 = vmatpush1.bf16.msra.mxu0 0
        %3743 = vmatprep.subr.bf16.mxu0 0
        %3744 = vmatpush1.bf16.msra.mxu0 0
        %3745 = vmatprep.subr.bf16.mxu0 0
        %3746 = vmatpush1.bf16.msra.mxu0 0
        %3747 = vmatprep.subr.bf16.mxu0 0
        %3748 = vmatpush1.bf16.msra.mxu0 0
        %3749 = vmatprep.subr.bf16.mxu0 0
        %3750 = vmatpush1.bf16.msra.mxu0 %v297
        %3751 = vmatprep.subr.bf16.mxu0 0
        %3752 = vmatpush1.bf16.msra.mxu0 %v296
        %3753 = vmatprep.subr.bf16.mxu0 0
        %3754 = vmatpush2.bf16.msra.mxu0 0
        %3755 = vmatprep.subr.bf16.mxu0 0
        %3756 = vmatpush2.bf16.msra.mxu0 0
        %3757 = vmatprep.subr.bf16.mxu0 0
        %3758 = vmatpush2.bf16.msra.mxu0 0
        %3759 = vmatprep.subr.bf16.mxu0 0
        %3760 = vmatpush2.bf16.msra.mxu0 0
        %3761 = vmatprep.subr.bf16.mxu0 0
        %3762 = vmatpush2.bf16.msra.mxu0 0
        %3763 = vmatprep.subr.bf16.mxu0 0
        %3764 = vmatpush2.bf16.msra.mxu0 0
        %3765 = vmatprep.subr.bf16.mxu0 0
        %3766 = vmatpush2.bf16.msra.mxu0 0
        %3767 = vmatprep.subr.bf16.mxu0 0
        %3768 = vmatpush2.bf16.msra.mxu0 0
        %3769 = vmatprep.mubr.bf16.mxu0 0
        %3770 = vmatmul.mubr.bf16.gmra.mxu0 %v3690
        %v3771 = vpop.f32.mrf.mxu0
        %v3772 = vadd.f32 %v286, %v3771
        %v3773 = vpop.f32.mrf.mxu0
        %v3774 = vpop.f32.mrf.mxu0
        %v3775 = vadd.f32 %v286, %v3774
        %v3776 = vpop.f32.mrf.mxu0
        %3777 = vmatprep.mubr.bf16.mxu0 0
        %3778 = vmatmul.mubr.bf16.gmra.mxu0 %v3693
        %v3779 = vpop.f32.mrf.mxu0
        %v3780 = vadd.f32 %v286, %v3779
        %v3781 = vpop.f32.mrf.mxu0
        %v3782 = vpop.f32.mrf.mxu0
        %v3783 = vadd.f32 %v286, %v3782
        %v3784 = vpop.f32.mrf.mxu0
        %3785 = vmatprep.mubr.bf16.mxu0 0
        %3786 = vmatmul.mubr.bf16.gmra.mxu0 %v3696
        %v3787 = vpop.f32.mrf.mxu0
        %v3788 = vadd.f32 %v286, %v3787
        %v3789 = vpop.f32.mrf.mxu0
        %v3790 = vpop.f32.mrf.mxu0
        %v3791 = vadd.f32 %v286, %v3790
        %v3792 = vpop.f32.mrf.mxu0
        %3793 = vmatprep.mubr.bf16.mxu0 0
        %3794 = vmatmul.mubr.bf16.gmra.mxu0 %v3699
        %v3795 = vpop.f32.mrf.mxu0
        %v3796 = vadd.f32 %v286, %v3795
        %v3797 = vpop.f32.mrf.mxu0
        %v3798 = vpop.f32.mrf.mxu0
        %v3799 = vadd.f32 %v286, %v3798
        %v3800 = vpop.f32.mrf.mxu0
        %3801 = vmatprep.mubr.bf16.mxu0 0
        %3802 = vmatmul.mubr.bf16.gmra.mxu0 %v3702
        %v3803 = vpop.f32.mrf.mxu0
        %v3804 = vadd.f32 %v286, %v3803
        %v3805 = vpop.f32.mrf.mxu0
        %v3806 = vpop.f32.mrf.mxu0
        %v3807 = vadd.f32 %v286, %v3806
        %v3808 = vpop.f32.mrf.mxu0
        %3809 = vmatprep.mubr.bf16.mxu0 0
        %3810 = vmatmul.mubr.bf16.gmra.mxu0 %v3705
        %v3811 = vpop.f32.mrf.mxu0
        %v3812 = vadd.f32 %v286, %v3811
        %v3813 = vpop.f32.mrf.mxu0
        %v3814 = vpop.f32.mrf.mxu0
        %v3815 = vadd.f32 %v286, %v3814
        %v3816 = vpop.f32.mrf.mxu0
        %3817 = vmatprep.mubr.bf16.mxu0 0
        %3818 = vmatmul.mubr.bf16.gmra.mxu0 %v3708
        %v3819 = vpop.f32.mrf.mxu0
        %v3820 = vadd.f32 %v286, %v3819
        %v3821 = vpop.f32.mrf.mxu0
        %v3822 = vpop.f32.mrf.mxu0
        %v3823 = vadd.f32 %v286, %v3822
        %v3824 = vpop.f32.mrf.mxu0
        %3825 = vmatprep.mubr.bf16.mxu0 0
        %3826 = vmatmul.mubr.bf16.gmra.mxu0 %v3711
        %v3827 = vpop.f32.mrf.mxu0
        %v3828 = vadd.f32 %v286, %v3827
        %v3829 = vpop.f32.mrf.mxu0
        %v3830 = vpop.f32.mrf.mxu0
        %v3831 = vadd.f32 %v286, %v3830
        %v3832 = vpop.f32.mrf.mxu0
        %3833 = vmatprep.mubr.bf16.mxu0 0
        %3834 = vmatmul.mubr.bf16.gmra.mxu0 %v3714
        %v3835 = vpop.f32.mrf.mxu0
        %v3836 = vadd.f32 %v286, %v3835
        %v3837 = vpop.f32.mrf.mxu0
        %v3838 = vpop.f32.mrf.mxu0
        %v3839 = vadd.f32 %v286, %v3838
        %v3840 = vpop.f32.mrf.mxu0
        %3841 = vmatprep.mubr.bf16.mxu0 0
        %3842 = vmatmul.mubr.bf16.gmra.mxu0 %v3717
        %v3843 = vpop.f32.mrf.mxu0
        %v3844 = vadd.f32 %v286, %v3843
        %v3845 = vpop.f32.mrf.mxu0
        %v3846 = vpop.f32.mrf.mxu0
        %v3847 = vadd.f32 %v286, %v3846
        %v3848 = vpop.f32.mrf.mxu0
        %3849 = vmatprep.mubr.bf16.mxu0 0
        %3850 = vmatmul.mubr.bf16.gmra.mxu0 %v3720
        %v3851 = vpop.f32.mrf.mxu0
        %v3852 = vadd.f32 %v286, %v3851
        %v3853 = vpop.f32.mrf.mxu0
        %v3854 = vpop.f32.mrf.mxu0
        %v3855 = vadd.f32 %v286, %v3854
        %v3856 = vpop.f32.mrf.mxu0
        %3857 = vmatprep.mubr.bf16.mxu0 0
        %3858 = vmatmul.mubr.bf16.gmra.mxu0 %v3723
        %v3859 = vpop.f32.mrf.mxu0
        %v3860 = vadd.f32 %v286, %v3859
        %v3861 = vpop.f32.mrf.mxu0
        %v3862 = vpop.f32.mrf.mxu0
        %v3863 = vadd.f32 %v286, %v3862
        %v3864 = vpop.f32.mrf.mxu0
        %3865 = vmatprep.mubr.bf16.mxu0 0
        %3866 = vmatmul.mubr.bf16.gmra.mxu0 %v3726
        %v3867 = vpop.f32.mrf.mxu0
        %v3868 = vadd.f32 %v286, %v3867
        %v3869 = vpop.f32.mrf.mxu0
        %v3870 = vpop.f32.mrf.mxu0
        %v3871 = vadd.f32 %v286, %v3870
        %v3872 = vpop.f32.mrf.mxu0
        %3873 = vmatprep.mubr.bf16.mxu0 0
        %3874 = vmatmul.mubr.bf16.gmra.mxu0 %v3729
        %v3875 = vpop.f32.mrf.mxu0
        %v3876 = vadd.f32 %v286, %v3875
        %v3877 = vpop.f32.mrf.mxu0
        %v3878 = vpop.f32.mrf.mxu0
        %v3879 = vadd.f32 %v286, %v3878
        %v3880 = vpop.f32.mrf.mxu0
        %3881 = vmatprep.mubr.bf16.mxu0 0
        %3882 = vmatmul.mubr.bf16.gmra.mxu0 %v3732
        %v3883 = vpop.f32.mrf.mxu0
        %v3884 = vadd.f32 %v286, %v3883
        %v3885 = vpop.f32.mrf.mxu0
        %v3886 = vpop.f32.mrf.mxu0
        %v3887 = vadd.f32 %v286, %v3886
        %v3888 = vpop.f32.mrf.mxu0
        %3889 = vmatprep.mubr.bf16.mxu0 0
        %3890 = vmatmul.mubr.bf16.gmra.mxu0 %v3735
        %v3891 = vpop.f32.mrf.mxu0
        %v3892 = vadd.f32 %v286, %v3891
        %v3893 = vpop.f32.mrf.mxu0
        %v3894 = vpop.f32.mrf.mxu0
        %v3895 = vadd.f32 %v286, %v3894
        %v3896 = vpop.f32.mrf.mxu0
        %3897 = vdwg.mxu0
        %v3898 = vmax.f32 %v3772, 0.0
        %v3899 = vmax.f32 %v3775, 0.0
        %v3900 = vmax.f32 %v3780, 0.0
        %v3901 = vmax.f32 %v3783, 0.0
        %v3902 = vmax.f32 %v3788, 0.0
        %v3903 = vmax.f32 %v3791, 0.0
        %v3904 = vmax.f32 %v3796, 0.0
        %v3905 = vmax.f32 %v3799, 0.0
        %v3906 = vmax.f32 %v3804, 0.0
        %v3907 = vmax.f32 %v3807, 0.0
        %v3908 = vmax.f32 %v3812, 0.0
        %v3909 = vmax.f32 %v3815, 0.0
        %v3910 = vmax.f32 %v3820, 0.0
        %v3911 = vmax.f32 %v3823, 0.0
        %v3912 = vmax.f32 %v3828, 0.0
        %v3913 = vmax.f32 %v3831, 0.0
        %v3914 = vmax.f32 %v3836, 0.0
        %v3915 = vmax.f32 %v3839, 0.0
        %v3916 = vmax.f32 %v3844, 0.0
        %v3917 = vmax.f32 %v3847, 0.0
        %v3918 = vmax.f32 %v3852, 0.0
        %v3919 = vmax.f32 %v3855, 0.0
        %v3920 = vmax.f32 %v3860, 0.0
        %v3921 = vmax.f32 %v3863, 0.0
        %v3922 = vmax.f32 %v3868, 0.0
        %v3923 = vmax.f32 %v3871, 0.0
        %v3924 = vmax.f32 %v3876, 0.0
        %v3925 = vmax.f32 %v3879, 0.0
        %v3926 = vmax.f32 %v3884, 0.0
        %v3927 = vmax.f32 %v3887, 0.0
        %v3928 = vmax.f32 %v3892, 0.0
        %v3929 = vmax.f32 %v3895, 0.0
        %v3930 = vmul.f32 %v3898, %v546
        %v3931 = vmul.f32 %v3899, %v546
        %v3932 = vmul.f32 %v3900, %v546
        %v3933 = vmul.f32 %v3901, %v546
        %v3934 = vmul.f32 %v3902, %v546
        %v3935 = vmul.f32 %v3903, %v546
        %v3936 = vmul.f32 %v3904, %v546
        %v3937 = vmul.f32 %v3905, %v546
        %v3938 = vmul.f32 %v3906, %v546
        %v3939 = vmul.f32 %v3907, %v546
        %v3940 = vmul.f32 %v3908, %v546
        %v3941 = vmul.f32 %v3909, %v546
        %v3942 = vmul.f32 %v3910, %v546
        %v3943 = vmul.f32 %v3911, %v546
        %v3944 = vmul.f32 %v3912, %v546
        %v3945 = vmul.f32 %v3913, %v546
        %v3946 = vmul.f32 %v3914, %v546
        %v3947 = vmul.f32 %v3915, %v546
        %v3948 = vmul.f32 %v3916, %v546
        %v3949 = vmul.f32 %v3917, %v546
        %v3950 = vmul.f32 %v3918, %v546
        %v3951 = vmul.f32 %v3919, %v546
        %v3952 = vmul.f32 %v3920, %v546
        %v3953 = vmul.f32 %v3921, %v546
        %v3954 = vmul.f32 %v3922, %v546
        %v3955 = vmul.f32 %v3923, %v546
        %v3956 = vmul.f32 %v3924, %v546
        %v3957 = vmul.f32 %v3925, %v546
        %v3958 = vmul.f32 %v3926, %v546
        %v3959 = vmul.f32 %v3927, %v546
        %v3960 = vmul.f32 %v3928, %v546
        %v3961 = vmul.f32 %v3929, %v546
        %v3962 = vsel %vm580, %v3930, 0.0
        %3963 = vadd.xlane.f32.xlu0 %v3962
        %v3964 = vpop.xlane.xlu0 %3963
        %v3965 = vsel %vm580, %v3931, 0.0
        %3966 = vadd.xlane.f32.xlu0 %v3965
        %v3967 = vpop.xlane.xlu0 %3966
        %v3968 = vsel %vm580, %v3932, 0.0
        %3969 = vadd.xlane.f32.xlu0 %v3968
        %v3970 = vpop.xlane.xlu0 %3969
        %v3971 = vsel %vm580, %v3933, 0.0
        %3972 = vadd.xlane.f32.xlu0 %v3971
        %v3973 = vpop.xlane.xlu0 %3972
        %v3974 = vsel %vm580, %v3934, 0.0
        %3975 = vadd.xlane.f32.xlu0 %v3974
        %v3976 = vpop.xlane.xlu0 %3975
        %v3977 = vsel %vm580, %v3935, 0.0
        %3978 = vadd.xlane.f32.xlu0 %v3977
        %v3979 = vpop.xlane.xlu0 %3978
        %v3980 = vsel %vm580, %v3936, 0.0
        %3981 = vadd.xlane.f32.xlu0 %v3980
        %v3982 = vpop.xlane.xlu0 %3981
        %v3983 = vsel %vm580, %v3937, 0.0
        %3984 = vadd.xlane.f32.xlu0 %v3983
        %v3985 = vpop.xlane.xlu0 %3984
        %v3986 = vsel %vm580, %v3938, 0.0
        %3987 = vadd.xlane.f32.xlu0 %v3986
        %v3988 = vpop.xlane.xlu0 %3987
        %v3989 = vsel %vm580, %v3939, 0.0
        %3990 = vadd.xlane.f32.xlu0 %v3989
        %v3991 = vpop.xlane.xlu0 %3990
        %v3992 = vsel %vm580, %v3940, 0.0
        %3993 = vadd.xlane.f32.xlu0 %v3992
        %v3994 = vpop.xlane.xlu0 %3993
        %v3995 = vsel %vm580, %v3941, 0.0
        %3996 = vadd.xlane.f32.xlu0 %v3995
        %v3997 = vpop.xlane.xlu0 %3996
        %v3998 = vsel %vm580, %v3942, 0.0
        %3999 = vadd.xlane.f32.xlu0 %v3998
        %v4000 = vpop.xlane.xlu0 %3999
        %v4001 = vsel %vm580, %v3943, 0.0
        %4002 = vadd.xlane.f32.xlu0 %v4001
        %v4003 = vpop.xlane.xlu0 %4002
        %v4004 = vsel %vm580, %v3944, 0.0
        %4005 = vadd.xlane.f32.xlu0 %v4004
        %v4006 = vpop.xlane.xlu0 %4005
        %v4007 = vsel %vm580, %v3945, 0.0
        %4008 = vadd.xlane.f32.xlu0 %v4007
        %v4009 = vpop.xlane.xlu0 %4008
        %v4010 = vsel %vm580, %v3946, 0.0
        %4011 = vadd.xlane.f32.xlu0 %v4010
        %v4012 = vpop.xlane.xlu0 %4011
        %v4013 = vsel %vm580, %v3947, 0.0
        %4014 = vadd.xlane.f32.xlu0 %v4013
        %v4015 = vpop.xlane.xlu0 %4014
        %v4016 = vsel %vm580, %v3948, 0.0
        %4017 = vadd.xlane.f32.xlu0 %v4016
        %v4018 = vpop.xlane.xlu0 %4017
        %v4019 = vsel %vm580, %v3949, 0.0
        %4020 = vadd.xlane.f32.xlu0 %v4019
        %v4021 = vpop.xlane.xlu0 %4020
        %v4022 = vsel %vm580, %v3950, 0.0
        %4023 = vadd.xlane.f32.xlu0 %v4022
        %v4024 = vpop.xlane.xlu0 %4023
        %v4025 = vsel %vm580, %v3951, 0.0
        %4026 = vadd.xlane.f32.xlu0 %v4025
        %v4027 = vpop.xlane.xlu0 %4026
        %v4028 = vsel %vm580, %v3952, 0.0
        %4029 = vadd.xlane.f32.xlu0 %v4028
        %v4030 = vpop.xlane.xlu0 %4029
        %v4031 = vsel %vm580, %v3953, 0.0
        %4032 = vadd.xlane.f32.xlu0 %v4031
        %v4033 = vpop.xlane.xlu0 %4032
        %v4034 = vsel %vm580, %v3954, 0.0
        %4035 = vadd.xlane.f32.xlu0 %v4034
        %v4036 = vpop.xlane.xlu0 %4035
        %v4037 = vsel %vm580, %v3955, 0.0
        %4038 = vadd.xlane.f32.xlu0 %v4037
        %v4039 = vpop.xlane.xlu0 %4038
        %v4040 = vsel %vm580, %v3956, 0.0
        %4041 = vadd.xlane.f32.xlu0 %v4040
        %v4042 = vpop.xlane.xlu0 %4041
        %v4043 = vsel %vm580, %v3957, 0.0
        %4044 = vadd.xlane.f32.xlu0 %v4043
        %v4045 = vpop.xlane.xlu0 %4044
        %v4046 = vsel %vm580, %v3958, 0.0
        %4047 = vadd.xlane.f32.xlu0 %v4046
        %v4048 = vpop.xlane.xlu0 %4047
        %v4049 = vsel %vm580, %v3959, 0.0
        %4050 = vadd.xlane.f32.xlu0 %v4049
        %v4051 = vpop.xlane.xlu0 %4050
        %v4052 = vsel %vm580, %v3960, 0.0
        %4053 = vadd.xlane.f32.xlu0 %v4052
        %v4054 = vpop.xlane.xlu0 %4053
        %v4055 = vsel %vm580, %v3961, 0.0
        %4056 = vadd.xlane.f32.xlu0 %v4055
        %v4057 = vpop.xlane.xlu0 %4056
        %v4058 = vadd.f32 %v3964, %v677
        %v4059 = vadd.f32 %v3967, %v677
        %v4060 = vadd.f32 %v3970, %v677
        %v4061 = vadd.f32 %v3973, %v677
        %v4062 = vadd.f32 %v3976, %v677
        %v4063 = vadd.f32 %v3979, %v677
        %v4064 = vadd.f32 %v3982, %v677
        %v4065 = vadd.f32 %v3985, %v677
        %v4066 = vadd.f32 %v3988, %v677
        %v4067 = vadd.f32 %v3991, %v677
        %v4068 = vadd.f32 %v3994, %v677
        %v4069 = vadd.f32 %v3997, %v677
        %v4070 = vadd.f32 %v4000, %v677
        %v4071 = vadd.f32 %v4003, %v677
        %v4072 = vadd.f32 %v4006, %v677
        %v4073 = vadd.f32 %v4009, %v677
        %v4074 = vadd.f32 %v4012, %v677
        %v4075 = vadd.f32 %v4015, %v677
        %v4076 = vadd.f32 %v4018, %v677
        %v4077 = vadd.f32 %v4021, %v677
        %v4078 = vadd.f32 %v4024, %v677
        %v4079 = vadd.f32 %v4027, %v677
        %v4080 = vadd.f32 %v4030, %v677
        %v4081 = vadd.f32 %v4033, %v677
        %v4082 = vadd.f32 %v4036, %v677
        %v4083 = vadd.f32 %v4039, %v677
        %v4084 = vadd.f32 %v4042, %v677
        %v4085 = vadd.f32 %v4045, %v677
        %v4086 = vadd.f32 %v4048, %v677
        %v4087 = vadd.f32 %v4051, %v677
        %v4088 = vadd.f32 %v4054, %v677
        %v4089 = vadd.f32 %v4057, %v677
        %v4122 = vlaneseq
        %v4123 = vshrl.u32 %v4122, 7
        %v4124 = vsub.s32 0, %v4123
        %v4125 = vrot.slane %v4058, %v4124
        %v4126 = vlaneseq
        %v4127 = vshrl.u32 %v4126, 7
        %v4128 = vsub.s32 1, %v4127
        %v4129 = vrot.slane %v4058, %v4128
        %v4130 = vlaneseq
        %v4131 = vshrl.u32 %v4130, 7
        %v4132 = vsub.s32 2, %v4131
        %v4133 = vrot.slane %v4058, %v4132
        %v4134 = vlaneseq
        %v4135 = vshrl.u32 %v4134, 7
        %v4136 = vsub.s32 3, %v4135
        %v4137 = vrot.slane %v4058, %v4136
        %v4138 = vlaneseq
        %v4139 = vshrl.u32 %v4138, 7
        %v4140 = vsub.s32 4, %v4139
        %v4141 = vrot.slane %v4058, %v4140
        %v4142 = vlaneseq
        %v4143 = vshrl.u32 %v4142, 7
        %v4144 = vsub.s32 5, %v4143
        %v4145 = vrot.slane %v4058, %v4144
        %v4146 = vlaneseq
        %v4147 = vshrl.u32 %v4146, 7
        %v4148 = vsub.s32 6, %v4147
        %v4149 = vrot.slane %v4058, %v4148
        %v4150 = vlaneseq
        %v4151 = vshrl.u32 %v4150, 7
        %v4152 = vsub.s32 7, %v4151
        %v4153 = vrot.slane %v4058, %v4152
        %v4154 = vlaneseq
        %v4155 = vshrl.u32 %v4154, 7
        %v4156 = vsub.s32 0, %v4155
        %v4157 = vrot.slane %v4059, %v4156
        %v4158 = vlaneseq
        %v4159 = vshrl.u32 %v4158, 7
        %v4160 = vsub.s32 1, %v4159
        %v4161 = vrot.slane %v4059, %v4160
        %v4162 = vlaneseq
        %v4163 = vshrl.u32 %v4162, 7
        %v4164 = vsub.s32 2, %v4163
        %v4165 = vrot.slane %v4059, %v4164
        %v4166 = vlaneseq
        %v4167 = vshrl.u32 %v4166, 7
        %v4168 = vsub.s32 3, %v4167
        %v4169 = vrot.slane %v4059, %v4168
        %v4170 = vlaneseq
        %v4171 = vshrl.u32 %v4170, 7
        %v4172 = vsub.s32 4, %v4171
        %v4173 = vrot.slane %v4059, %v4172
        %v4174 = vlaneseq
        %v4175 = vshrl.u32 %v4174, 7
        %v4176 = vsub.s32 5, %v4175
        %v4177 = vrot.slane %v4059, %v4176
        %v4178 = vlaneseq
        %v4179 = vshrl.u32 %v4178, 7
        %v4180 = vsub.s32 6, %v4179
        %v4181 = vrot.slane %v4059, %v4180
        %v4182 = vlaneseq
        %v4183 = vshrl.u32 %v4182, 7
        %v4184 = vsub.s32 7, %v4183
        %v4185 = vrot.slane %v4059, %v4184
        %v4186 = vlaneseq
        %v4187 = vshrl.u32 %v4186, 7
        %v4188 = vsub.s32 0, %v4187
        %v4189 = vrot.slane %v4060, %v4188
        %v4190 = vlaneseq
        %v4191 = vshrl.u32 %v4190, 7
        %v4192 = vsub.s32 1, %v4191
        %v4193 = vrot.slane %v4060, %v4192
        %v4194 = vlaneseq
        %v4195 = vshrl.u32 %v4194, 7
        %v4196 = vsub.s32 2, %v4195
        %v4197 = vrot.slane %v4060, %v4196
        %v4198 = vlaneseq
        %v4199 = vshrl.u32 %v4198, 7
        %v4200 = vsub.s32 3, %v4199
        %v4201 = vrot.slane %v4060, %v4200
        %v4202 = vlaneseq
        %v4203 = vshrl.u32 %v4202, 7
        %v4204 = vsub.s32 4, %v4203
        %v4205 = vrot.slane %v4060, %v4204
        %v4206 = vlaneseq
        %v4207 = vshrl.u32 %v4206, 7
        %v4208 = vsub.s32 5, %v4207
        %v4209 = vrot.slane %v4060, %v4208
        %v4210 = vlaneseq
        %v4211 = vshrl.u32 %v4210, 7
        %v4212 = vsub.s32 6, %v4211
        %v4213 = vrot.slane %v4060, %v4212
        %v4214 = vlaneseq
        %v4215 = vshrl.u32 %v4214, 7
        %v4216 = vsub.s32 7, %v4215
        %v4217 = vrot.slane %v4060, %v4216
        %v4218 = vlaneseq
        %v4219 = vshrl.u32 %v4218, 7
        %v4220 = vsub.s32 0, %v4219
        %v4221 = vrot.slane %v4061, %v4220
        %v4222 = vlaneseq
        %v4223 = vshrl.u32 %v4222, 7
        %v4224 = vsub.s32 1, %v4223
        %v4225 = vrot.slane %v4061, %v4224
        %v4226 = vlaneseq
        %v4227 = vshrl.u32 %v4226, 7
        %v4228 = vsub.s32 2, %v4227
        %v4229 = vrot.slane %v4061, %v4228
        %v4230 = vlaneseq
        %v4231 = vshrl.u32 %v4230, 7
        %v4232 = vsub.s32 3, %v4231
        %v4233 = vrot.slane %v4061, %v4232
        %v4234 = vlaneseq
        %v4235 = vshrl.u32 %v4234, 7
        %v4236 = vsub.s32 4, %v4235
        %v4237 = vrot.slane %v4061, %v4236
        %v4238 = vlaneseq
        %v4239 = vshrl.u32 %v4238, 7
        %v4240 = vsub.s32 5, %v4239
        %v4241 = vrot.slane %v4061, %v4240
        %v4242 = vlaneseq
        %v4243 = vshrl.u32 %v4242, 7
        %v4244 = vsub.s32 6, %v4243
        %v4245 = vrot.slane %v4061, %v4244
        %v4246 = vlaneseq
        %v4247 = vshrl.u32 %v4246, 7
        %v4248 = vsub.s32 7, %v4247
        %v4249 = vrot.slane %v4061, %v4248
        %v4250 = vlaneseq
        %v4251 = vshrl.u32 %v4250, 7
        %v4252 = vsub.s32 0, %v4251
        %v4253 = vrot.slane %v4062, %v4252
        %v4254 = vlaneseq
        %v4255 = vshrl.u32 %v4254, 7
        %v4256 = vsub.s32 1, %v4255
        %v4257 = vrot.slane %v4062, %v4256
        %v4258 = vlaneseq
        %v4259 = vshrl.u32 %v4258, 7
        %v4260 = vsub.s32 2, %v4259
        %v4261 = vrot.slane %v4062, %v4260
        %v4262 = vlaneseq
        %v4263 = vshrl.u32 %v4262, 7
        %v4264 = vsub.s32 3, %v4263
        %v4265 = vrot.slane %v4062, %v4264
        %v4266 = vlaneseq
        %v4267 = vshrl.u32 %v4266, 7
        %v4268 = vsub.s32 4, %v4267
        %v4269 = vrot.slane %v4062, %v4268
        %v4270 = vlaneseq
        %v4271 = vshrl.u32 %v4270, 7
        %v4272 = vsub.s32 5, %v4271
        %v4273 = vrot.slane %v4062, %v4272
        %v4274 = vlaneseq
        %v4275 = vshrl.u32 %v4274, 7
        %v4276 = vsub.s32 6, %v4275
        %v4277 = vrot.slane %v4062, %v4276
        %v4278 = vlaneseq
        %v4279 = vshrl.u32 %v4278, 7
        %v4280 = vsub.s32 7, %v4279
        %v4281 = vrot.slane %v4062, %v4280
        %v4282 = vlaneseq
        %v4283 = vshrl.u32 %v4282, 7
        %v4284 = vsub.s32 0, %v4283
        %v4285 = vrot.slane %v4063, %v4284
        %v4286 = vlaneseq
        %v4287 = vshrl.u32 %v4286, 7
        %v4288 = vsub.s32 1, %v4287
        %v4289 = vrot.slane %v4063, %v4288
        %v4290 = vlaneseq
        %v4291 = vshrl.u32 %v4290, 7
        %v4292 = vsub.s32 2, %v4291
        %v4293 = vrot.slane %v4063, %v4292
        %v4294 = vlaneseq
        %v4295 = vshrl.u32 %v4294, 7
        %v4296 = vsub.s32 3, %v4295
        %v4297 = vrot.slane %v4063, %v4296
        %v4298 = vlaneseq
        %v4299 = vshrl.u32 %v4298, 7
        %v4300 = vsub.s32 4, %v4299
        %v4301 = vrot.slane %v4063, %v4300
        %v4302 = vlaneseq
        %v4303 = vshrl.u32 %v4302, 7
        %v4304 = vsub.s32 5, %v4303
        %v4305 = vrot.slane %v4063, %v4304
        %v4306 = vlaneseq
        %v4307 = vshrl.u32 %v4306, 7
        %v4308 = vsub.s32 6, %v4307
        %v4309 = vrot.slane %v4063, %v4308
        %v4310 = vlaneseq
        %v4311 = vshrl.u32 %v4310, 7
        %v4312 = vsub.s32 7, %v4311
        %v4313 = vrot.slane %v4063, %v4312
        %v4314 = vlaneseq
        %v4315 = vshrl.u32 %v4314, 7
        %v4316 = vsub.s32 0, %v4315
        %v4317 = vrot.slane %v4064, %v4316
        %v4318 = vlaneseq
        %v4319 = vshrl.u32 %v4318, 7
        %v4320 = vsub.s32 1, %v4319
        %v4321 = vrot.slane %v4064, %v4320
        %v4322 = vlaneseq
        %v4323 = vshrl.u32 %v4322, 7
        %v4324 = vsub.s32 2, %v4323
        %v4325 = vrot.slane %v4064, %v4324
        %v4326 = vlaneseq
        %v4327 = vshrl.u32 %v4326, 7
        %v4328 = vsub.s32 3, %v4327
        %v4329 = vrot.slane %v4064, %v4328
        %v4330 = vlaneseq
        %v4331 = vshrl.u32 %v4330, 7
        %v4332 = vsub.s32 4, %v4331
        %v4333 = vrot.slane %v4064, %v4332
        %v4334 = vlaneseq
        %v4335 = vshrl.u32 %v4334, 7
        %v4336 = vsub.s32 5, %v4335
        %v4337 = vrot.slane %v4064, %v4336
        %v4338 = vlaneseq
        %v4339 = vshrl.u32 %v4338, 7
        %v4340 = vsub.s32 6, %v4339
        %v4341 = vrot.slane %v4064, %v4340
        %v4342 = vlaneseq
        %v4343 = vshrl.u32 %v4342, 7
        %v4344 = vsub.s32 7, %v4343
        %v4345 = vrot.slane %v4064, %v4344
        %v4346 = vlaneseq
        %v4347 = vshrl.u32 %v4346, 7
        %v4348 = vsub.s32 0, %v4347
        %v4349 = vrot.slane %v4065, %v4348
        %v4350 = vlaneseq
        %v4351 = vshrl.u32 %v4350, 7
        %v4352 = vsub.s32 1, %v4351
        %v4353 = vrot.slane %v4065, %v4352
        %v4354 = vlaneseq
        %v4355 = vshrl.u32 %v4354, 7
        %v4356 = vsub.s32 2, %v4355
        %v4357 = vrot.slane %v4065, %v4356
        %v4358 = vlaneseq
        %v4359 = vshrl.u32 %v4358, 7
        %v4360 = vsub.s32 3, %v4359
        %v4361 = vrot.slane %v4065, %v4360
        %v4362 = vlaneseq
        %v4363 = vshrl.u32 %v4362, 7
        %v4364 = vsub.s32 4, %v4363
        %v4365 = vrot.slane %v4065, %v4364
        %v4366 = vlaneseq
        %v4367 = vshrl.u32 %v4366, 7
        %v4368 = vsub.s32 5, %v4367
        %v4369 = vrot.slane %v4065, %v4368
        %v4370 = vlaneseq
        %v4371 = vshrl.u32 %v4370, 7
        %v4372 = vsub.s32 6, %v4371
        %v4373 = vrot.slane %v4065, %v4372
        %v4374 = vlaneseq
        %v4375 = vshrl.u32 %v4374, 7
        %v4376 = vsub.s32 7, %v4375
        %v4377 = vrot.slane %v4065, %v4376
        %v4378 = vlaneseq
        %v4379 = vshrl.u32 %v4378, 7
        %v4380 = vsub.s32 0, %v4379
        %v4381 = vrot.slane %v4066, %v4380
        %v4382 = vlaneseq
        %v4383 = vshrl.u32 %v4382, 7
        %v4384 = vsub.s32 1, %v4383
        %v4385 = vrot.slane %v4066, %v4384
        %v4386 = vlaneseq
        %v4387 = vshrl.u32 %v4386, 7
        %v4388 = vsub.s32 2, %v4387
        %v4389 = vrot.slane %v4066, %v4388
        %v4390 = vlaneseq
        %v4391 = vshrl.u32 %v4390, 7
        %v4392 = vsub.s32 3, %v4391
        %v4393 = vrot.slane %v4066, %v4392
        %v4394 = vlaneseq
        %v4395 = vshrl.u32 %v4394, 7
        %v4396 = vsub.s32 4, %v4395
        %v4397 = vrot.slane %v4066, %v4396
        %v4398 = vlaneseq
        %v4399 = vshrl.u32 %v4398, 7
        %v4400 = vsub.s32 5, %v4399
        %v4401 = vrot.slane %v4066, %v4400
        %v4402 = vlaneseq
        %v4403 = vshrl.u32 %v4402, 7
        %v4404 = vsub.s32 6, %v4403
        %v4405 = vrot.slane %v4066, %v4404
        %v4406 = vlaneseq
        %v4407 = vshrl.u32 %v4406, 7
        %v4408 = vsub.s32 7, %v4407
        %v4409 = vrot.slane %v4066, %v4408
        %v4410 = vlaneseq
        %v4411 = vshrl.u32 %v4410, 7
        %v4412 = vsub.s32 0, %v4411
        %v4413 = vrot.slane %v4067, %v4412
        %v4414 = vlaneseq
        %v4415 = vshrl.u32 %v4414, 7
        %v4416 = vsub.s32 1, %v4415
        %v4417 = vrot.slane %v4067, %v4416
        %v4418 = vlaneseq
        %v4419 = vshrl.u32 %v4418, 7
        %v4420 = vsub.s32 2, %v4419
        %v4421 = vrot.slane %v4067, %v4420
        %v4422 = vlaneseq
        %v4423 = vshrl.u32 %v4422, 7
        %v4424 = vsub.s32 3, %v4423
        %v4425 = vrot.slane %v4067, %v4424
        %v4426 = vlaneseq
        %v4427 = vshrl.u32 %v4426, 7
        %v4428 = vsub.s32 4, %v4427
        %v4429 = vrot.slane %v4067, %v4428
        %v4430 = vlaneseq
        %v4431 = vshrl.u32 %v4430, 7
        %v4432 = vsub.s32 5, %v4431
        %v4433 = vrot.slane %v4067, %v4432
        %v4434 = vlaneseq
        %v4435 = vshrl.u32 %v4434, 7
        %v4436 = vsub.s32 6, %v4435
        %v4437 = vrot.slane %v4067, %v4436
        %v4438 = vlaneseq
        %v4439 = vshrl.u32 %v4438, 7
        %v4440 = vsub.s32 7, %v4439
        %v4441 = vrot.slane %v4067, %v4440
        %v4442 = vlaneseq
        %v4443 = vshrl.u32 %v4442, 7
        %v4444 = vsub.s32 0, %v4443
        %v4445 = vrot.slane %v4068, %v4444
        %v4446 = vlaneseq
        %v4447 = vshrl.u32 %v4446, 7
        %v4448 = vsub.s32 1, %v4447
        %v4449 = vrot.slane %v4068, %v4448
        %v4450 = vlaneseq
        %v4451 = vshrl.u32 %v4450, 7
        %v4452 = vsub.s32 2, %v4451
        %v4453 = vrot.slane %v4068, %v4452
        %v4454 = vlaneseq
        %v4455 = vshrl.u32 %v4454, 7
        %v4456 = vsub.s32 3, %v4455
        %v4457 = vrot.slane %v4068, %v4456
        %v4458 = vlaneseq
        %v4459 = vshrl.u32 %v4458, 7
        %v4460 = vsub.s32 4, %v4459
        %v4461 = vrot.slane %v4068, %v4460
        %v4462 = vlaneseq
        %v4463 = vshrl.u32 %v4462, 7
        %v4464 = vsub.s32 5, %v4463
        %v4465 = vrot.slane %v4068, %v4464
        %v4466 = vlaneseq
        %v4467 = vshrl.u32 %v4466, 7
        %v4468 = vsub.s32 6, %v4467
        %v4469 = vrot.slane %v4068, %v4468
        %v4470 = vlaneseq
        %v4471 = vshrl.u32 %v4470, 7
        %v4472 = vsub.s32 7, %v4471
        %v4473 = vrot.slane %v4068, %v4472
        %v4474 = vlaneseq
        %v4475 = vshrl.u32 %v4474, 7
        %v4476 = vsub.s32 0, %v4475
        %v4477 = vrot.slane %v4069, %v4476
        %v4478 = vlaneseq
        %v4479 = vshrl.u32 %v4478, 7
        %v4480 = vsub.s32 1, %v4479
        %v4481 = vrot.slane %v4069, %v4480
        %v4482 = vlaneseq
        %v4483 = vshrl.u32 %v4482, 7
        %v4484 = vsub.s32 2, %v4483
        %v4485 = vrot.slane %v4069, %v4484
        %v4486 = vlaneseq
        %v4487 = vshrl.u32 %v4486, 7
        %v4488 = vsub.s32 3, %v4487
        %v4489 = vrot.slane %v4069, %v4488
        %v4490 = vlaneseq
        %v4491 = vshrl.u32 %v4490, 7
        %v4492 = vsub.s32 4, %v4491
        %v4493 = vrot.slane %v4069, %v4492
        %v4494 = vlaneseq
        %v4495 = vshrl.u32 %v4494, 7
        %v4496 = vsub.s32 5, %v4495
        %v4497 = vrot.slane %v4069, %v4496
        %v4498 = vlaneseq
        %v4499 = vshrl.u32 %v4498, 7
        %v4500 = vsub.s32 6, %v4499
        %v4501 = vrot.slane %v4069, %v4500
        %v4502 = vlaneseq
        %v4503 = vshrl.u32 %v4502, 7
        %v4504 = vsub.s32 7, %v4503
        %v4505 = vrot.slane %v4069, %v4504
        %v4506 = vlaneseq
        %v4507 = vshrl.u32 %v4506, 7
        %v4508 = vsub.s32 0, %v4507
        %v4509 = vrot.slane %v4070, %v4508
        %v4510 = vlaneseq
        %v4511 = vshrl.u32 %v4510, 7
        %v4512 = vsub.s32 1, %v4511
        %v4513 = vrot.slane %v4070, %v4512
        %v4514 = vlaneseq
        %v4515 = vshrl.u32 %v4514, 7
        %v4516 = vsub.s32 2, %v4515
        %v4517 = vrot.slane %v4070, %v4516
        %v4518 = vlaneseq
        %v4519 = vshrl.u32 %v4518, 7
        %v4520 = vsub.s32 3, %v4519
        %v4521 = vrot.slane %v4070, %v4520
        %v4522 = vlaneseq
        %v4523 = vshrl.u32 %v4522, 7
        %v4524 = vsub.s32 4, %v4523
        %v4525 = vrot.slane %v4070, %v4524
        %v4526 = vlaneseq
        %v4527 = vshrl.u32 %v4526, 7
        %v4528 = vsub.s32 5, %v4527
        %v4529 = vrot.slane %v4070, %v4528
        %v4530 = vlaneseq
        %v4531 = vshrl.u32 %v4530, 7
        %v4532 = vsub.s32 6, %v4531
        %v4533 = vrot.slane %v4070, %v4532
        %v4534 = vlaneseq
        %v4535 = vshrl.u32 %v4534, 7
        %v4536 = vsub.s32 7, %v4535
        %v4537 = vrot.slane %v4070, %v4536
        %v4538 = vlaneseq
        %v4539 = vshrl.u32 %v4538, 7
        %v4540 = vsub.s32 0, %v4539
        %v4541 = vrot.slane %v4071, %v4540
        %v4542 = vlaneseq
        %v4543 = vshrl.u32 %v4542, 7
        %v4544 = vsub.s32 1, %v4543
        %v4545 = vrot.slane %v4071, %v4544
        %v4546 = vlaneseq
        %v4547 = vshrl.u32 %v4546, 7
        %v4548 = vsub.s32 2, %v4547
        %v4549 = vrot.slane %v4071, %v4548
        %v4550 = vlaneseq
        %v4551 = vshrl.u32 %v4550, 7
        %v4552 = vsub.s32 3, %v4551
        %v4553 = vrot.slane %v4071, %v4552
        %v4554 = vlaneseq
        %v4555 = vshrl.u32 %v4554, 7
        %v4556 = vsub.s32 4, %v4555
        %v4557 = vrot.slane %v4071, %v4556
        %v4558 = vlaneseq
        %v4559 = vshrl.u32 %v4558, 7
        %v4560 = vsub.s32 5, %v4559
        %v4561 = vrot.slane %v4071, %v4560
        %v4562 = vlaneseq
        %v4563 = vshrl.u32 %v4562, 7
        %v4564 = vsub.s32 6, %v4563
        %v4565 = vrot.slane %v4071, %v4564
        %v4566 = vlaneseq
        %v4567 = vshrl.u32 %v4566, 7
        %v4568 = vsub.s32 7, %v4567
        %v4569 = vrot.slane %v4071, %v4568
        %v4570 = vlaneseq
        %v4571 = vshrl.u32 %v4570, 7
        %v4572 = vsub.s32 0, %v4571
        %v4573 = vrot.slane %v4072, %v4572
        %v4574 = vlaneseq
        %v4575 = vshrl.u32 %v4574, 7
        %v4576 = vsub.s32 1, %v4575
        %v4577 = vrot.slane %v4072, %v4576
        %v4578 = vlaneseq
        %v4579 = vshrl.u32 %v4578, 7
        %v4580 = vsub.s32 2, %v4579
        %v4581 = vrot.slane %v4072, %v4580
        %v4582 = vlaneseq
        %v4583 = vshrl.u32 %v4582, 7
        %v4584 = vsub.s32 3, %v4583
        %v4585 = vrot.slane %v4072, %v4584
        %v4586 = vlaneseq
        %v4587 = vshrl.u32 %v4586, 7
        %v4588 = vsub.s32 4, %v4587
        %v4589 = vrot.slane %v4072, %v4588
        %v4590 = vlaneseq
        %v4591 = vshrl.u32 %v4590, 7
        %v4592 = vsub.s32 5, %v4591
        %v4593 = vrot.slane %v4072, %v4592
        %v4594 = vlaneseq
        %v4595 = vshrl.u32 %v4594, 7
        %v4596 = vsub.s32 6, %v4595
        %v4597 = vrot.slane %v4072, %v4596
        %v4598 = vlaneseq
        %v4599 = vshrl.u32 %v4598, 7
        %v4600 = vsub.s32 7, %v4599
        %v4601 = vrot.slane %v4072, %v4600
        %v4602 = vlaneseq
        %v4603 = vshrl.u32 %v4602, 7
        %v4604 = vsub.s32 0, %v4603
        %v4605 = vrot.slane %v4073, %v4604
        %v4606 = vlaneseq
        %v4607 = vshrl.u32 %v4606, 7
        %v4608 = vsub.s32 1, %v4607
        %v4609 = vrot.slane %v4073, %v4608
        %v4610 = vlaneseq
        %v4611 = vshrl.u32 %v4610, 7
        %v4612 = vsub.s32 2, %v4611
        %v4613 = vrot.slane %v4073, %v4612
        %v4614 = vlaneseq
        %v4615 = vshrl.u32 %v4614, 7
        %v4616 = vsub.s32 3, %v4615
        %v4617 = vrot.slane %v4073, %v4616
        %v4618 = vlaneseq
        %v4619 = vshrl.u32 %v4618, 7
        %v4620 = vsub.s32 4, %v4619
        %v4621 = vrot.slane %v4073, %v4620
        %v4622 = vlaneseq
        %v4623 = vshrl.u32 %v4622, 7
        %v4624 = vsub.s32 5, %v4623
        %v4625 = vrot.slane %v4073, %v4624
        %v4626 = vlaneseq
        %v4627 = vshrl.u32 %v4626, 7
        %v4628 = vsub.s32 6, %v4627
        %v4629 = vrot.slane %v4073, %v4628
        %v4630 = vlaneseq
        %v4631 = vshrl.u32 %v4630, 7
        %v4632 = vsub.s32 7, %v4631
        %v4633 = vrot.slane %v4073, %v4632
        %v4634 = vlaneseq
        %v4635 = vshrl.u32 %v4634, 7
        %v4636 = vsub.s32 0, %v4635
        %v4637 = vrot.slane %v4074, %v4636
        %v4638 = vlaneseq
        %v4639 = vshrl.u32 %v4638, 7
        %v4640 = vsub.s32 1, %v4639
        %v4641 = vrot.slane %v4074, %v4640
        %v4642 = vlaneseq
        %v4643 = vshrl.u32 %v4642, 7
        %v4644 = vsub.s32 2, %v4643
        %v4645 = vrot.slane %v4074, %v4644
        %v4646 = vlaneseq
        %v4647 = vshrl.u32 %v4646, 7
        %v4648 = vsub.s32 3, %v4647
        %v4649 = vrot.slane %v4074, %v4648
        %v4650 = vlaneseq
        %v4651 = vshrl.u32 %v4650, 7
        %v4652 = vsub.s32 4, %v4651
        %v4653 = vrot.slane %v4074, %v4652
        %v4654 = vlaneseq
        %v4655 = vshrl.u32 %v4654, 7
        %v4656 = vsub.s32 5, %v4655
        %v4657 = vrot.slane %v4074, %v4656
        %v4658 = vlaneseq
        %v4659 = vshrl.u32 %v4658, 7
        %v4660 = vsub.s32 6, %v4659
        %v4661 = vrot.slane %v4074, %v4660
        %v4662 = vlaneseq
        %v4663 = vshrl.u32 %v4662, 7
        %v4664 = vsub.s32 7, %v4663
        %v4665 = vrot.slane %v4074, %v4664
        %v4666 = vlaneseq
        %v4667 = vshrl.u32 %v4666, 7
        %v4668 = vsub.s32 0, %v4667
        %v4669 = vrot.slane %v4075, %v4668
        %v4670 = vlaneseq
        %v4671 = vshrl.u32 %v4670, 7
        %v4672 = vsub.s32 1, %v4671
        %v4673 = vrot.slane %v4075, %v4672
        %v4674 = vlaneseq
        %v4675 = vshrl.u32 %v4674, 7
        %v4676 = vsub.s32 2, %v4675
        %v4677 = vrot.slane %v4075, %v4676
        %v4678 = vlaneseq
        %v4679 = vshrl.u32 %v4678, 7
        %v4680 = vsub.s32 3, %v4679
        %v4681 = vrot.slane %v4075, %v4680
        %v4682 = vlaneseq
        %v4683 = vshrl.u32 %v4682, 7
        %v4684 = vsub.s32 4, %v4683
        %v4685 = vrot.slane %v4075, %v4684
        %v4686 = vlaneseq
        %v4687 = vshrl.u32 %v4686, 7
        %v4688 = vsub.s32 5, %v4687
        %v4689 = vrot.slane %v4075, %v4688
        %v4690 = vlaneseq
        %v4691 = vshrl.u32 %v4690, 7
        %v4692 = vsub.s32 6, %v4691
        %v4693 = vrot.slane %v4075, %v4692
        %v4694 = vlaneseq
        %v4695 = vshrl.u32 %v4694, 7
        %v4696 = vsub.s32 7, %v4695
        %v4697 = vrot.slane %v4075, %v4696
        %v4698 = vlaneseq
        %v4699 = vshrl.u32 %v4698, 7
        %v4700 = vsub.s32 0, %v4699
        %v4701 = vrot.slane %v4076, %v4700
        %v4702 = vlaneseq
        %v4703 = vshrl.u32 %v4702, 7
        %v4704 = vsub.s32 1, %v4703
        %v4705 = vrot.slane %v4076, %v4704
        %v4706 = vlaneseq
        %v4707 = vshrl.u32 %v4706, 7
        %v4708 = vsub.s32 2, %v4707
        %v4709 = vrot.slane %v4076, %v4708
        %v4710 = vlaneseq
        %v4711 = vshrl.u32 %v4710, 7
        %v4712 = vsub.s32 3, %v4711
        %v4713 = vrot.slane %v4076, %v4712
        %v4714 = vlaneseq
        %v4715 = vshrl.u32 %v4714, 7
        %v4716 = vsub.s32 4, %v4715
        %v4717 = vrot.slane %v4076, %v4716
        %v4718 = vlaneseq
        %v4719 = vshrl.u32 %v4718, 7
        %v4720 = vsub.s32 5, %v4719
        %v4721 = vrot.slane %v4076, %v4720
        %v4722 = vlaneseq
        %v4723 = vshrl.u32 %v4722, 7
        %v4724 = vsub.s32 6, %v4723
        %v4725 = vrot.slane %v4076, %v4724
        %v4726 = vlaneseq
        %v4727 = vshrl.u32 %v4726, 7
        %v4728 = vsub.s32 7, %v4727
        %v4729 = vrot.slane %v4076, %v4728
        %v4730 = vlaneseq
        %v4731 = vshrl.u32 %v4730, 7
        %v4732 = vsub.s32 0, %v4731
        %v4733 = vrot.slane %v4077, %v4732
        %v4734 = vlaneseq
        %v4735 = vshrl.u32 %v4734, 7
        %v4736 = vsub.s32 1, %v4735
        %v4737 = vrot.slane %v4077, %v4736
        %v4738 = vlaneseq
        %v4739 = vshrl.u32 %v4738, 7
        %v4740 = vsub.s32 2, %v4739
        %v4741 = vrot.slane %v4077, %v4740
        %v4742 = vlaneseq
        %v4743 = vshrl.u32 %v4742, 7
        %v4744 = vsub.s32 3, %v4743
        %v4745 = vrot.slane %v4077, %v4744
        %v4746 = vlaneseq
        %v4747 = vshrl.u32 %v4746, 7
        %v4748 = vsub.s32 4, %v4747
        %v4749 = vrot.slane %v4077, %v4748
        %v4750 = vlaneseq
        %v4751 = vshrl.u32 %v4750, 7
        %v4752 = vsub.s32 5, %v4751
        %v4753 = vrot.slane %v4077, %v4752
        %v4754 = vlaneseq
        %v4755 = vshrl.u32 %v4754, 7
        %v4756 = vsub.s32 6, %v4755
        %v4757 = vrot.slane %v4077, %v4756
        %v4758 = vlaneseq
        %v4759 = vshrl.u32 %v4758, 7
        %v4760 = vsub.s32 7, %v4759
        %v4761 = vrot.slane %v4077, %v4760
        %v4762 = vlaneseq
        %v4763 = vshrl.u32 %v4762, 7
        %v4764 = vsub.s32 0, %v4763
        %v4765 = vrot.slane %v4078, %v4764
        %v4766 = vlaneseq
        %v4767 = vshrl.u32 %v4766, 7
        %v4768 = vsub.s32 1, %v4767
        %v4769 = vrot.slane %v4078, %v4768
        %v4770 = vlaneseq
        %v4771 = vshrl.u32 %v4770, 7
        %v4772 = vsub.s32 2, %v4771
        %v4773 = vrot.slane %v4078, %v4772
        %v4774 = vlaneseq
        %v4775 = vshrl.u32 %v4774, 7
        %v4776 = vsub.s32 3, %v4775
        %v4777 = vrot.slane %v4078, %v4776
        %v4778 = vlaneseq
        %v4779 = vshrl.u32 %v4778, 7
        %v4780 = vsub.s32 4, %v4779
        %v4781 = vrot.slane %v4078, %v4780
        %v4782 = vlaneseq
        %v4783 = vshrl.u32 %v4782, 7
        %v4784 = vsub.s32 5, %v4783
        %v4785 = vrot.slane %v4078, %v4784
        %v4786 = vlaneseq
        %v4787 = vshrl.u32 %v4786, 7
        %v4788 = vsub.s32 6, %v4787
        %v4789 = vrot.slane %v4078, %v4788
        %v4790 = vlaneseq
        %v4791 = vshrl.u32 %v4790, 7
        %v4792 = vsub.s32 7, %v4791
        %v4793 = vrot.slane %v4078, %v4792
        %v4794 = vlaneseq
        %v4795 = vshrl.u32 %v4794, 7
        %v4796 = vsub.s32 0, %v4795
        %v4797 = vrot.slane %v4079, %v4796
        %v4798 = vlaneseq
        %v4799 = vshrl.u32 %v4798, 7
        %v4800 = vsub.s32 1, %v4799
        %v4801 = vrot.slane %v4079, %v4800
        %v4802 = vlaneseq
        %v4803 = vshrl.u32 %v4802, 7
        %v4804 = vsub.s32 2, %v4803
        %v4805 = vrot.slane %v4079, %v4804
        %v4806 = vlaneseq
        %v4807 = vshrl.u32 %v4806, 7
        %v4808 = vsub.s32 3, %v4807
        %v4809 = vrot.slane %v4079, %v4808
        %v4810 = vlaneseq
        %v4811 = vshrl.u32 %v4810, 7
        %v4812 = vsub.s32 4, %v4811
        %v4813 = vrot.slane %v4079, %v4812
        %v4814 = vlaneseq
        %v4815 = vshrl.u32 %v4814, 7
        %v4816 = vsub.s32 5, %v4815
        %v4817 = vrot.slane %v4079, %v4816
        %v4818 = vlaneseq
        %v4819 = vshrl.u32 %v4818, 7
        %v4820 = vsub.s32 6, %v4819
        %v4821 = vrot.slane %v4079, %v4820
        %v4822 = vlaneseq
        %v4823 = vshrl.u32 %v4822, 7
        %v4824 = vsub.s32 7, %v4823
        %v4825 = vrot.slane %v4079, %v4824
        %v4826 = vlaneseq
        %v4827 = vshrl.u32 %v4826, 7
        %v4828 = vsub.s32 0, %v4827
        %v4829 = vrot.slane %v4080, %v4828
        %v4830 = vlaneseq
        %v4831 = vshrl.u32 %v4830, 7
        %v4832 = vsub.s32 1, %v4831
        %v4833 = vrot.slane %v4080, %v4832
        %v4834 = vlaneseq
        %v4835 = vshrl.u32 %v4834, 7
        %v4836 = vsub.s32 2, %v4835
        %v4837 = vrot.slane %v4080, %v4836
        %v4838 = vlaneseq
        %v4839 = vshrl.u32 %v4838, 7
        %v4840 = vsub.s32 3, %v4839
        %v4841 = vrot.slane %v4080, %v4840
        %v4842 = vlaneseq
        %v4843 = vshrl.u32 %v4842, 7
        %v4844 = vsub.s32 4, %v4843
        %v4845 = vrot.slane %v4080, %v4844
        %v4846 = vlaneseq
        %v4847 = vshrl.u32 %v4846, 7
        %v4848 = vsub.s32 5, %v4847
        %v4849 = vrot.slane %v4080, %v4848
        %v4850 = vlaneseq
        %v4851 = vshrl.u32 %v4850, 7
        %v4852 = vsub.s32 6, %v4851
        %v4853 = vrot.slane %v4080, %v4852
        %v4854 = vlaneseq
        %v4855 = vshrl.u32 %v4854, 7
        %v4856 = vsub.s32 7, %v4855
        %v4857 = vrot.slane %v4080, %v4856
        %v4858 = vlaneseq
        %v4859 = vshrl.u32 %v4858, 7
        %v4860 = vsub.s32 0, %v4859
        %v4861 = vrot.slane %v4081, %v4860
        %v4862 = vlaneseq
        %v4863 = vshrl.u32 %v4862, 7
        %v4864 = vsub.s32 1, %v4863
        %v4865 = vrot.slane %v4081, %v4864
        %v4866 = vlaneseq
        %v4867 = vshrl.u32 %v4866, 7
        %v4868 = vsub.s32 2, %v4867
        %v4869 = vrot.slane %v4081, %v4868
        %v4870 = vlaneseq
        %v4871 = vshrl.u32 %v4870, 7
        %v4872 = vsub.s32 3, %v4871
        %v4873 = vrot.slane %v4081, %v4872
        %v4874 = vlaneseq
        %v4875 = vshrl.u32 %v4874, 7
        %v4876 = vsub.s32 4, %v4875
        %v4877 = vrot.slane %v4081, %v4876
        %v4878 = vlaneseq
        %v4879 = vshrl.u32 %v4878, 7
        %v4880 = vsub.s32 5, %v4879
        %v4881 = vrot.slane %v4081, %v4880
        %v4882 = vlaneseq
        %v4883 = vshrl.u32 %v4882, 7
        %v4884 = vsub.s32 6, %v4883
        %v4885 = vrot.slane %v4081, %v4884
        %v4886 = vlaneseq
        %v4887 = vshrl.u32 %v4886, 7
        %v4888 = vsub.s32 7, %v4887
        %v4889 = vrot.slane %v4081, %v4888
        %v4890 = vlaneseq
        %v4891 = vshrl.u32 %v4890, 7
        %v4892 = vsub.s32 0, %v4891
        %v4893 = vrot.slane %v4082, %v4892
        %v4894 = vlaneseq
        %v4895 = vshrl.u32 %v4894, 7
        %v4896 = vsub.s32 1, %v4895
        %v4897 = vrot.slane %v4082, %v4896
        %v4898 = vlaneseq
        %v4899 = vshrl.u32 %v4898, 7
        %v4900 = vsub.s32 2, %v4899
        %v4901 = vrot.slane %v4082, %v4900
        %v4902 = vlaneseq
        %v4903 = vshrl.u32 %v4902, 7
        %v4904 = vsub.s32 3, %v4903
        %v4905 = vrot.slane %v4082, %v4904
        %v4906 = vlaneseq
        %v4907 = vshrl.u32 %v4906, 7
        %v4908 = vsub.s32 4, %v4907
        %v4909 = vrot.slane %v4082, %v4908
        %v4910 = vlaneseq
        %v4911 = vshrl.u32 %v4910, 7
        %v4912 = vsub.s32 5, %v4911
        %v4913 = vrot.slane %v4082, %v4912
        %v4914 = vlaneseq
        %v4915 = vshrl.u32 %v4914, 7
        %v4916 = vsub.s32 6, %v4915
        %v4917 = vrot.slane %v4082, %v4916
        %v4918 = vlaneseq
        %v4919 = vshrl.u32 %v4918, 7
        %v4920 = vsub.s32 7, %v4919
        %v4921 = vrot.slane %v4082, %v4920
        %v4922 = vlaneseq
        %v4923 = vshrl.u32 %v4922, 7
        %v4924 = vsub.s32 0, %v4923
        %v4925 = vrot.slane %v4083, %v4924
        %v4926 = vlaneseq
        %v4927 = vshrl.u32 %v4926, 7
        %v4928 = vsub.s32 1, %v4927
        %v4929 = vrot.slane %v4083, %v4928
        %v4930 = vlaneseq
        %v4931 = vshrl.u32 %v4930, 7
        %v4932 = vsub.s32 2, %v4931
        %v4933 = vrot.slane %v4083, %v4932
        %v4934 = vlaneseq
        %v4935 = vshrl.u32 %v4934, 7
        %v4936 = vsub.s32 3, %v4935
        %v4937 = vrot.slane %v4083, %v4936
        %v4938 = vlaneseq
        %v4939 = vshrl.u32 %v4938, 7
        %v4940 = vsub.s32 4, %v4939
        %v4941 = vrot.slane %v4083, %v4940
        %v4942 = vlaneseq
        %v4943 = vshrl.u32 %v4942, 7
        %v4944 = vsub.s32 5, %v4943
        %v4945 = vrot.slane %v4083, %v4944
        %v4946 = vlaneseq
        %v4947 = vshrl.u32 %v4946, 7
        %v4948 = vsub.s32 6, %v4947
        %v4949 = vrot.slane %v4083, %v4948
        %v4950 = vlaneseq
        %v4951 = vshrl.u32 %v4950, 7
        %v4952 = vsub.s32 7, %v4951
        %v4953 = vrot.slane %v4083, %v4952
        %v4954 = vlaneseq
        %v4955 = vshrl.u32 %v4954, 7
        %v4956 = vsub.s32 0, %v4955
        %v4957 = vrot.slane %v4084, %v4956
        %v4958 = vlaneseq
        %v4959 = vshrl.u32 %v4958, 7
        %v4960 = vsub.s32 1, %v4959
        %v4961 = vrot.slane %v4084, %v4960
        %v4962 = vlaneseq
        %v4963 = vshrl.u32 %v4962, 7
        %v4964 = vsub.s32 2, %v4963
        %v4965 = vrot.slane %v4084, %v4964
        %v4966 = vlaneseq
        %v4967 = vshrl.u32 %v4966, 7
        %v4968 = vsub.s32 3, %v4967
        %v4969 = vrot.slane %v4084, %v4968
        %v4970 = vlaneseq
        %v4971 = vshrl.u32 %v4970, 7
        %v4972 = vsub.s32 4, %v4971
        %v4973 = vrot.slane %v4084, %v4972
        %v4974 = vlaneseq
        %v4975 = vshrl.u32 %v4974, 7
        %v4976 = vsub.s32 5, %v4975
        %v4977 = vrot.slane %v4084, %v4976
        %v4978 = vlaneseq
        %v4979 = vshrl.u32 %v4978, 7
        %v4980 = vsub.s32 6, %v4979
        %v4981 = vrot.slane %v4084, %v4980
        %v4982 = vlaneseq
        %v4983 = vshrl.u32 %v4982, 7
        %v4984 = vsub.s32 7, %v4983
        %v4985 = vrot.slane %v4084, %v4984
        %v4986 = vlaneseq
        %v4987 = vshrl.u32 %v4986, 7
        %v4988 = vsub.s32 0, %v4987
        %v4989 = vrot.slane %v4085, %v4988
        %v4990 = vlaneseq
        %v4991 = vshrl.u32 %v4990, 7
        %v4992 = vsub.s32 1, %v4991
        %v4993 = vrot.slane %v4085, %v4992
        %v4994 = vlaneseq
        %v4995 = vshrl.u32 %v4994, 7
        %v4996 = vsub.s32 2, %v4995
        %v4997 = vrot.slane %v4085, %v4996
        %v4998 = vlaneseq
        %v4999 = vshrl.u32 %v4998, 7
        %v5000 = vsub.s32 3, %v4999
        %v5001 = vrot.slane %v4085, %v5000
        %v5002 = vlaneseq
        %v5003 = vshrl.u32 %v5002, 7
        %v5004 = vsub.s32 4, %v5003
        %v5005 = vrot.slane %v4085, %v5004
        %v5006 = vlaneseq
        %v5007 = vshrl.u32 %v5006, 7
        %v5008 = vsub.s32 5, %v5007
        %v5009 = vrot.slane %v4085, %v5008
        %v5010 = vlaneseq
        %v5011 = vshrl.u32 %v5010, 7
        %v5012 = vsub.s32 6, %v5011
        %v5013 = vrot.slane %v4085, %v5012
        %v5014 = vlaneseq
        %v5015 = vshrl.u32 %v5014, 7
        %v5016 = vsub.s32 7, %v5015
        %v5017 = vrot.slane %v4085, %v5016
        %v5018 = vlaneseq
        %v5019 = vshrl.u32 %v5018, 7
        %v5020 = vsub.s32 0, %v5019
        %v5021 = vrot.slane %v4086, %v5020
        %v5022 = vlaneseq
        %v5023 = vshrl.u32 %v5022, 7
        %v5024 = vsub.s32 1, %v5023
        %v5025 = vrot.slane %v4086, %v5024
        %v5026 = vlaneseq
        %v5027 = vshrl.u32 %v5026, 7
        %v5028 = vsub.s32 2, %v5027
        %v5029 = vrot.slane %v4086, %v5028
        %v5030 = vlaneseq
        %v5031 = vshrl.u32 %v5030, 7
        %v5032 = vsub.s32 3, %v5031
        %v5033 = vrot.slane %v4086, %v5032
        %v5034 = vlaneseq
        %v5035 = vshrl.u32 %v5034, 7
        %v5036 = vsub.s32 4, %v5035
        %v5037 = vrot.slane %v4086, %v5036
        %v5038 = vlaneseq
        %v5039 = vshrl.u32 %v5038, 7
        %v5040 = vsub.s32 5, %v5039
        %v5041 = vrot.slane %v4086, %v5040
        %v5042 = vlaneseq
        %v5043 = vshrl.u32 %v5042, 7
        %v5044 = vsub.s32 6, %v5043
        %v5045 = vrot.slane %v4086, %v5044
        %v5046 = vlaneseq
        %v5047 = vshrl.u32 %v5046, 7
        %v5048 = vsub.s32 7, %v5047
        %v5049 = vrot.slane %v4086, %v5048
        %v5050 = vlaneseq
        %v5051 = vshrl.u32 %v5050, 7
        %v5052 = vsub.s32 0, %v5051
        %v5053 = vrot.slane %v4087, %v5052
        %v5054 = vlaneseq
        %v5055 = vshrl.u32 %v5054, 7
        %v5056 = vsub.s32 1, %v5055
        %v5057 = vrot.slane %v4087, %v5056
        %v5058 = vlaneseq
        %v5059 = vshrl.u32 %v5058, 7
        %v5060 = vsub.s32 2, %v5059
        %v5061 = vrot.slane %v4087, %v5060
        %v5062 = vlaneseq
        %v5063 = vshrl.u32 %v5062, 7
        %v5064 = vsub.s32 3, %v5063
        %v5065 = vrot.slane %v4087, %v5064
        %v5066 = vlaneseq
        %v5067 = vshrl.u32 %v5066, 7
        %v5068 = vsub.s32 4, %v5067
        %v5069 = vrot.slane %v4087, %v5068
        %v5070 = vlaneseq
        %v5071 = vshrl.u32 %v5070, 7
        %v5072 = vsub.s32 5, %v5071
        %v5073 = vrot.slane %v4087, %v5072
        %v5074 = vlaneseq
        %v5075 = vshrl.u32 %v5074, 7
        %v5076 = vsub.s32 6, %v5075
        %v5077 = vrot.slane %v4087, %v5076
        %v5078 = vlaneseq
        %v5079 = vshrl.u32 %v5078, 7
        %v5080 = vsub.s32 7, %v5079
        %v5081 = vrot.slane %v4087, %v5080
        %v5082 = vlaneseq
        %v5083 = vshrl.u32 %v5082, 7
        %v5084 = vsub.s32 0, %v5083
        %v5085 = vrot.slane %v4088, %v5084
        %v5086 = vlaneseq
        %v5087 = vshrl.u32 %v5086, 7
        %v5088 = vsub.s32 1, %v5087
        %v5089 = vrot.slane %v4088, %v5088
        %v5090 = vlaneseq
        %v5091 = vshrl.u32 %v5090, 7
        %v5092 = vsub.s32 2, %v5091
        %v5093 = vrot.slane %v4088, %v5092
        %v5094 = vlaneseq
        %v5095 = vshrl.u32 %v5094, 7
        %v5096 = vsub.s32 3, %v5095
        %v5097 = vrot.slane %v4088, %v5096
        %v5098 = vlaneseq
        %v5099 = vshrl.u32 %v5098, 7
        %v5100 = vsub.s32 4, %v5099
        %v5101 = vrot.slane %v4088, %v5100
        %v5102 = vlaneseq
        %v5103 = vshrl.u32 %v5102, 7
        %v5104 = vsub.s32 5, %v5103
        %v5105 = vrot.slane %v4088, %v5104
        %v5106 = vlaneseq
        %v5107 = vshrl.u32 %v5106, 7
        %v5108 = vsub.s32 6, %v5107
        %v5109 = vrot.slane %v4088, %v5108
        %v5110 = vlaneseq
        %v5111 = vshrl.u32 %v5110, 7
        %v5112 = vsub.s32 7, %v5111
        %v5113 = vrot.slane %v4088, %v5112
        %v5114 = vlaneseq
        %v5115 = vshrl.u32 %v5114, 7
        %v5116 = vsub.s32 0, %v5115
        %v5117 = vrot.slane %v4089, %v5116
        %v5118 = vlaneseq
        %v5119 = vshrl.u32 %v5118, 7
        %v5120 = vsub.s32 1, %v5119
        %v5121 = vrot.slane %v4089, %v5120
        %v5122 = vlaneseq
        %v5123 = vshrl.u32 %v5122, 7
        %v5124 = vsub.s32 2, %v5123
        %v5125 = vrot.slane %v4089, %v5124
        %v5126 = vlaneseq
        %v5127 = vshrl.u32 %v5126, 7
        %v5128 = vsub.s32 3, %v5127
        %v5129 = vrot.slane %v4089, %v5128
        %v5130 = vlaneseq
        %v5131 = vshrl.u32 %v5130, 7
        %v5132 = vsub.s32 4, %v5131
        %v5133 = vrot.slane %v4089, %v5132
        %v5134 = vlaneseq
        %v5135 = vshrl.u32 %v5134, 7
        %v5136 = vsub.s32 5, %v5135
        %v5137 = vrot.slane %v4089, %v5136
        %v5138 = vlaneseq
        %v5139 = vshrl.u32 %v5138, 7
        %v5140 = vsub.s32 6, %v5139
        %v5141 = vrot.slane %v4089, %v5140
        %v5142 = vlaneseq
        %v5143 = vshrl.u32 %v5142, 7
        %v5144 = vsub.s32 7, %v5143
        %v5145 = vrot.slane %v4089, %v5144
        %v5146 = vcombine.low %v4125, %v4129
        %v5147 = vcombine.low %v4133, %v4137
        %v5148 = vcombine.low %v4141, %v4145
        %v5149 = vcombine.low %v4149, %v4153
        %v5151 = vunpack.c.l.s4 1966171168
        %v5152 = vunpack.c.0.s8 %v5151
        %v5153 = vlaneseq
        %v5154 = vshrl.u32 %v5153, 7
        %v5155 = vsub.s32 %v5152, %v5154
        %v5156 = vrot.slane %v5146, %v5155
        %v5158 = vunpack.c.l.s4 1966171168
        %v5159 = vunpack.c.0.s8 %v5158
        %v5160 = vlaneseq
        %v5161 = vshrl.u32 %v5160, 7
        %v5162 = vsub.s32 %v5159, %v5161
        %v5163 = vrot.slane %v5147, %v5162
        %v5165 = vunpack.c.l.s4 1966171168
        %v5166 = vunpack.c.0.s8 %v5165
        %v5167 = vlaneseq
        %v5168 = vshrl.u32 %v5167, 7
        %v5169 = vsub.s32 %v5166, %v5168
        %v5170 = vrot.slane %v5148, %v5169
        %v5172 = vunpack.c.l.s4 1966171168
        %v5173 = vunpack.c.0.s8 %v5172
        %v5174 = vlaneseq
        %v5175 = vshrl.u32 %v5174, 7
        %v5176 = vsub.s32 %v5173, %v5175
        %v5177 = vrot.slane %v5149, %v5176
        %v5178 = vcombine.low %v5156, %v5163
        %v5179 = vcombine.low %v5170, %v5177
        %v5181 = vunpack.c.l.s4 1966171168
        %v5182 = vunpack.c.0.s8 %v5181
        %v5183 = vlaneseq
        %v5184 = vshrl.u32 %v5183, 7
        %v5185 = vsub.s32 %v5182, %v5184
        %v5186 = vrot.slane %v5178, %v5185
        %v5188 = vunpack.c.l.s4 1966171168
        %v5189 = vunpack.c.0.s8 %v5188
        %v5190 = vlaneseq
        %v5191 = vshrl.u32 %v5190, 7
        %v5192 = vsub.s32 %v5189, %v5191
        %v5193 = vrot.slane %v5179, %v5192
        %v5194 = vcombine.low %v5186, %v5193
        %v5195 = vcombine.low %v4157, %v4161
        %v5196 = vcombine.low %v4165, %v4169
        %v5197 = vcombine.low %v4173, %v4177
        %v5198 = vcombine.low %v4181, %v4185
        %v5200 = vunpack.c.l.s4 1966171168
        %v5201 = vunpack.c.0.s8 %v5200
        %v5202 = vlaneseq
        %v5203 = vshrl.u32 %v5202, 7
        %v5204 = vsub.s32 %v5201, %v5203
        %v5205 = vrot.slane %v5195, %v5204
        %v5207 = vunpack.c.l.s4 1966171168
        %v5208 = vunpack.c.0.s8 %v5207
        %v5209 = vlaneseq
        %v5210 = vshrl.u32 %v5209, 7
        %v5211 = vsub.s32 %v5208, %v5210
        %v5212 = vrot.slane %v5196, %v5211
        %v5214 = vunpack.c.l.s4 1966171168
        %v5215 = vunpack.c.0.s8 %v5214
        %v5216 = vlaneseq
        %v5217 = vshrl.u32 %v5216, 7
        %v5218 = vsub.s32 %v5215, %v5217
        %v5219 = vrot.slane %v5197, %v5218
        %v5221 = vunpack.c.l.s4 1966171168
        %v5222 = vunpack.c.0.s8 %v5221
        %v5223 = vlaneseq
        %v5224 = vshrl.u32 %v5223, 7
        %v5225 = vsub.s32 %v5222, %v5224
        %v5226 = vrot.slane %v5198, %v5225
        %v5227 = vcombine.low %v5205, %v5212
        %v5228 = vcombine.low %v5219, %v5226
        %v5230 = vunpack.c.l.s4 1966171168
        %v5231 = vunpack.c.0.s8 %v5230
        %v5232 = vlaneseq
        %v5233 = vshrl.u32 %v5232, 7
        %v5234 = vsub.s32 %v5231, %v5233
        %v5235 = vrot.slane %v5227, %v5234
        %v5237 = vunpack.c.l.s4 1966171168
        %v5238 = vunpack.c.0.s8 %v5237
        %v5239 = vlaneseq
        %v5240 = vshrl.u32 %v5239, 7
        %v5241 = vsub.s32 %v5238, %v5240
        %v5242 = vrot.slane %v5228, %v5241
        %v5243 = vcombine.low %v5235, %v5242
        %v5244 = vcombine.low %v4189, %v4193
        %v5245 = vcombine.low %v4197, %v4201
        %v5246 = vcombine.low %v4205, %v4209
        %v5247 = vcombine.low %v4213, %v4217
        %v5249 = vunpack.c.l.s4 1966171168
        %v5250 = vunpack.c.0.s8 %v5249
        %v5251 = vlaneseq
        %v5252 = vshrl.u32 %v5251, 7
        %v5253 = vsub.s32 %v5250, %v5252
        %v5254 = vrot.slane %v5244, %v5253
        %v5256 = vunpack.c.l.s4 1966171168
        %v5257 = vunpack.c.0.s8 %v5256
        %v5258 = vlaneseq
        %v5259 = vshrl.u32 %v5258, 7
        %v5260 = vsub.s32 %v5257, %v5259
        %v5261 = vrot.slane %v5245, %v5260
        %v5263 = vunpack.c.l.s4 1966171168
        %v5264 = vunpack.c.0.s8 %v5263
        %v5265 = vlaneseq
        %v5266 = vshrl.u32 %v5265, 7
        %v5267 = vsub.s32 %v5264, %v5266
        %v5268 = vrot.slane %v5246, %v5267
        %v5270 = vunpack.c.l.s4 1966171168
        %v5271 = vunpack.c.0.s8 %v5270
        %v5272 = vlaneseq
        %v5273 = vshrl.u32 %v5272, 7
        %v5274 = vsub.s32 %v5271, %v5273
        %v5275 = vrot.slane %v5247, %v5274
        %v5276 = vcombine.low %v5254, %v5261
        %v5277 = vcombine.low %v5268, %v5275
        %v5279 = vunpack.c.l.s4 1966171168
        %v5280 = vunpack.c.0.s8 %v5279
        %v5281 = vlaneseq
        %v5282 = vshrl.u32 %v5281, 7
        %v5283 = vsub.s32 %v5280, %v5282
        %v5284 = vrot.slane %v5276, %v5283
        %v5286 = vunpack.c.l.s4 1966171168
        %v5287 = vunpack.c.0.s8 %v5286
        %v5288 = vlaneseq
        %v5289 = vshrl.u32 %v5288, 7
        %v5290 = vsub.s32 %v5287, %v5289
        %v5291 = vrot.slane %v5277, %v5290
        %v5292 = vcombine.low %v5284, %v5291
        %v5293 = vcombine.low %v4221, %v4225
        %v5294 = vcombine.low %v4229, %v4233
        %v5295 = vcombine.low %v4237, %v4241
        %v5296 = vcombine.low %v4245, %v4249
        %v5298 = vunpack.c.l.s4 1966171168
        %v5299 = vunpack.c.0.s8 %v5298
        %v5300 = vlaneseq
        %v5301 = vshrl.u32 %v5300, 7
        %v5302 = vsub.s32 %v5299, %v5301
        %v5303 = vrot.slane %v5293, %v5302
        %v5305 = vunpack.c.l.s4 1966171168
        %v5306 = vunpack.c.0.s8 %v5305
        %v5307 = vlaneseq
        %v5308 = vshrl.u32 %v5307, 7
        %v5309 = vsub.s32 %v5306, %v5308
        %v5310 = vrot.slane %v5294, %v5309
        %v5312 = vunpack.c.l.s4 1966171168
        %v5313 = vunpack.c.0.s8 %v5312
        %v5314 = vlaneseq
        %v5315 = vshrl.u32 %v5314, 7
        %v5316 = vsub.s32 %v5313, %v5315
        %v5317 = vrot.slane %v5295, %v5316
        %v5319 = vunpack.c.l.s4 1966171168
        %v5320 = vunpack.c.0.s8 %v5319
        %v5321 = vlaneseq
        %v5322 = vshrl.u32 %v5321, 7
        %v5323 = vsub.s32 %v5320, %v5322
        %v5324 = vrot.slane %v5296, %v5323
        %v5325 = vcombine.low %v5303, %v5310
        %v5326 = vcombine.low %v5317, %v5324
        %v5328 = vunpack.c.l.s4 1966171168
        %v5329 = vunpack.c.0.s8 %v5328
        %v5330 = vlaneseq
        %v5331 = vshrl.u32 %v5330, 7
        %v5332 = vsub.s32 %v5329, %v5331
        %v5333 = vrot.slane %v5325, %v5332
        %v5335 = vunpack.c.l.s4 1966171168
        %v5336 = vunpack.c.0.s8 %v5335
        %v5337 = vlaneseq
        %v5338 = vshrl.u32 %v5337, 7
        %v5339 = vsub.s32 %v5336, %v5338
        %v5340 = vrot.slane %v5326, %v5339
        %v5341 = vcombine.low %v5333, %v5340
        %v5342 = vcombine.low %v4253, %v4257
        %v5343 = vcombine.low %v4261, %v4265
        %v5344 = vcombine.low %v4269, %v4273
        %v5345 = vcombine.low %v4277, %v4281
        %v5347 = vunpack.c.l.s4 1966171168
        %v5348 = vunpack.c.0.s8 %v5347
        %v5349 = vlaneseq
        %v5350 = vshrl.u32 %v5349, 7
        %v5351 = vsub.s32 %v5348, %v5350
        %v5352 = vrot.slane %v5342, %v5351
        %v5354 = vunpack.c.l.s4 1966171168
        %v5355 = vunpack.c.0.s8 %v5354
        %v5356 = vlaneseq
        %v5357 = vshrl.u32 %v5356, 7
        %v5358 = vsub.s32 %v5355, %v5357
        %v5359 = vrot.slane %v5343, %v5358
        %v5361 = vunpack.c.l.s4 1966171168
        %v5362 = vunpack.c.0.s8 %v5361
        %v5363 = vlaneseq
        %v5364 = vshrl.u32 %v5363, 7
        %v5365 = vsub.s32 %v5362, %v5364
        %v5366 = vrot.slane %v5344, %v5365
        %v5368 = vunpack.c.l.s4 1966171168
        %v5369 = vunpack.c.0.s8 %v5368
        %v5370 = vlaneseq
        %v5371 = vshrl.u32 %v5370, 7
        %v5372 = vsub.s32 %v5369, %v5371
        %v5373 = vrot.slane %v5345, %v5372
        %v5374 = vcombine.low %v5352, %v5359
        %v5375 = vcombine.low %v5366, %v5373
        %v5377 = vunpack.c.l.s4 1966171168
        %v5378 = vunpack.c.0.s8 %v5377
        %v5379 = vlaneseq
        %v5380 = vshrl.u32 %v5379, 7
        %v5381 = vsub.s32 %v5378, %v5380
        %v5382 = vrot.slane %v5374, %v5381
        %v5384 = vunpack.c.l.s4 1966171168
        %v5385 = vunpack.c.0.s8 %v5384
        %v5386 = vlaneseq
        %v5387 = vshrl.u32 %v5386, 7
        %v5388 = vsub.s32 %v5385, %v5387
        %v5389 = vrot.slane %v5375, %v5388
        %v5390 = vcombine.low %v5382, %v5389
        %v5391 = vcombine.low %v4285, %v4289
        %v5392 = vcombine.low %v4293, %v4297
        %v5393 = vcombine.low %v4301, %v4305
        %v5394 = vcombine.low %v4309, %v4313
        %v5396 = vunpack.c.l.s4 1966171168
        %v5397 = vunpack.c.0.s8 %v5396
        %v5398 = vlaneseq
        %v5399 = vshrl.u32 %v5398, 7
        %v5400 = vsub.s32 %v5397, %v5399
        %v5401 = vrot.slane %v5391, %v5400
        %v5403 = vunpack.c.l.s4 1966171168
        %v5404 = vunpack.c.0.s8 %v5403
        %v5405 = vlaneseq
        %v5406 = vshrl.u32 %v5405, 7
        %v5407 = vsub.s32 %v5404, %v5406
        %v5408 = vrot.slane %v5392, %v5407
        %v5410 = vunpack.c.l.s4 1966171168
        %v5411 = vunpack.c.0.s8 %v5410
        %v5412 = vlaneseq
        %v5413 = vshrl.u32 %v5412, 7
        %v5414 = vsub.s32 %v5411, %v5413
        %v5415 = vrot.slane %v5393, %v5414
        %v5417 = vunpack.c.l.s4 1966171168
        %v5418 = vunpack.c.0.s8 %v5417
        %v5419 = vlaneseq
        %v5420 = vshrl.u32 %v5419, 7
        %v5421 = vsub.s32 %v5418, %v5420
        %v5422 = vrot.slane %v5394, %v5421
        %v5423 = vcombine.low %v5401, %v5408
        %v5424 = vcombine.low %v5415, %v5422
        %v5426 = vunpack.c.l.s4 1966171168
        %v5427 = vunpack.c.0.s8 %v5426
        %v5428 = vlaneseq
        %v5429 = vshrl.u32 %v5428, 7
        %v5430 = vsub.s32 %v5427, %v5429
        %v5431 = vrot.slane %v5423, %v5430
        %v5433 = vunpack.c.l.s4 1966171168
        %v5434 = vunpack.c.0.s8 %v5433
        %v5435 = vlaneseq
        %v5436 = vshrl.u32 %v5435, 7
        %v5437 = vsub.s32 %v5434, %v5436
        %v5438 = vrot.slane %v5424, %v5437
        %v5439 = vcombine.low %v5431, %v5438
        %v5440 = vcombine.low %v4317, %v4321
        %v5441 = vcombine.low %v4325, %v4329
        %v5442 = vcombine.low %v4333, %v4337
        %v5443 = vcombine.low %v4341, %v4345
        %v5445 = vunpack.c.l.s4 1966171168
        %v5446 = vunpack.c.0.s8 %v5445
        %v5447 = vlaneseq
        %v5448 = vshrl.u32 %v5447, 7
        %v5449 = vsub.s32 %v5446, %v5448
        %v5450 = vrot.slane %v5440, %v5449
        %v5452 = vunpack.c.l.s4 1966171168
        %v5453 = vunpack.c.0.s8 %v5452
        %v5454 = vlaneseq
        %v5455 = vshrl.u32 %v5454, 7
        %v5456 = vsub.s32 %v5453, %v5455
        %v5457 = vrot.slane %v5441, %v5456
        %v5459 = vunpack.c.l.s4 1966171168
        %v5460 = vunpack.c.0.s8 %v5459
        %v5461 = vlaneseq
        %v5462 = vshrl.u32 %v5461, 7
        %v5463 = vsub.s32 %v5460, %v5462
        %v5464 = vrot.slane %v5442, %v5463
        %v5466 = vunpack.c.l.s4 1966171168
        %v5467 = vunpack.c.0.s8 %v5466
        %v5468 = vlaneseq
        %v5469 = vshrl.u32 %v5468, 7
        %v5470 = vsub.s32 %v5467, %v5469
        %v5471 = vrot.slane %v5443, %v5470
        %v5472 = vcombine.low %v5450, %v5457
        %v5473 = vcombine.low %v5464, %v5471
        %v5475 = vunpack.c.l.s4 1966171168
        %v5476 = vunpack.c.0.s8 %v5475
        %v5477 = vlaneseq
        %v5478 = vshrl.u32 %v5477, 7
        %v5479 = vsub.s32 %v5476, %v5478
        %v5480 = vrot.slane %v5472, %v5479
        %v5482 = vunpack.c.l.s4 1966171168
        %v5483 = vunpack.c.0.s8 %v5482
        %v5484 = vlaneseq
        %v5485 = vshrl.u32 %v5484, 7
        %v5486 = vsub.s32 %v5483, %v5485
        %v5487 = vrot.slane %v5473, %v5486
        %v5488 = vcombine.low %v5480, %v5487
        %v5489 = vcombine.low %v4349, %v4353
        %v5490 = vcombine.low %v4357, %v4361
        %v5491 = vcombine.low %v4365, %v4369
        %v5492 = vcombine.low %v4373, %v4377
        %v5494 = vunpack.c.l.s4 1966171168
        %v5495 = vunpack.c.0.s8 %v5494
        %v5496 = vlaneseq
        %v5497 = vshrl.u32 %v5496, 7
        %v5498 = vsub.s32 %v5495, %v5497
        %v5499 = vrot.slane %v5489, %v5498
        %v5501 = vunpack.c.l.s4 1966171168
        %v5502 = vunpack.c.0.s8 %v5501
        %v5503 = vlaneseq
        %v5504 = vshrl.u32 %v5503, 7
        %v5505 = vsub.s32 %v5502, %v5504
        %v5506 = vrot.slane %v5490, %v5505
        %v5508 = vunpack.c.l.s4 1966171168
        %v5509 = vunpack.c.0.s8 %v5508
        %v5510 = vlaneseq
        %v5511 = vshrl.u32 %v5510, 7
        %v5512 = vsub.s32 %v5509, %v5511
        %v5513 = vrot.slane %v5491, %v5512
        %v5515 = vunpack.c.l.s4 1966171168
        %v5516 = vunpack.c.0.s8 %v5515
        %v5517 = vlaneseq
        %v5518 = vshrl.u32 %v5517, 7
        %v5519 = vsub.s32 %v5516, %v5518
        %v5520 = vrot.slane %v5492, %v5519
        %v5521 = vcombine.low %v5499, %v5506
        %v5522 = vcombine.low %v5513, %v5520
        %v5524 = vunpack.c.l.s4 1966171168
        %v5525 = vunpack.c.0.s8 %v5524
        %v5526 = vlaneseq
        %v5527 = vshrl.u32 %v5526, 7
        %v5528 = vsub.s32 %v5525, %v5527
        %v5529 = vrot.slane %v5521, %v5528
        %v5531 = vunpack.c.l.s4 1966171168
        %v5532 = vunpack.c.0.s8 %v5531
        %v5533 = vlaneseq
        %v5534 = vshrl.u32 %v5533, 7
        %v5535 = vsub.s32 %v5532, %v5534
        %v5536 = vrot.slane %v5522, %v5535
        %v5537 = vcombine.low %v5529, %v5536
        %v5538 = vcombine.low %v4381, %v4385
        %v5539 = vcombine.low %v4389, %v4393
        %v5540 = vcombine.low %v4397, %v4401
        %v5541 = vcombine.low %v4405, %v4409
        %v5543 = vunpack.c.l.s4 1966171168
        %v5544 = vunpack.c.0.s8 %v5543
        %v5545 = vlaneseq
        %v5546 = vshrl.u32 %v5545, 7
        %v5547 = vsub.s32 %v5544, %v5546
        %v5548 = vrot.slane %v5538, %v5547
        %v5550 = vunpack.c.l.s4 1966171168
        %v5551 = vunpack.c.0.s8 %v5550
        %v5552 = vlaneseq
        %v5553 = vshrl.u32 %v5552, 7
        %v5554 = vsub.s32 %v5551, %v5553
        %v5555 = vrot.slane %v5539, %v5554
        %v5557 = vunpack.c.l.s4 1966171168
        %v5558 = vunpack.c.0.s8 %v5557
        %v5559 = vlaneseq
        %v5560 = vshrl.u32 %v5559, 7
        %v5561 = vsub.s32 %v5558, %v5560
        %v5562 = vrot.slane %v5540, %v5561
        %v5564 = vunpack.c.l.s4 1966171168
        %v5565 = vunpack.c.0.s8 %v5564
        %v5566 = vlaneseq
        %v5567 = vshrl.u32 %v5566, 7
        %v5568 = vsub.s32 %v5565, %v5567
        %v5569 = vrot.slane %v5541, %v5568
        %v5570 = vcombine.low %v5548, %v5555
        %v5571 = vcombine.low %v5562, %v5569
        %v5573 = vunpack.c.l.s4 1966171168
        %v5574 = vunpack.c.0.s8 %v5573
        %v5575 = vlaneseq
        %v5576 = vshrl.u32 %v5575, 7
        %v5577 = vsub.s32 %v5574, %v5576
        %v5578 = vrot.slane %v5570, %v5577
        %v5580 = vunpack.c.l.s4 1966171168
        %v5581 = vunpack.c.0.s8 %v5580
        %v5582 = vlaneseq
        %v5583 = vshrl.u32 %v5582, 7
        %v5584 = vsub.s32 %v5581, %v5583
        %v5585 = vrot.slane %v5571, %v5584
        %v5586 = vcombine.low %v5578, %v5585
        %v5587 = vcombine.low %v4413, %v4417
        %v5588 = vcombine.low %v4421, %v4425
        %v5589 = vcombine.low %v4429, %v4433
        %v5590 = vcombine.low %v4437, %v4441
        %v5592 = vunpack.c.l.s4 1966171168
        %v5593 = vunpack.c.0.s8 %v5592
        %v5594 = vlaneseq
        %v5595 = vshrl.u32 %v5594, 7
        %v5596 = vsub.s32 %v5593, %v5595
        %v5597 = vrot.slane %v5587, %v5596
        %v5599 = vunpack.c.l.s4 1966171168
        %v5600 = vunpack.c.0.s8 %v5599
        %v5601 = vlaneseq
        %v5602 = vshrl.u32 %v5601, 7
        %v5603 = vsub.s32 %v5600, %v5602
        %v5604 = vrot.slane %v5588, %v5603
        %v5606 = vunpack.c.l.s4 1966171168
        %v5607 = vunpack.c.0.s8 %v5606
        %v5608 = vlaneseq
        %v5609 = vshrl.u32 %v5608, 7
        %v5610 = vsub.s32 %v5607, %v5609
        %v5611 = vrot.slane %v5589, %v5610
        %v5613 = vunpack.c.l.s4 1966171168
        %v5614 = vunpack.c.0.s8 %v5613
        %v5615 = vlaneseq
        %v5616 = vshrl.u32 %v5615, 7
        %v5617 = vsub.s32 %v5614, %v5616
        %v5618 = vrot.slane %v5590, %v5617
        %v5619 = vcombine.low %v5597, %v5604
        %v5620 = vcombine.low %v5611, %v5618
        %v5622 = vunpack.c.l.s4 1966171168
        %v5623 = vunpack.c.0.s8 %v5622
        %v5624 = vlaneseq
        %v5625 = vshrl.u32 %v5624, 7
        %v5626 = vsub.s32 %v5623, %v5625
        %v5627 = vrot.slane %v5619, %v5626
        %v5629 = vunpack.c.l.s4 1966171168
        %v5630 = vunpack.c.0.s8 %v5629
        %v5631 = vlaneseq
        %v5632 = vshrl.u32 %v5631, 7
        %v5633 = vsub.s32 %v5630, %v5632
        %v5634 = vrot.slane %v5620, %v5633
        %v5635 = vcombine.low %v5627, %v5634
        %v5636 = vcombine.low %v4445, %v4449
        %v5637 = vcombine.low %v4453, %v4457
        %v5638 = vcombine.low %v4461, %v4465
        %v5639 = vcombine.low %v4469, %v4473
        %v5641 = vunpack.c.l.s4 1966171168
        %v5642 = vunpack.c.0.s8 %v5641
        %v5643 = vlaneseq
        %v5644 = vshrl.u32 %v5643, 7
        %v5645 = vsub.s32 %v5642, %v5644
        %v5646 = vrot.slane %v5636, %v5645
        %v5648 = vunpack.c.l.s4 1966171168
        %v5649 = vunpack.c.0.s8 %v5648
        %v5650 = vlaneseq
        %v5651 = vshrl.u32 %v5650, 7
        %v5652 = vsub.s32 %v5649, %v5651
        %v5653 = vrot.slane %v5637, %v5652
        %v5655 = vunpack.c.l.s4 1966171168
        %v5656 = vunpack.c.0.s8 %v5655
        %v5657 = vlaneseq
        %v5658 = vshrl.u32 %v5657, 7
        %v5659 = vsub.s32 %v5656, %v5658
        %v5660 = vrot.slane %v5638, %v5659
        %v5662 = vunpack.c.l.s4 1966171168
        %v5663 = vunpack.c.0.s8 %v5662
        %v5664 = vlaneseq
        %v5665 = vshrl.u32 %v5664, 7
        %v5666 = vsub.s32 %v5663, %v5665
        %v5667 = vrot.slane %v5639, %v5666
        %v5668 = vcombine.low %v5646, %v5653
        %v5669 = vcombine.low %v5660, %v5667
        %v5671 = vunpack.c.l.s4 1966171168
        %v5672 = vunpack.c.0.s8 %v5671
        %v5673 = vlaneseq
        %v5674 = vshrl.u32 %v5673, 7
        %v5675 = vsub.s32 %v5672, %v5674
        %v5676 = vrot.slane %v5668, %v5675
        %v5678 = vunpack.c.l.s4 1966171168
        %v5679 = vunpack.c.0.s8 %v5678
        %v5680 = vlaneseq
        %v5681 = vshrl.u32 %v5680, 7
        %v5682 = vsub.s32 %v5679, %v5681
        %v5683 = vrot.slane %v5669, %v5682
        %v5684 = vcombine.low %v5676, %v5683
        %v5685 = vcombine.low %v4477, %v4481
        %v5686 = vcombine.low %v4485, %v4489
        %v5687 = vcombine.low %v4493, %v4497
        %v5688 = vcombine.low %v4501, %v4505
        %v5690 = vunpack.c.l.s4 1966171168
        %v5691 = vunpack.c.0.s8 %v5690
        %v5692 = vlaneseq
        %v5693 = vshrl.u32 %v5692, 7
        %v5694 = vsub.s32 %v5691, %v5693
        %v5695 = vrot.slane %v5685, %v5694
        %v5697 = vunpack.c.l.s4 1966171168
        %v5698 = vunpack.c.0.s8 %v5697
        %v5699 = vlaneseq
        %v5700 = vshrl.u32 %v5699, 7
        %v5701 = vsub.s32 %v5698, %v5700
        %v5702 = vrot.slane %v5686, %v5701
        %v5704 = vunpack.c.l.s4 1966171168
        %v5705 = vunpack.c.0.s8 %v5704
        %v5706 = vlaneseq
        %v5707 = vshrl.u32 %v5706, 7
        %v5708 = vsub.s32 %v5705, %v5707
        %v5709 = vrot.slane %v5687, %v5708
        %v5711 = vunpack.c.l.s4 1966171168
        %v5712 = vunpack.c.0.s8 %v5711
        %v5713 = vlaneseq
        %v5714 = vshrl.u32 %v5713, 7
        %v5715 = vsub.s32 %v5712, %v5714
        %v5716 = vrot.slane %v5688, %v5715
        %v5717 = vcombine.low %v5695, %v5702
        %v5718 = vcombine.low %v5709, %v5716
        %v5720 = vunpack.c.l.s4 1966171168
        %v5721 = vunpack.c.0.s8 %v5720
        %v5722 = vlaneseq
        %v5723 = vshrl.u32 %v5722, 7
        %v5724 = vsub.s32 %v5721, %v5723
        %v5725 = vrot.slane %v5717, %v5724
        %v5727 = vunpack.c.l.s4 1966171168
        %v5728 = vunpack.c.0.s8 %v5727
        %v5729 = vlaneseq
        %v5730 = vshrl.u32 %v5729, 7
        %v5731 = vsub.s32 %v5728, %v5730
        %v5732 = vrot.slane %v5718, %v5731
        %v5733 = vcombine.low %v5725, %v5732
        %v5734 = vcombine.low %v4509, %v4513
        %v5735 = vcombine.low %v4517, %v4521
        %v5736 = vcombine.low %v4525, %v4529
        %v5737 = vcombine.low %v4533, %v4537
        %v5739 = vunpack.c.l.s4 1966171168
        %v5740 = vunpack.c.0.s8 %v5739
        %v5741 = vlaneseq
        %v5742 = vshrl.u32 %v5741, 7
        %v5743 = vsub.s32 %v5740, %v5742
        %v5744 = vrot.slane %v5734, %v5743
        %v5746 = vunpack.c.l.s4 1966171168
        %v5747 = vunpack.c.0.s8 %v5746
        %v5748 = vlaneseq
        %v5749 = vshrl.u32 %v5748, 7
        %v5750 = vsub.s32 %v5747, %v5749
        %v5751 = vrot.slane %v5735, %v5750
        %v5753 = vunpack.c.l.s4 1966171168
        %v5754 = vunpack.c.0.s8 %v5753
        %v5755 = vlaneseq
        %v5756 = vshrl.u32 %v5755, 7
        %v5757 = vsub.s32 %v5754, %v5756
        %v5758 = vrot.slane %v5736, %v5757
        %v5760 = vunpack.c.l.s4 1966171168
        %v5761 = vunpack.c.0.s8 %v5760
        %v5762 = vlaneseq
        %v5763 = vshrl.u32 %v5762, 7
        %v5764 = vsub.s32 %v5761, %v5763
        %v5765 = vrot.slane %v5737, %v5764
        %v5766 = vcombine.low %v5744, %v5751
        %v5767 = vcombine.low %v5758, %v5765
        %v5769 = vunpack.c.l.s4 1966171168
        %v5770 = vunpack.c.0.s8 %v5769
        %v5771 = vlaneseq
        %v5772 = vshrl.u32 %v5771, 7
        %v5773 = vsub.s32 %v5770, %v5772
        %v5774 = vrot.slane %v5766, %v5773
        %v5776 = vunpack.c.l.s4 1966171168
        %v5777 = vunpack.c.0.s8 %v5776
        %v5778 = vlaneseq
        %v5779 = vshrl.u32 %v5778, 7
        %v5780 = vsub.s32 %v5777, %v5779
        %v5781 = vrot.slane %v5767, %v5780
        %v5782 = vcombine.low %v5774, %v5781
        %v5783 = vcombine.low %v4541, %v4545
        %v5784 = vcombine.low %v4549, %v4553
        %v5785 = vcombine.low %v4557, %v4561
        %v5786 = vcombine.low %v4565, %v4569
        %v5788 = vunpack.c.l.s4 1966171168
        %v5789 = vunpack.c.0.s8 %v5788
        %v5790 = vlaneseq
        %v5791 = vshrl.u32 %v5790, 7
        %v5792 = vsub.s32 %v5789, %v5791
        %v5793 = vrot.slane %v5783, %v5792
        %v5795 = vunpack.c.l.s4 1966171168
        %v5796 = vunpack.c.0.s8 %v5795
        %v5797 = vlaneseq
        %v5798 = vshrl.u32 %v5797, 7
        %v5799 = vsub.s32 %v5796, %v5798
        %v5800 = vrot.slane %v5784, %v5799
        %v5802 = vunpack.c.l.s4 1966171168
        %v5803 = vunpack.c.0.s8 %v5802
        %v5804 = vlaneseq
        %v5805 = vshrl.u32 %v5804, 7
        %v5806 = vsub.s32 %v5803, %v5805
        %v5807 = vrot.slane %v5785, %v5806
        %v5809 = vunpack.c.l.s4 1966171168
        %v5810 = vunpack.c.0.s8 %v5809
        %v5811 = vlaneseq
        %v5812 = vshrl.u32 %v5811, 7
        %v5813 = vsub.s32 %v5810, %v5812
        %v5814 = vrot.slane %v5786, %v5813
        %v5815 = vcombine.low %v5793, %v5800
        %v5816 = vcombine.low %v5807, %v5814
        %v5818 = vunpack.c.l.s4 1966171168
        %v5819 = vunpack.c.0.s8 %v5818
        %v5820 = vlaneseq
        %v5821 = vshrl.u32 %v5820, 7
        %v5822 = vsub.s32 %v5819, %v5821
        %v5823 = vrot.slane %v5815, %v5822
        %v5825 = vunpack.c.l.s4 1966171168
        %v5826 = vunpack.c.0.s8 %v5825
        %v5827 = vlaneseq
        %v5828 = vshrl.u32 %v5827, 7
        %v5829 = vsub.s32 %v5826, %v5828
        %v5830 = vrot.slane %v5816, %v5829
        %v5831 = vcombine.low %v5823, %v5830
        %v5832 = vcombine.low %v4573, %v4577
        %v5833 = vcombine.low %v4581, %v4585
        %v5834 = vcombine.low %v4589, %v4593
        %v5835 = vcombine.low %v4597, %v4601
        %v5837 = vunpack.c.l.s4 1966171168
        %v5838 = vunpack.c.0.s8 %v5837
        %v5839 = vlaneseq
        %v5840 = vshrl.u32 %v5839, 7
        %v5841 = vsub.s32 %v5838, %v5840
        %v5842 = vrot.slane %v5832, %v5841
        %v5844 = vunpack.c.l.s4 1966171168
        %v5845 = vunpack.c.0.s8 %v5844
        %v5846 = vlaneseq
        %v5847 = vshrl.u32 %v5846, 7
        %v5848 = vsub.s32 %v5845, %v5847
        %v5849 = vrot.slane %v5833, %v5848
        %v5851 = vunpack.c.l.s4 1966171168
        %v5852 = vunpack.c.0.s8 %v5851
        %v5853 = vlaneseq
        %v5854 = vshrl.u32 %v5853, 7
        %v5855 = vsub.s32 %v5852, %v5854
        %v5856 = vrot.slane %v5834, %v5855
        %v5858 = vunpack.c.l.s4 1966171168
        %v5859 = vunpack.c.0.s8 %v5858
        %v5860 = vlaneseq
        %v5861 = vshrl.u32 %v5860, 7
        %v5862 = vsub.s32 %v5859, %v5861
        %v5863 = vrot.slane %v5835, %v5862
        %v5864 = vcombine.low %v5842, %v5849
        %v5865 = vcombine.low %v5856, %v5863
        %v5867 = vunpack.c.l.s4 1966171168
        %v5868 = vunpack.c.0.s8 %v5867
        %v5869 = vlaneseq
        %v5870 = vshrl.u32 %v5869, 7
        %v5871 = vsub.s32 %v5868, %v5870
        %v5872 = vrot.slane %v5864, %v5871
        %v5874 = vunpack.c.l.s4 1966171168
        %v5875 = vunpack.c.0.s8 %v5874
        %v5876 = vlaneseq
        %v5877 = vshrl.u32 %v5876, 7
        %v5878 = vsub.s32 %v5875, %v5877
        %v5879 = vrot.slane %v5865, %v5878
        %v5880 = vcombine.low %v5872, %v5879
        %v5881 = vcombine.low %v4605, %v4609
        %v5882 = vcombine.low %v4613, %v4617
        %v5883 = vcombine.low %v4621, %v4625
        %v5884 = vcombine.low %v4629, %v4633
        %v5886 = vunpack.c.l.s4 1966171168
        %v5887 = vunpack.c.0.s8 %v5886
        %v5888 = vlaneseq
        %v5889 = vshrl.u32 %v5888, 7
        %v5890 = vsub.s32 %v5887, %v5889
        %v5891 = vrot.slane %v5881, %v5890
        %v5893 = vunpack.c.l.s4 1966171168
        %v5894 = vunpack.c.0.s8 %v5893
        %v5895 = vlaneseq
        %v5896 = vshrl.u32 %v5895, 7
        %v5897 = vsub.s32 %v5894, %v5896
        %v5898 = vrot.slane %v5882, %v5897
        %v5900 = vunpack.c.l.s4 1966171168
        %v5901 = vunpack.c.0.s8 %v5900
        %v5902 = vlaneseq
        %v5903 = vshrl.u32 %v5902, 7
        %v5904 = vsub.s32 %v5901, %v5903
        %v5905 = vrot.slane %v5883, %v5904
        %v5907 = vunpack.c.l.s4 1966171168
        %v5908 = vunpack.c.0.s8 %v5907
        %v5909 = vlaneseq
        %v5910 = vshrl.u32 %v5909, 7
        %v5911 = vsub.s32 %v5908, %v5910
        %v5912 = vrot.slane %v5884, %v5911
        %v5913 = vcombine.low %v5891, %v5898
        %v5914 = vcombine.low %v5905, %v5912
        %v5916 = vunpack.c.l.s4 1966171168
        %v5917 = vunpack.c.0.s8 %v5916
        %v5918 = vlaneseq
        %v5919 = vshrl.u32 %v5918, 7
        %v5920 = vsub.s32 %v5917, %v5919
        %v5921 = vrot.slane %v5913, %v5920
        %v5923 = vunpack.c.l.s4 1966171168
        %v5924 = vunpack.c.0.s8 %v5923
        %v5925 = vlaneseq
        %v5926 = vshrl.u32 %v5925, 7
        %v5927 = vsub.s32 %v5924, %v5926
        %v5928 = vrot.slane %v5914, %v5927
        %v5929 = vcombine.low %v5921, %v5928
        %v5930 = vcombine.low %v4637, %v4641
        %v5931 = vcombine.low %v4645, %v4649
        %v5932 = vcombine.low %v4653, %v4657
        %v5933 = vcombine.low %v4661, %v4665
        %v5935 = vunpack.c.l.s4 1966171168
        %v5936 = vunpack.c.0.s8 %v5935
        %v5937 = vlaneseq
        %v5938 = vshrl.u32 %v5937, 7
        %v5939 = vsub.s32 %v5936, %v5938
        %v5940 = vrot.slane %v5930, %v5939
        %v5942 = vunpack.c.l.s4 1966171168
        %v5943 = vunpack.c.0.s8 %v5942
        %v5944 = vlaneseq
        %v5945 = vshrl.u32 %v5944, 7
        %v5946 = vsub.s32 %v5943, %v5945
        %v5947 = vrot.slane %v5931, %v5946
        %v5949 = vunpack.c.l.s4 1966171168
        %v5950 = vunpack.c.0.s8 %v5949
        %v5951 = vlaneseq
        %v5952 = vshrl.u32 %v5951, 7
        %v5953 = vsub.s32 %v5950, %v5952
        %v5954 = vrot.slane %v5932, %v5953
        %v5956 = vunpack.c.l.s4 1966171168
        %v5957 = vunpack.c.0.s8 %v5956
        %v5958 = vlaneseq
        %v5959 = vshrl.u32 %v5958, 7
        %v5960 = vsub.s32 %v5957, %v5959
        %v5961 = vrot.slane %v5933, %v5960
        %v5962 = vcombine.low %v5940, %v5947
        %v5963 = vcombine.low %v5954, %v5961
        %v5965 = vunpack.c.l.s4 1966171168
        %v5966 = vunpack.c.0.s8 %v5965
        %v5967 = vlaneseq
        %v5968 = vshrl.u32 %v5967, 7
        %v5969 = vsub.s32 %v5966, %v5968
        %v5970 = vrot.slane %v5962, %v5969
        %v5972 = vunpack.c.l.s4 1966171168
        %v5973 = vunpack.c.0.s8 %v5972
        %v5974 = vlaneseq
        %v5975 = vshrl.u32 %v5974, 7
        %v5976 = vsub.s32 %v5973, %v5975
        %v5977 = vrot.slane %v5963, %v5976
        %v5978 = vcombine.low %v5970, %v5977
        %v5979 = vcombine.low %v4669, %v4673
        %v5980 = vcombine.low %v4677, %v4681
        %v5981 = vcombine.low %v4685, %v4689
        %v5982 = vcombine.low %v4693, %v4697
        %v5984 = vunpack.c.l.s4 1966171168
        %v5985 = vunpack.c.0.s8 %v5984
        %v5986 = vlaneseq
        %v5987 = vshrl.u32 %v5986, 7
        %v5988 = vsub.s32 %v5985, %v5987
        %v5989 = vrot.slane %v5979, %v5988
        %v5991 = vunpack.c.l.s4 1966171168
        %v5992 = vunpack.c.0.s8 %v5991
        %v5993 = vlaneseq
        %v5994 = vshrl.u32 %v5993, 7
        %v5995 = vsub.s32 %v5992, %v5994
        %v5996 = vrot.slane %v5980, %v5995
        %v5998 = vunpack.c.l.s4 1966171168
        %v5999 = vunpack.c.0.s8 %v5998
        %v6000 = vlaneseq
        %v6001 = vshrl.u32 %v6000, 7
        %v6002 = vsub.s32 %v5999, %v6001
        %v6003 = vrot.slane %v5981, %v6002
        %v6005 = vunpack.c.l.s4 1966171168
        %v6006 = vunpack.c.0.s8 %v6005
        %v6007 = vlaneseq
        %v6008 = vshrl.u32 %v6007, 7
        %v6009 = vsub.s32 %v6006, %v6008
        %v6010 = vrot.slane %v5982, %v6009
        %v6011 = vcombine.low %v5989, %v5996
        %v6012 = vcombine.low %v6003, %v6010
        %v6014 = vunpack.c.l.s4 1966171168
        %v6015 = vunpack.c.0.s8 %v6014
        %v6016 = vlaneseq
        %v6017 = vshrl.u32 %v6016, 7
        %v6018 = vsub.s32 %v6015, %v6017
        %v6019 = vrot.slane %v6011, %v6018
        %v6021 = vunpack.c.l.s4 1966171168
        %v6022 = vunpack.c.0.s8 %v6021
        %v6023 = vlaneseq
        %v6024 = vshrl.u32 %v6023, 7
        %v6025 = vsub.s32 %v6022, %v6024
        %v6026 = vrot.slane %v6012, %v6025
        %v6027 = vcombine.low %v6019, %v6026
        %v6028 = vcombine.low %v4701, %v4705
        %v6029 = vcombine.low %v4709, %v4713
        %v6030 = vcombine.low %v4717, %v4721
        %v6031 = vcombine.low %v4725, %v4729
        %v6033 = vunpack.c.l.s4 1966171168
        %v6034 = vunpack.c.0.s8 %v6033
        %v6035 = vlaneseq
        %v6036 = vshrl.u32 %v6035, 7
        %v6037 = vsub.s32 %v6034, %v6036
        %v6038 = vrot.slane %v6028, %v6037
        %v6040 = vunpack.c.l.s4 1966171168
        %v6041 = vunpack.c.0.s8 %v6040
        %v6042 = vlaneseq
        %v6043 = vshrl.u32 %v6042, 7
        %v6044 = vsub.s32 %v6041, %v6043
        %v6045 = vrot.slane %v6029, %v6044
        %v6047 = vunpack.c.l.s4 1966171168
        %v6048 = vunpack.c.0.s8 %v6047
        %v6049 = vlaneseq
        %v6050 = vshrl.u32 %v6049, 7
        %v6051 = vsub.s32 %v6048, %v6050
        %v6052 = vrot.slane %v6030, %v6051
        %v6054 = vunpack.c.l.s4 1966171168
        %v6055 = vunpack.c.0.s8 %v6054
        %v6056 = vlaneseq
        %v6057 = vshrl.u32 %v6056, 7
        %v6058 = vsub.s32 %v6055, %v6057
        %v6059 = vrot.slane %v6031, %v6058
        %v6060 = vcombine.low %v6038, %v6045
        %v6061 = vcombine.low %v6052, %v6059
        %v6063 = vunpack.c.l.s4 1966171168
        %v6064 = vunpack.c.0.s8 %v6063
        %v6065 = vlaneseq
        %v6066 = vshrl.u32 %v6065, 7
        %v6067 = vsub.s32 %v6064, %v6066
        %v6068 = vrot.slane %v6060, %v6067
        %v6070 = vunpack.c.l.s4 1966171168
        %v6071 = vunpack.c.0.s8 %v6070
        %v6072 = vlaneseq
        %v6073 = vshrl.u32 %v6072, 7
        %v6074 = vsub.s32 %v6071, %v6073
        %v6075 = vrot.slane %v6061, %v6074
        %v6076 = vcombine.low %v6068, %v6075
        %v6077 = vcombine.low %v4733, %v4737
        %v6078 = vcombine.low %v4741, %v4745
        %v6079 = vcombine.low %v4749, %v4753
        %v6080 = vcombine.low %v4757, %v4761
        %v6082 = vunpack.c.l.s4 1966171168
        %v6083 = vunpack.c.0.s8 %v6082
        %v6084 = vlaneseq
        %v6085 = vshrl.u32 %v6084, 7
        %v6086 = vsub.s32 %v6083, %v6085
        %v6087 = vrot.slane %v6077, %v6086
        %v6089 = vunpack.c.l.s4 1966171168
        %v6090 = vunpack.c.0.s8 %v6089
        %v6091 = vlaneseq
        %v6092 = vshrl.u32 %v6091, 7
        %v6093 = vsub.s32 %v6090, %v6092
        %v6094 = vrot.slane %v6078, %v6093
        %v6096 = vunpack.c.l.s4 1966171168
        %v6097 = vunpack.c.0.s8 %v6096
        %v6098 = vlaneseq
        %v6099 = vshrl.u32 %v6098, 7
        %v6100 = vsub.s32 %v6097, %v6099
        %v6101 = vrot.slane %v6079, %v6100
        %v6103 = vunpack.c.l.s4 1966171168
        %v6104 = vunpack.c.0.s8 %v6103
        %v6105 = vlaneseq
        %v6106 = vshrl.u32 %v6105, 7
        %v6107 = vsub.s32 %v6104, %v6106
        %v6108 = vrot.slane %v6080, %v6107
        %v6109 = vcombine.low %v6087, %v6094
        %v6110 = vcombine.low %v6101, %v6108
        %v6112 = vunpack.c.l.s4 1966171168
        %v6113 = vunpack.c.0.s8 %v6112
        %v6114 = vlaneseq
        %v6115 = vshrl.u32 %v6114, 7
        %v6116 = vsub.s32 %v6113, %v6115
        %v6117 = vrot.slane %v6109, %v6116
        %v6119 = vunpack.c.l.s4 1966171168
        %v6120 = vunpack.c.0.s8 %v6119
        %v6121 = vlaneseq
        %v6122 = vshrl.u32 %v6121, 7
        %v6123 = vsub.s32 %v6120, %v6122
        %v6124 = vrot.slane %v6110, %v6123
        %v6125 = vcombine.low %v6117, %v6124
        %v6126 = vcombine.low %v4765, %v4769
        %v6127 = vcombine.low %v4773, %v4777
        %v6128 = vcombine.low %v4781, %v4785
        %v6129 = vcombine.low %v4789, %v4793
        %v6131 = vunpack.c.l.s4 1966171168
        %v6132 = vunpack.c.0.s8 %v6131
        %v6133 = vlaneseq
        %v6134 = vshrl.u32 %v6133, 7
        %v6135 = vsub.s32 %v6132, %v6134
        %v6136 = vrot.slane %v6126, %v6135
        %v6138 = vunpack.c.l.s4 1966171168
        %v6139 = vunpack.c.0.s8 %v6138
        %v6140 = vlaneseq
        %v6141 = vshrl.u32 %v6140, 7
        %v6142 = vsub.s32 %v6139, %v6141
        %v6143 = vrot.slane %v6127, %v6142
        %v6145 = vunpack.c.l.s4 1966171168
        %v6146 = vunpack.c.0.s8 %v6145
        %v6147 = vlaneseq
        %v6148 = vshrl.u32 %v6147, 7
        %v6149 = vsub.s32 %v6146, %v6148
        %v6150 = vrot.slane %v6128, %v6149
        %v6152 = vunpack.c.l.s4 1966171168
        %v6153 = vunpack.c.0.s8 %v6152
        %v6154 = vlaneseq
        %v6155 = vshrl.u32 %v6154, 7
        %v6156 = vsub.s32 %v6153, %v6155
        %v6157 = vrot.slane %v6129, %v6156
        %v6158 = vcombine.low %v6136, %v6143
        %v6159 = vcombine.low %v6150, %v6157
        %v6161 = vunpack.c.l.s4 1966171168
        %v6162 = vunpack.c.0.s8 %v6161
        %v6163 = vlaneseq
        %v6164 = vshrl.u32 %v6163, 7
        %v6165 = vsub.s32 %v6162, %v6164
        %v6166 = vrot.slane %v6158, %v6165
        %v6168 = vunpack.c.l.s4 1966171168
        %v6169 = vunpack.c.0.s8 %v6168
        %v6170 = vlaneseq
        %v6171 = vshrl.u32 %v6170, 7
        %v6172 = vsub.s32 %v6169, %v6171
        %v6173 = vrot.slane %v6159, %v6172
        %v6174 = vcombine.low %v6166, %v6173
        %v6175 = vcombine.low %v4797, %v4801
        %v6176 = vcombine.low %v4805, %v4809
        %v6177 = vcombine.low %v4813, %v4817
        %v6178 = vcombine.low %v4821, %v4825
        %v6180 = vunpack.c.l.s4 1966171168
        %v6181 = vunpack.c.0.s8 %v6180
        %v6182 = vlaneseq
        %v6183 = vshrl.u32 %v6182, 7
        %v6184 = vsub.s32 %v6181, %v6183
        %v6185 = vrot.slane %v6175, %v6184
        %v6187 = vunpack.c.l.s4 1966171168
        %v6188 = vunpack.c.0.s8 %v6187
        %v6189 = vlaneseq
        %v6190 = vshrl.u32 %v6189, 7
        %v6191 = vsub.s32 %v6188, %v6190
        %v6192 = vrot.slane %v6176, %v6191
        %v6194 = vunpack.c.l.s4 1966171168
        %v6195 = vunpack.c.0.s8 %v6194
        %v6196 = vlaneseq
        %v6197 = vshrl.u32 %v6196, 7
        %v6198 = vsub.s32 %v6195, %v6197
        %v6199 = vrot.slane %v6177, %v6198
        %v6201 = vunpack.c.l.s4 1966171168
        %v6202 = vunpack.c.0.s8 %v6201
        %v6203 = vlaneseq
        %v6204 = vshrl.u32 %v6203, 7
        %v6205 = vsub.s32 %v6202, %v6204
        %v6206 = vrot.slane %v6178, %v6205
        %v6207 = vcombine.low %v6185, %v6192
        %v6208 = vcombine.low %v6199, %v6206
        %v6210 = vunpack.c.l.s4 1966171168
        %v6211 = vunpack.c.0.s8 %v6210
        %v6212 = vlaneseq
        %v6213 = vshrl.u32 %v6212, 7
        %v6214 = vsub.s32 %v6211, %v6213
        %v6215 = vrot.slane %v6207, %v6214
        %v6217 = vunpack.c.l.s4 1966171168
        %v6218 = vunpack.c.0.s8 %v6217
        %v6219 = vlaneseq
        %v6220 = vshrl.u32 %v6219, 7
        %v6221 = vsub.s32 %v6218, %v6220
        %v6222 = vrot.slane %v6208, %v6221
        %v6223 = vcombine.low %v6215, %v6222
        %v6224 = vcombine.low %v4829, %v4833
        %v6225 = vcombine.low %v4837, %v4841
        %v6226 = vcombine.low %v4845, %v4849
        %v6227 = vcombine.low %v4853, %v4857
        %v6229 = vunpack.c.l.s4 1966171168
        %v6230 = vunpack.c.0.s8 %v6229
        %v6231 = vlaneseq
        %v6232 = vshrl.u32 %v6231, 7
        %v6233 = vsub.s32 %v6230, %v6232
        %v6234 = vrot.slane %v6224, %v6233
        %v6236 = vunpack.c.l.s4 1966171168
        %v6237 = vunpack.c.0.s8 %v6236
        %v6238 = vlaneseq
        %v6239 = vshrl.u32 %v6238, 7
        %v6240 = vsub.s32 %v6237, %v6239
        %v6241 = vrot.slane %v6225, %v6240
        %v6243 = vunpack.c.l.s4 1966171168
        %v6244 = vunpack.c.0.s8 %v6243
        %v6245 = vlaneseq
        %v6246 = vshrl.u32 %v6245, 7
        %v6247 = vsub.s32 %v6244, %v6246
        %v6248 = vrot.slane %v6226, %v6247
        %v6250 = vunpack.c.l.s4 1966171168
        %v6251 = vunpack.c.0.s8 %v6250
        %v6252 = vlaneseq
        %v6253 = vshrl.u32 %v6252, 7
        %v6254 = vsub.s32 %v6251, %v6253
        %v6255 = vrot.slane %v6227, %v6254
        %v6256 = vcombine.low %v6234, %v6241
        %v6257 = vcombine.low %v6248, %v6255
        %v6259 = vunpack.c.l.s4 1966171168
        %v6260 = vunpack.c.0.s8 %v6259
        %v6261 = vlaneseq
        %v6262 = vshrl.u32 %v6261, 7
        %v6263 = vsub.s32 %v6260, %v6262
        %v6264 = vrot.slane %v6256, %v6263
        %v6266 = vunpack.c.l.s4 1966171168
        %v6267 = vunpack.c.0.s8 %v6266
        %v6268 = vlaneseq
        %v6269 = vshrl.u32 %v6268, 7
        %v6270 = vsub.s32 %v6267, %v6269
        %v6271 = vrot.slane %v6257, %v6270
        %v6272 = vcombine.low %v6264, %v6271
        %v6273 = vcombine.low %v4861, %v4865
        %v6274 = vcombine.low %v4869, %v4873
        %v6275 = vcombine.low %v4877, %v4881
        %v6276 = vcombine.low %v4885, %v4889
        %v6278 = vunpack.c.l.s4 1966171168
        %v6279 = vunpack.c.0.s8 %v6278
        %v6280 = vlaneseq
        %v6281 = vshrl.u32 %v6280, 7
        %v6282 = vsub.s32 %v6279, %v6281
        %v6283 = vrot.slane %v6273, %v6282
        %v6285 = vunpack.c.l.s4 1966171168
        %v6286 = vunpack.c.0.s8 %v6285
        %v6287 = vlaneseq
        %v6288 = vshrl.u32 %v6287, 7
        %v6289 = vsub.s32 %v6286, %v6288
        %v6290 = vrot.slane %v6274, %v6289
        %v6292 = vunpack.c.l.s4 1966171168
        %v6293 = vunpack.c.0.s8 %v6292
        %v6294 = vlaneseq
        %v6295 = vshrl.u32 %v6294, 7
        %v6296 = vsub.s32 %v6293, %v6295
        %v6297 = vrot.slane %v6275, %v6296
        %v6299 = vunpack.c.l.s4 1966171168
        %v6300 = vunpack.c.0.s8 %v6299
        %v6301 = vlaneseq
        %v6302 = vshrl.u32 %v6301, 7
        %v6303 = vsub.s32 %v6300, %v6302
        %v6304 = vrot.slane %v6276, %v6303
        %v6305 = vcombine.low %v6283, %v6290
        %v6306 = vcombine.low %v6297, %v6304
        %v6308 = vunpack.c.l.s4 1966171168
        %v6309 = vunpack.c.0.s8 %v6308
        %v6310 = vlaneseq
        %v6311 = vshrl.u32 %v6310, 7
        %v6312 = vsub.s32 %v6309, %v6311
        %v6313 = vrot.slane %v6305, %v6312
        %v6315 = vunpack.c.l.s4 1966171168
        %v6316 = vunpack.c.0.s8 %v6315
        %v6317 = vlaneseq
        %v6318 = vshrl.u32 %v6317, 7
        %v6319 = vsub.s32 %v6316, %v6318
        %v6320 = vrot.slane %v6306, %v6319
        %v6321 = vcombine.low %v6313, %v6320
        %v6322 = vcombine.low %v4893, %v4897
        %v6323 = vcombine.low %v4901, %v4905
        %v6324 = vcombine.low %v4909, %v4913
        %v6325 = vcombine.low %v4917, %v4921
        %v6327 = vunpack.c.l.s4 1966171168
        %v6328 = vunpack.c.0.s8 %v6327
        %v6329 = vlaneseq
        %v6330 = vshrl.u32 %v6329, 7
        %v6331 = vsub.s32 %v6328, %v6330
        %v6332 = vrot.slane %v6322, %v6331
        %v6334 = vunpack.c.l.s4 1966171168
        %v6335 = vunpack.c.0.s8 %v6334
        %v6336 = vlaneseq
        %v6337 = vshrl.u32 %v6336, 7
        %v6338 = vsub.s32 %v6335, %v6337
        %v6339 = vrot.slane %v6323, %v6338
        %v6341 = vunpack.c.l.s4 1966171168
        %v6342 = vunpack.c.0.s8 %v6341
        %v6343 = vlaneseq
        %v6344 = vshrl.u32 %v6343, 7
        %v6345 = vsub.s32 %v6342, %v6344
        %v6346 = vrot.slane %v6324, %v6345
        %v6348 = vunpack.c.l.s4 1966171168
        %v6349 = vunpack.c.0.s8 %v6348
        %v6350 = vlaneseq
        %v6351 = vshrl.u32 %v6350, 7
        %v6352 = vsub.s32 %v6349, %v6351
        %v6353 = vrot.slane %v6325, %v6352
        %v6354 = vcombine.low %v6332, %v6339
        %v6355 = vcombine.low %v6346, %v6353
        %v6357 = vunpack.c.l.s4 1966171168
        %v6358 = vunpack.c.0.s8 %v6357
        %v6359 = vlaneseq
        %v6360 = vshrl.u32 %v6359, 7
        %v6361 = vsub.s32 %v6358, %v6360
        %v6362 = vrot.slane %v6354, %v6361
        %v6364 = vunpack.c.l.s4 1966171168
        %v6365 = vunpack.c.0.s8 %v6364
        %v6366 = vlaneseq
        %v6367 = vshrl.u32 %v6366, 7
        %v6368 = vsub.s32 %v6365, %v6367
        %v6369 = vrot.slane %v6355, %v6368
        %v6370 = vcombine.low %v6362, %v6369
        %v6371 = vcombine.low %v4925, %v4929
        %v6372 = vcombine.low %v4933, %v4937
        %v6373 = vcombine.low %v4941, %v4945
        %v6374 = vcombine.low %v4949, %v4953
        %v6376 = vunpack.c.l.s4 1966171168
        %v6377 = vunpack.c.0.s8 %v6376
        %v6378 = vlaneseq
        %v6379 = vshrl.u32 %v6378, 7
        %v6380 = vsub.s32 %v6377, %v6379
        %v6381 = vrot.slane %v6371, %v6380
        %v6383 = vunpack.c.l.s4 1966171168
        %v6384 = vunpack.c.0.s8 %v6383
        %v6385 = vlaneseq
        %v6386 = vshrl.u32 %v6385, 7
        %v6387 = vsub.s32 %v6384, %v6386
        %v6388 = vrot.slane %v6372, %v6387
        %v6390 = vunpack.c.l.s4 1966171168
        %v6391 = vunpack.c.0.s8 %v6390
        %v6392 = vlaneseq
        %v6393 = vshrl.u32 %v6392, 7
        %v6394 = vsub.s32 %v6391, %v6393
        %v6395 = vrot.slane %v6373, %v6394
        %v6397 = vunpack.c.l.s4 1966171168
        %v6398 = vunpack.c.0.s8 %v6397
        %v6399 = vlaneseq
        %v6400 = vshrl.u32 %v6399, 7
        %v6401 = vsub.s32 %v6398, %v6400
        %v6402 = vrot.slane %v6374, %v6401
        %v6403 = vcombine.low %v6381, %v6388
        %v6404 = vcombine.low %v6395, %v6402
        %v6406 = vunpack.c.l.s4 1966171168
        %v6407 = vunpack.c.0.s8 %v6406
        %v6408 = vlaneseq
        %v6409 = vshrl.u32 %v6408, 7
        %v6410 = vsub.s32 %v6407, %v6409
        %v6411 = vrot.slane %v6403, %v6410
        %v6413 = vunpack.c.l.s4 1966171168
        %v6414 = vunpack.c.0.s8 %v6413
        %v6415 = vlaneseq
        %v6416 = vshrl.u32 %v6415, 7
        %v6417 = vsub.s32 %v6414, %v6416
        %v6418 = vrot.slane %v6404, %v6417
        %v6419 = vcombine.low %v6411, %v6418
        %v6420 = vcombine.low %v4957, %v4961
        %v6421 = vcombine.low %v4965, %v4969
        %v6422 = vcombine.low %v4973, %v4977
        %v6423 = vcombine.low %v4981, %v4985
        %v6425 = vunpack.c.l.s4 1966171168
        %v6426 = vunpack.c.0.s8 %v6425
        %v6427 = vlaneseq
        %v6428 = vshrl.u32 %v6427, 7
        %v6429 = vsub.s32 %v6426, %v6428
        %v6430 = vrot.slane %v6420, %v6429
        %v6432 = vunpack.c.l.s4 1966171168
        %v6433 = vunpack.c.0.s8 %v6432
        %v6434 = vlaneseq
        %v6435 = vshrl.u32 %v6434, 7
        %v6436 = vsub.s32 %v6433, %v6435
        %v6437 = vrot.slane %v6421, %v6436
        %v6439 = vunpack.c.l.s4 1966171168
        %v6440 = vunpack.c.0.s8 %v6439
        %v6441 = vlaneseq
        %v6442 = vshrl.u32 %v6441, 7
        %v6443 = vsub.s32 %v6440, %v6442
        %v6444 = vrot.slane %v6422, %v6443
        %v6446 = vunpack.c.l.s4 1966171168
        %v6447 = vunpack.c.0.s8 %v6446
        %v6448 = vlaneseq
        %v6449 = vshrl.u32 %v6448, 7
        %v6450 = vsub.s32 %v6447, %v6449
        %v6451 = vrot.slane %v6423, %v6450
        %v6452 = vcombine.low %v6430, %v6437
        %v6453 = vcombine.low %v6444, %v6451
        %v6455 = vunpack.c.l.s4 1966171168
        %v6456 = vunpack.c.0.s8 %v6455
        %v6457 = vlaneseq
        %v6458 = vshrl.u32 %v6457, 7
        %v6459 = vsub.s32 %v6456, %v6458
        %v6460 = vrot.slane %v6452, %v6459
        %v6462 = vunpack.c.l.s4 1966171168
        %v6463 = vunpack.c.0.s8 %v6462
        %v6464 = vlaneseq
        %v6465 = vshrl.u32 %v6464, 7
        %v6466 = vsub.s32 %v6463, %v6465
        %v6467 = vrot.slane %v6453, %v6466
        %v6468 = vcombine.low %v6460, %v6467
        %v6469 = vcombine.low %v4989, %v4993
        %v6470 = vcombine.low %v4997, %v5001
        %v6471 = vcombine.low %v5005, %v5009
        %v6472 = vcombine.low %v5013, %v5017
        %v6474 = vunpack.c.l.s4 1966171168
        %v6475 = vunpack.c.0.s8 %v6474
        %v6476 = vlaneseq
        %v6477 = vshrl.u32 %v6476, 7
        %v6478 = vsub.s32 %v6475, %v6477
        %v6479 = vrot.slane %v6469, %v6478
        %v6481 = vunpack.c.l.s4 1966171168
        %v6482 = vunpack.c.0.s8 %v6481
        %v6483 = vlaneseq
        %v6484 = vshrl.u32 %v6483, 7
        %v6485 = vsub.s32 %v6482, %v6484
        %v6486 = vrot.slane %v6470, %v6485
        %v6488 = vunpack.c.l.s4 1966171168
        %v6489 = vunpack.c.0.s8 %v6488
        %v6490 = vlaneseq
        %v6491 = vshrl.u32 %v6490, 7
        %v6492 = vsub.s32 %v6489, %v6491
        %v6493 = vrot.slane %v6471, %v6492
        %v6495 = vunpack.c.l.s4 1966171168
        %v6496 = vunpack.c.0.s8 %v6495
        %v6497 = vlaneseq
        %v6498 = vshrl.u32 %v6497, 7
        %v6499 = vsub.s32 %v6496, %v6498
        %v6500 = vrot.slane %v6472, %v6499
        %v6501 = vcombine.low %v6479, %v6486
        %v6502 = vcombine.low %v6493, %v6500
        %v6504 = vunpack.c.l.s4 1966171168
        %v6505 = vunpack.c.0.s8 %v6504
        %v6506 = vlaneseq
        %v6507 = vshrl.u32 %v6506, 7
        %v6508 = vsub.s32 %v6505, %v6507
        %v6509 = vrot.slane %v6501, %v6508
        %v6511 = vunpack.c.l.s4 1966171168
        %v6512 = vunpack.c.0.s8 %v6511
        %v6513 = vlaneseq
        %v6514 = vshrl.u32 %v6513, 7
        %v6515 = vsub.s32 %v6512, %v6514
        %v6516 = vrot.slane %v6502, %v6515
        %v6517 = vcombine.low %v6509, %v6516
        %v6518 = vcombine.low %v5021, %v5025
        %v6519 = vcombine.low %v5029, %v5033
        %v6520 = vcombine.low %v5037, %v5041
        %v6521 = vcombine.low %v5045, %v5049
        %v6523 = vunpack.c.l.s4 1966171168
        %v6524 = vunpack.c.0.s8 %v6523
        %v6525 = vlaneseq
        %v6526 = vshrl.u32 %v6525, 7
        %v6527 = vsub.s32 %v6524, %v6526
        %v6528 = vrot.slane %v6518, %v6527
        %v6530 = vunpack.c.l.s4 1966171168
        %v6531 = vunpack.c.0.s8 %v6530
        %v6532 = vlaneseq
        %v6533 = vshrl.u32 %v6532, 7
        %v6534 = vsub.s32 %v6531, %v6533
        %v6535 = vrot.slane %v6519, %v6534
        %v6537 = vunpack.c.l.s4 1966171168
        %v6538 = vunpack.c.0.s8 %v6537
        %v6539 = vlaneseq
        %v6540 = vshrl.u32 %v6539, 7
        %v6541 = vsub.s32 %v6538, %v6540
        %v6542 = vrot.slane %v6520, %v6541
        %v6544 = vunpack.c.l.s4 1966171168
        %v6545 = vunpack.c.0.s8 %v6544
        %v6546 = vlaneseq
        %v6547 = vshrl.u32 %v6546, 7
        %v6548 = vsub.s32 %v6545, %v6547
        %v6549 = vrot.slane %v6521, %v6548
        %v6550 = vcombine.low %v6528, %v6535
        %v6551 = vcombine.low %v6542, %v6549
        %v6553 = vunpack.c.l.s4 1966171168
        %v6554 = vunpack.c.0.s8 %v6553
        %v6555 = vlaneseq
        %v6556 = vshrl.u32 %v6555, 7
        %v6557 = vsub.s32 %v6554, %v6556
        %v6558 = vrot.slane %v6550, %v6557
        %v6560 = vunpack.c.l.s4 1966171168
        %v6561 = vunpack.c.0.s8 %v6560
        %v6562 = vlaneseq
        %v6563 = vshrl.u32 %v6562, 7
        %v6564 = vsub.s32 %v6561, %v6563
        %v6565 = vrot.slane %v6551, %v6564
        %v6566 = vcombine.low %v6558, %v6565
        %v6567 = vcombine.low %v5053, %v5057
        %v6568 = vcombine.low %v5061, %v5065
        %v6569 = vcombine.low %v5069, %v5073
        %v6570 = vcombine.low %v5077, %v5081
        %v6572 = vunpack.c.l.s4 1966171168
        %v6573 = vunpack.c.0.s8 %v6572
        %v6574 = vlaneseq
        %v6575 = vshrl.u32 %v6574, 7
        %v6576 = vsub.s32 %v6573, %v6575
        %v6577 = vrot.slane %v6567, %v6576
        %v6579 = vunpack.c.l.s4 1966171168
        %v6580 = vunpack.c.0.s8 %v6579
        %v6581 = vlaneseq
        %v6582 = vshrl.u32 %v6581, 7
        %v6583 = vsub.s32 %v6580, %v6582
        %v6584 = vrot.slane %v6568, %v6583
        %v6586 = vunpack.c.l.s4 1966171168
        %v6587 = vunpack.c.0.s8 %v6586
        %v6588 = vlaneseq
        %v6589 = vshrl.u32 %v6588, 7
        %v6590 = vsub.s32 %v6587, %v6589
        %v6591 = vrot.slane %v6569, %v6590
        %v6593 = vunpack.c.l.s4 1966171168
        %v6594 = vunpack.c.0.s8 %v6593
        %v6595 = vlaneseq
        %v6596 = vshrl.u32 %v6595, 7
        %v6597 = vsub.s32 %v6594, %v6596
        %v6598 = vrot.slane %v6570, %v6597
        %v6599 = vcombine.low %v6577, %v6584
        %v6600 = vcombine.low %v6591, %v6598
        %v6602 = vunpack.c.l.s4 1966171168
        %v6603 = vunpack.c.0.s8 %v6602
        %v6604 = vlaneseq
        %v6605 = vshrl.u32 %v6604, 7
        %v6606 = vsub.s32 %v6603, %v6605
        %v6607 = vrot.slane %v6599, %v6606
        %v6609 = vunpack.c.l.s4 1966171168
        %v6610 = vunpack.c.0.s8 %v6609
        %v6611 = vlaneseq
        %v6612 = vshrl.u32 %v6611, 7
        %v6613 = vsub.s32 %v6610, %v6612
        %v6614 = vrot.slane %v6600, %v6613
        %v6615 = vcombine.low %v6607, %v6614
        %v6616 = vcombine.low %v5085, %v5089
        %v6617 = vcombine.low %v5093, %v5097
        %v6618 = vcombine.low %v5101, %v5105
        %v6619 = vcombine.low %v5109, %v5113
        %v6621 = vunpack.c.l.s4 1966171168
        %v6622 = vunpack.c.0.s8 %v6621
        %v6623 = vlaneseq
        %v6624 = vshrl.u32 %v6623, 7
        %v6625 = vsub.s32 %v6622, %v6624
        %v6626 = vrot.slane %v6616, %v6625
        %v6628 = vunpack.c.l.s4 1966171168
        %v6629 = vunpack.c.0.s8 %v6628
        %v6630 = vlaneseq
        %v6631 = vshrl.u32 %v6630, 7
        %v6632 = vsub.s32 %v6629, %v6631
        %v6633 = vrot.slane %v6617, %v6632
        %v6635 = vunpack.c.l.s4 1966171168
        %v6636 = vunpack.c.0.s8 %v6635
        %v6637 = vlaneseq
        %v6638 = vshrl.u32 %v6637, 7
        %v6639 = vsub.s32 %v6636, %v6638
        %v6640 = vrot.slane %v6618, %v6639
        %v6642 = vunpack.c.l.s4 1966171168
        %v6643 = vunpack.c.0.s8 %v6642
        %v6644 = vlaneseq
        %v6645 = vshrl.u32 %v6644, 7
        %v6646 = vsub.s32 %v6643, %v6645
        %v6647 = vrot.slane %v6619, %v6646
        %v6648 = vcombine.low %v6626, %v6633
        %v6649 = vcombine.low %v6640, %v6647
        %v6651 = vunpack.c.l.s4 1966171168
        %v6652 = vunpack.c.0.s8 %v6651
        %v6653 = vlaneseq
        %v6654 = vshrl.u32 %v6653, 7
        %v6655 = vsub.s32 %v6652, %v6654
        %v6656 = vrot.slane %v6648, %v6655
        %v6658 = vunpack.c.l.s4 1966171168
        %v6659 = vunpack.c.0.s8 %v6658
        %v6660 = vlaneseq
        %v6661 = vshrl.u32 %v6660, 7
        %v6662 = vsub.s32 %v6659, %v6661
        %v6663 = vrot.slane %v6649, %v6662
        %v6664 = vcombine.low %v6656, %v6663
        %v6665 = vcombine.low %v5117, %v5121
        %v6666 = vcombine.low %v5125, %v5129
        %v6667 = vcombine.low %v5133, %v5137
        %v6668 = vcombine.low %v5141, %v5145
        %v6670 = vunpack.c.l.s4 1966171168
        %v6671 = vunpack.c.0.s8 %v6670
        %v6672 = vlaneseq
        %v6673 = vshrl.u32 %v6672, 7
        %v6674 = vsub.s32 %v6671, %v6673
        %v6675 = vrot.slane %v6665, %v6674
        %v6677 = vunpack.c.l.s4 1966171168
        %v6678 = vunpack.c.0.s8 %v6677
        %v6679 = vlaneseq
        %v6680 = vshrl.u32 %v6679, 7
        %v6681 = vsub.s32 %v6678, %v6680
        %v6682 = vrot.slane %v6666, %v6681
        %v6684 = vunpack.c.l.s4 1966171168
        %v6685 = vunpack.c.0.s8 %v6684
        %v6686 = vlaneseq
        %v6687 = vshrl.u32 %v6686, 7
        %v6688 = vsub.s32 %v6685, %v6687
        %v6689 = vrot.slane %v6667, %v6688
        %v6691 = vunpack.c.l.s4 1966171168
        %v6692 = vunpack.c.0.s8 %v6691
        %v6693 = vlaneseq
        %v6694 = vshrl.u32 %v6693, 7
        %v6695 = vsub.s32 %v6692, %v6694
        %v6696 = vrot.slane %v6668, %v6695
        %v6697 = vcombine.low %v6675, %v6682
        %v6698 = vcombine.low %v6689, %v6696
        %v6700 = vunpack.c.l.s4 1966171168
        %v6701 = vunpack.c.0.s8 %v6700
        %v6702 = vlaneseq
        %v6703 = vshrl.u32 %v6702, 7
        %v6704 = vsub.s32 %v6701, %v6703
        %v6705 = vrot.slane %v6697, %v6704
        %v6707 = vunpack.c.l.s4 1966171168
        %v6708 = vunpack.c.0.s8 %v6707
        %v6709 = vlaneseq
        %v6710 = vshrl.u32 %v6709, 7
        %v6711 = vsub.s32 %v6708, %v6710
        %v6712 = vrot.slane %v6698, %v6711
        %v6713 = vcombine.low %v6705, %v6712
        %6714 = vset.pattern.permute.xlu0 0
        %6715 = vperm.xlu0 %6714, %v5194
        %v6716 = vpop.permute.xlu0 %6715
        %6717 = vset.pattern.permute.xlu0 0
        %6718 = vperm.xlu0 %6717, %v5243
        %v6719 = vpop.permute.xlu0 %6718
        %6720 = vset.pattern.permute.xlu0 0
        %6721 = vperm.xlu0 %6720, %v5292
        %v6722 = vpop.permute.xlu0 %6721
        %6723 = vset.pattern.permute.xlu0 0
        %6724 = vperm.xlu0 %6723, %v5341
        %v6725 = vpop.permute.xlu0 %6724
        %6726 = vset.pattern.permute.xlu0 0
        %6727 = vperm.xlu0 %6726, %v5390
        %v6728 = vpop.permute.xlu0 %6727
        %6729 = vset.pattern.permute.xlu0 0
        %6730 = vperm.xlu0 %6729, %v5439
        %v6731 = vpop.permute.xlu0 %6730
        %6732 = vset.pattern.permute.xlu0 0
        %6733 = vperm.xlu0 %6732, %v5488
        %v6734 = vpop.permute.xlu0 %6733
        %6735 = vset.pattern.permute.xlu0 0
        %6736 = vperm.xlu0 %6735, %v5537
        %v6737 = vpop.permute.xlu0 %6736
        %6738 = vset.pattern.permute.xlu0 0
        %6739 = vperm.xlu0 %6738, %v5586
        %v6740 = vpop.permute.xlu0 %6739
        %6741 = vset.pattern.permute.xlu0 0
        %6742 = vperm.xlu0 %6741, %v5635
        %v6743 = vpop.permute.xlu0 %6742
        %6744 = vset.pattern.permute.xlu0 0
        %6745 = vperm.xlu0 %6744, %v5684
        %v6746 = vpop.permute.xlu0 %6745
        %6747 = vset.pattern.permute.xlu0 0
        %6748 = vperm.xlu0 %6747, %v5733
        %v6749 = vpop.permute.xlu0 %6748
        %6750 = vset.pattern.permute.xlu0 0
        %6751 = vperm.xlu0 %6750, %v5782
        %v6752 = vpop.permute.xlu0 %6751
        %6753 = vset.pattern.permute.xlu0 0
        %6754 = vperm.xlu0 %6753, %v5831
        %v6755 = vpop.permute.xlu0 %6754
        %6756 = vset.pattern.permute.xlu0 0
        %6757 = vperm.xlu0 %6756, %v5880
        %v6758 = vpop.permute.xlu0 %6757
        %6759 = vset.pattern.permute.xlu0 0
        %6760 = vperm.xlu0 %6759, %v5929
        %v6761 = vpop.permute.xlu0 %6760
        %6762 = vset.pattern.permute.xlu0 0
        %6763 = vperm.xlu0 %6762, %v5978
        %v6764 = vpop.permute.xlu0 %6763
        %6765 = vset.pattern.permute.xlu0 0
        %6766 = vperm.xlu0 %6765, %v6027
        %v6767 = vpop.permute.xlu0 %6766
        %6768 = vset.pattern.permute.xlu0 0
        %6769 = vperm.xlu0 %6768, %v6076
        %v6770 = vpop.permute.xlu0 %6769
        %6771 = vset.pattern.permute.xlu0 0
        %6772 = vperm.xlu0 %6771, %v6125
        %v6773 = vpop.permute.xlu0 %6772
        %6774 = vset.pattern.permute.xlu0 0
        %6775 = vperm.xlu0 %6774, %v6174
        %v6776 = vpop.permute.xlu0 %6775
        %6777 = vset.pattern.permute.xlu0 0
        %6778 = vperm.xlu0 %6777, %v6223
        %v6779 = vpop.permute.xlu0 %6778
        %6780 = vset.pattern.permute.xlu0 0
        %6781 = vperm.xlu0 %6780, %v6272
        %v6782 = vpop.permute.xlu0 %6781
        %6783 = vset.pattern.permute.xlu0 0
        %6784 = vperm.xlu0 %6783, %v6321
        %v6785 = vpop.permute.xlu0 %6784
        %6786 = vset.pattern.permute.xlu0 0
        %6787 = vperm.xlu0 %6786, %v6370
        %v6788 = vpop.permute.xlu0 %6787
        %6789 = vset.pattern.permute.xlu0 0
        %6790 = vperm.xlu0 %6789, %v6419
        %v6791 = vpop.permute.xlu0 %6790
        %6792 = vset.pattern.permute.xlu0 0
        %6793 = vperm.xlu0 %6792, %v6468
        %v6794 = vpop.permute.xlu0 %6793
        %6795 = vset.pattern.permute.xlu0 0
        %6796 = vperm.xlu0 %6795, %v6517
        %v6797 = vpop.permute.xlu0 %6796
        %6798 = vset.pattern.permute.xlu0 0
        %6799 = vperm.xlu0 %6798, %v6566
        %v6800 = vpop.permute.xlu0 %6799
        %6801 = vset.pattern.permute.xlu0 0
        %6802 = vperm.xlu0 %6801, %v6615
        %v6803 = vpop.permute.xlu0 %6802
        %6804 = vset.pattern.permute.xlu0 0
        %6805 = vperm.xlu0 %6804, %v6664
        %v6806 = vpop.permute.xlu0 %6805
        %6807 = vset.pattern.permute.xlu0 0
        %6808 = vperm.xlu0 %6807, %v6713
        %v6809 = vpop.permute.xlu0 %6808
        %v6810 = vlaneseq
        %v6811 = vshrl.u32 %v6810, 7
        %v6812 = vsub.s32 %v3431, %v6811
        %v6813 = vrot.slane %v6716, %v6812
        %v6814 = vlaneseq
        %v6815 = vshrl.u32 %v6814, 7
        %v6816 = vsub.s32 %v3436, %v6815
        %v6817 = vrot.slane %v6719, %v6816
        %v6818 = vsel %vm3441, %v6817, %v6813
        %v6819 = vlaneseq
        %v6820 = vshrl.u32 %v6819, 7
        %v6821 = vsub.s32 %v3443, %v6820
        %v6822 = vrot.slane %v6722, %v6821
        %v6823 = vsel %vm3448, %v6822, %v6818
        %v6824 = vlaneseq
        %v6825 = vshrl.u32 %v6824, 7
        %v6826 = vsub.s32 %v3450, %v6825
        %v6827 = vrot.slane %v6725, %v6826
        %v6828 = vsel %vm3455, %v6827, %v6823
        %v6829 = vlaneseq
        %v6830 = vshrl.u32 %v6829, 7
        %v6831 = vsub.s32 %v3457, %v6830
        %v6832 = vrot.slane %v6728, %v6831
        %v6833 = vsel %vm3462, %v6832, %v6828
        %v6834 = vlaneseq
        %v6835 = vshrl.u32 %v6834, 7
        %v6836 = vsub.s32 %v3464, %v6835
        %v6837 = vrot.slane %v6731, %v6836
        %v6838 = vsel %vm3469, %v6837, %v6833
        %v6839 = vlaneseq
        %v6840 = vshrl.u32 %v6839, 7
        %v6841 = vsub.s32 %v3471, %v6840
        %v6842 = vrot.slane %v6734, %v6841
        %v6843 = vsel %vm3476, %v6842, %v6838
        %v6844 = vlaneseq
        %v6845 = vshrl.u32 %v6844, 7
        %v6846 = vsub.s32 %v3478, %v6845
        %v6847 = vrot.slane %v6737, %v6846
        %v6848 = vsel %vm3483, %v6847, %v6843
        %v6849 = vlaneseq
        %v6850 = vshrl.u32 %v6849, 7
        %v6851 = vsub.s32 %v3485, %v6850
        %v6852 = vrot.slane %v6740, %v6851
        %v6853 = vsel %vm3490, %v6852, %v6848
        %v6854 = vlaneseq
        %v6855 = vshrl.u32 %v6854, 7
        %v6856 = vsub.s32 %v3492, %v6855
        %v6857 = vrot.slane %v6743, %v6856
        %v6858 = vsel %vm3497, %v6857, %v6853
        %v6859 = vlaneseq
        %v6860 = vshrl.u32 %v6859, 7
        %v6861 = vsub.s32 %v3499, %v6860
        %v6862 = vrot.slane %v6746, %v6861
        %v6863 = vsel %vm3504, %v6862, %v6858
        %v6864 = vlaneseq
        %v6865 = vshrl.u32 %v6864, 7
        %v6866 = vsub.s32 %v3506, %v6865
        %v6867 = vrot.slane %v6749, %v6866
        %v6868 = vsel %vm3511, %v6867, %v6863
        %v6869 = vlaneseq
        %v6870 = vshrl.u32 %v6869, 7
        %v6871 = vsub.s32 %v3513, %v6870
        %v6872 = vrot.slane %v6752, %v6871
        %v6873 = vsel %vm3518, %v6872, %v6868
        %v6874 = vlaneseq
        %v6875 = vshrl.u32 %v6874, 7
        %v6876 = vsub.s32 %v3520, %v6875
        %v6877 = vrot.slane %v6755, %v6876
        %v6878 = vsel %vm3525, %v6877, %v6873
        %v6879 = vlaneseq
        %v6880 = vshrl.u32 %v6879, 7
        %v6881 = vsub.s32 %v3527, %v6880
        %v6882 = vrot.slane %v6758, %v6881
        %v6883 = vsel %vm3532, %v6882, %v6878
        %v6884 = vlaneseq
        %v6885 = vshrl.u32 %v6884, 7
        %v6886 = vsub.s32 %v3534, %v6885
        %v6887 = vrot.slane %v6761, %v6886
        %v6888 = vsel %vm3539, %v6887, %v6883
        %v6889 = vlaneseq
        %v6890 = vshrl.u32 %v6889, 7
        %v6891 = vsub.s32 %v3431, %v6890
        %v6892 = vrot.slane %v6764, %v6891
        %v6893 = vlaneseq
        %v6894 = vshrl.u32 %v6893, 7
        %v6895 = vsub.s32 %v3436, %v6894
        %v6896 = vrot.slane %v6767, %v6895
        %v6897 = vsel %vm3441, %v6896, %v6892
        %v6898 = vlaneseq
        %v6899 = vshrl.u32 %v6898, 7
        %v6900 = vsub.s32 %v3443, %v6899
        %v6901 = vrot.slane %v6770, %v6900
        %v6902 = vsel %vm3448, %v6901, %v6897
        %v6903 = vlaneseq
        %v6904 = vshrl.u32 %v6903, 7
        %v6905 = vsub.s32 %v3450, %v6904
        %v6906 = vrot.slane %v6773, %v6905
        %v6907 = vsel %vm3455, %v6906, %v6902
        %v6908 = vlaneseq
        %v6909 = vshrl.u32 %v6908, 7
        %v6910 = vsub.s32 %v3457, %v6909
        %v6911 = vrot.slane %v6776, %v6910
        %v6912 = vsel %vm3462, %v6911, %v6907
        %v6913 = vlaneseq
        %v6914 = vshrl.u32 %v6913, 7
        %v6915 = vsub.s32 %v3464, %v6914
        %v6916 = vrot.slane %v6779, %v6915
        %v6917 = vsel %vm3469, %v6916, %v6912
        %v6918 = vlaneseq
        %v6919 = vshrl.u32 %v6918, 7
        %v6920 = vsub.s32 %v3471, %v6919
        %v6921 = vrot.slane %v6782, %v6920
        %v6922 = vsel %vm3476, %v6921, %v6917
        %v6923 = vlaneseq
        %v6924 = vshrl.u32 %v6923, 7
        %v6925 = vsub.s32 %v3478, %v6924
        %v6926 = vrot.slane %v6785, %v6925
        %v6927 = vsel %vm3483, %v6926, %v6922
        %v6928 = vlaneseq
        %v6929 = vshrl.u32 %v6928, 7
        %v6930 = vsub.s32 %v3485, %v6929
        %v6931 = vrot.slane %v6788, %v6930
        %v6932 = vsel %vm3490, %v6931, %v6927
        %v6933 = vlaneseq
        %v6934 = vshrl.u32 %v6933, 7
        %v6935 = vsub.s32 %v3492, %v6934
        %v6936 = vrot.slane %v6791, %v6935
        %v6937 = vsel %vm3497, %v6936, %v6932
        %v6938 = vlaneseq
        %v6939 = vshrl.u32 %v6938, 7
        %v6940 = vsub.s32 %v3499, %v6939
        %v6941 = vrot.slane %v6794, %v6940
        %v6942 = vsel %vm3504, %v6941, %v6937
        %v6943 = vlaneseq
        %v6944 = vshrl.u32 %v6943, 7
        %v6945 = vsub.s32 %v3506, %v6944
        %v6946 = vrot.slane %v6797, %v6945
        %v6947 = vsel %vm3511, %v6946, %v6942
        %v6948 = vlaneseq
        %v6949 = vshrl.u32 %v6948, 7
        %v6950 = vsub.s32 %v3513, %v6949
        %v6951 = vrot.slane %v6800, %v6950
        %v6952 = vsel %vm3518, %v6951, %v6947
        %v6953 = vlaneseq
        %v6954 = vshrl.u32 %v6953, 7
        %v6955 = vsub.s32 %v3520, %v6954
        %v6956 = vrot.slane %v6803, %v6955
        %v6957 = vsel %vm3525, %v6956, %v6952
        %v6958 = vlaneseq
        %v6959 = vshrl.u32 %v6958, 7
        %v6960 = vsub.s32 %v3527, %v6959
        %v6961 = vrot.slane %v6806, %v6960
        %v6962 = vsel %vm3532, %v6961, %v6957
        %v6963 = vlaneseq
        %v6964 = vshrl.u32 %v6963, 7
        %v6965 = vsub.s32 %v3534, %v6964
        %v6966 = vrot.slane %v6809, %v6965
        %v6967 = vsel %vm3539, %v6966, %v6962
        %v6968 = vcombine.low %v6888, %v6967
        %v6970 = vunpack.c.l.s4 1966171168
        %v6971 = vunpack.c.0.s8 %v6970
        %v6972 = vlaneseq
        %v6973 = vshrl.u32 %v6972, 7
        %v6974 = vsub.s32 %v6971, %v6973
        %v6975 = vrot.slane %v6968, %v6974
        %v6977 = vunpack.c.l.s4 1966171168
        %v6978 = vunpack.c.0.s8 %v6977
        %v6979 = vlaneseq
        %v6980 = vshrl.u32 %v6979, 7
        %v6981 = vsub.s32 %v6978, %v6980
        %v6982 = vrot.slane %v6975, %v6981
        %s6984 = scalar_lea.vmem %s219, 1 [#allocation3]
        %6985 = vst.msk [vmem:[%s6984] ss:$2 sm:$0x3] %vm3639, %v6982
        %s6986 = sand.u32 %s138, 1
        %s6987 = scalar_lea.sflag [#allocation4], %s6986
        %s6988 = sand.u32 %s138, 1
        %s6989 = smul.addr %s6988, 4
        %s6990 = scalar_lea.vmem [#allocation3], %s6989
        // Predicated region
        $region41: #{tpu_custom_call.1} parent=39 // pred_check
          %p6991 = pneg %p148
        $region42: #{tpu_custom_call.1} parent=39 // pred_check_branch
          %6993 = sbr.rel (%p6991) target = $region44
        $region43: #{tpu_custom_call.1} parent=39 // pred_region
          %s6995 = ssub.s32 64, 64
          %6996 = vsyncadd %s6987, %s6995
          %s6997 = smul.addr %s20, 2
          %s6998 = smul.addr %s6997, 32
          %s6999 = scalar_lea.hbm %s5, %s6998
          %s7001 = sshll.u32 %s6990, 4
          %s7002 = int_to_ptr.vmem [resolvable:$true] %s7001
          %7004 = dma.vmem_to_hbm [thread:$0]  %s7002, 64, %s6999, %s6987
        $region44: #{tpu_custom_call.1} parent=39 // pred_fallthru
          _
      $region40: #{tpu_custom_call.1} parent=5 // pred_fallthru
        _
      %p7005 = scmp.le.s32.totalorder 2, %s15
      // Predicated region
      $region45: #{tpu_custom_call.1} parent=5 // pred_check
        %p7006 = pneg %p7005
      $region46: #{tpu_custom_call.1} parent=5 // pred_check_branch
        %7008 = sbr.rel (%p7006) target = $region48
      $region47: #{tpu_custom_call.1} parent=5 // pred_region
        %s7009 = ssub.s32 %s15, 2
        // Predicated region
        $region49: #{tpu_custom_call.1} parent=47 // pred_check
          %p7010 = pneg %p154
        $region50: #{tpu_custom_call.1} parent=47 // pred_check_branch
          %7012 = sbr.rel (%p7010) target = $region52
        $region51: #{tpu_custom_call.1} parent=47 // pred_region
          %s7013 = sand.u32 %s139, 1
          %s7014 = scalar_lea.sflag [#allocation4], %s7013
          %s7015 = sand.u32 %s139, 1
          %s7016 = smul.addr %s7015, 4
          %s7017 = scalar_lea.vmem [#allocation3], %s7016
          %7018 = dma.done %s7014, 64
        $region52: #{tpu_custom_call.1} parent=47 // pred_fallthru
          _
      $region48: #{tpu_custom_call.1} parent=5 // pred_fallthru
        _
    $region6: #{tpu_custom_call.1} parent=1 // loop_footer
      %s19 = sadd.s32 1, %s15
    $region7: #{tpu_custom_call.1} parent=1 // loop_footer_branch
      %14 = sbr.rel target = $region3
    $region8: #{tpu_custom_call.1} parent=1 // loop_exit
      _
    %7019 = vsyncpa [#allocation4], 1
    %s7020 = scalar_lea.sflag [#allocation4], 1
    %7021 = vsyncpa %s7020, 1

</llo_original>
